<compile_context>
chip_gen: v5e
topology: v5e:2x2
jax: 0.10.0
libtpu: 0.0.40
codegen_flags: <defaults>
</compile_context>

<pallas_src>
import functools
import math

import jax
import jax.numpy as jnp
from jax import lax
from jax.experimental import pallas as pl
from jax.experimental.pallas import tpu as pltpu


# ----------------------------------------------------------------------------
# Fused kernel: 3x3 conv (9-tap accumulation on the MXU) + bias + norm2D +
# optional fused shortcut (conv1x1+norm2D, or identity residual) + ReLU.
# One grid step = (one batch element, one 128-wide output-channel tile).
# ----------------------------------------------------------------------------
def _block_kernel(params_ref, w_ref, x_ref, *rest,
                  stride, ho, wo, shortcut_mode):
    # rest layout:
    #   shortcut_mode is None  -> (o_ref,)
    #   shortcut_mode == "proj"-> (ws_ref, xs_ref, o_ref)   fused 1x1 shortcut
    #   shortcut_mode == "add" -> (res_ref, o_ref)          identity residual
    if shortcut_mode == "proj":
        ws_ref, xs_ref, o_ref = rest
    elif shortcut_mode == "add":
        res_ref, o_ref = rest
    else:
        (o_ref,) = rest

    m = ho * wo
    cin = x_ref.shape[-1]
    prm = params_ref[...]                       # (8, OCT) f32, packed params

    # --- conv3x3 as 9 accumulated (M, Cin) @ (Cin, OCT) matmuls (bf16->f32) --
    acc = None
    for t in range(9):
        ky, kx = divmod(t, 3)
        ph = (ky % stride) * stride + (kx % stride)   # phase index (static)
        oy, ox = ky // stride, kx // stride           # offset inside phase
        xt = x_ref[0, ph, oy:oy + ho, ox:ox + wo, :].reshape(m, cin)
        d = jnp.dot(xt, w_ref[t], preferred_element_type=jnp.float32)
        acc = d if acc is None else acc + d

    inv_m = jnp.float32(1.0 / m)
    inv_m1 = jnp.float32(1.0 / (m - 1))

    def _norm2d(y, bias, gamma, beta):
        # single-pass unbiased stats; eps added to std (matches torch.std+1e-5)
        y = y + bias
        s1 = jnp.sum(y, axis=0, keepdims=True)
        s2 = jnp.sum(y * y, axis=0, keepdims=True)
        mean = s1 * inv_m
        var = jnp.maximum(s2 - s1 * mean, 0.0) * inv_m1
        std = jnp.sqrt(var) + jnp.float32(1e-5)
        scale = pl.reciprocal(std, approx=False) * gamma     # (1, OCT), cheap
        return y * scale + (beta - mean * scale)              # fused mul-add

    out = _norm2d(acc, prm[0:1], prm[1:2], prm[2:3])

    if shortcut_mode == "proj":
        # fused 1x1-conv shortcut: (M, IC) @ (IC, OCT) + bias + norm2D
        ys = jnp.dot(xs_ref[0], ws_ref[...], preferred_element_type=jnp.float32)
        out = out + _norm2d(ys, prm[3:4], prm[4:5], prm[5:6])
    elif shortcut_mode == "add":
        out = out + res_ref[0]

    o_ref[0] = jnp.maximum(out, 0.0).astype(o_ref.dtype)


def _fused_conv_norm(x_phases, w, params, *, stride, ho, wo, out_dtype,
                     shortcut_mode=None, ws=None, xs=None, res=None):
    """x_phases: (N, s*s, Hph, Wph, Cin); w: (9, Cin, OCP); params: (8, OCP)."""
    n = x_phases.shape[0]
    ocp = w.shape[-1]
    oct_ = min(ocp, 128)            # 128-lane output tile
    n_j = ocp // oct_
    m = ho * wo

    in_specs = [
        pl.BlockSpec((8, oct_), lambda i, j: (0, j)),                  # params
        pl.BlockSpec((9, w.shape[1], oct_), lambda i, j: (0, 0, j)),   # weights
        pl.BlockSpec((1,) + x_phases.shape[1:],
                     lambda i, j: (i, 0, 0, 0, 0)),                    # input
    ]
    args = [params, w, x_phases]
    if shortcut_mode == "proj":
        in_specs.append(pl.BlockSpec((ws.shape[0], oct_), lambda i, j: (0, j)))
        in_specs.append(pl.BlockSpec((1, m, xs.shape[-1]),
                                     lambda i, j: (i, 0, 0)))
        args += [ws, xs]
    elif shortcut_mode == "add":
        in_specs.append(pl.BlockSpec((1, m, oct_), lambda i, j: (i, 0, j)))
        args += [res]

    flops = 2 * n * m * 9 * w.shape[1] * ocp
    if shortcut_mode == "proj":
        flops += 2 * n * m * xs.shape[-1] * ocp
    bytes_accessed = sum(int(a.size) * a.dtype.itemsize for a in args)
    bytes_accessed += n * m * ocp * jnp.dtype(out_dtype).itemsize
    cost = pl.CostEstimate(flops=int(flops), transcendentals=int(2 * n * ocp),
                           bytes_accessed=int(bytes_accessed))

    kernel = functools.partial(_block_kernel, stride=stride, ho=ho, wo=wo,
                               shortcut_mode=shortcut_mode)
    return pl.pallas_call(
        kernel,
        out_shape=jax.ShapeDtypeStruct((n, m, ocp), out_dtype),
        grid=(n, n_j),
        in_specs=in_specs,
        out_specs=pl.BlockSpec((1, m, oct_), lambda i, j: (i, 0, j)),
        compiler_params=pltpu.CompilerParams(
            dimension_semantics=("parallel", "parallel"),
            vmem_limit_bytes=32 * 1024 * 1024),
        cost_estimate=cost,
    )(*args)


# ----------------------------------------------------------------------------
# Wrapper-side layout plumbing (pure data movement, no arithmetic).
# ----------------------------------------------------------------------------
def _round_up(v, mult):
    return ((v + mult - 1) // mult) * mult


def _pad_axis(a, axis, target):
    if a.shape[axis] == target:
        return a
    pad = [(0, 0)] * a.ndim
    pad[axis] = (0, target - a.shape[axis])
    return jnp.pad(a, pad)


def _pack_params(ocp, *rows):
    """Pack per-channel vectors into one resident (8, OCP) f32 block."""
    p = jnp.zeros((8, ocp), jnp.float32)
    for r, v in enumerate(rows):
        v = jnp.asarray(v, jnp.float32).reshape(-1)
        p = p.at[r, :v.shape[0]].set(v)
    return p


def _phase_decompose(xp, stride):
    """Split padded NHWC input into stride*stride spatial phases.

    Tap (ky, kx) of a stride-s conv reads phase (ky%s, kx%s) at a plain
    (ky//s, kx//s) offset -> only contiguous static slices inside the kernel.
    Total bytes stay ~1x the padded input (each element lands in one phase).
    """
    if stride == 1:
        return xp[:, None]                                  # (N, 1, Hp, Wp, C)
    n, hp, wp, c = xp.shape
    hph = -(-hp // stride)
    wph = -(-wp // stride)
    phases = []
    for py in range(stride):
        for px in range(stride):
            ph = xp[:, py::stride, px::stride, :]
            ph = jnp.pad(ph, ((0, 0), (0, hph - ph.shape[1]),
                              (0, wph - ph.shape[2]), (0, 0)))
            phases.append(ph)
    return jnp.stack(phases, axis=1)                        # (N, s*s, Hph, Wph, C)


def residual_block(x_nchw, params, *, stride):
    """Pallas implementation of ResidualBlock.forward (NCHW in, NCHW out)."""
    n, ic, h, w = x_nchw.shape
    oc = params["w1"].shape[0]
    ocp = _round_up(oc, 128)                                # lane-dense channels

    x = jnp.transpose(x_nchw, (0, 2, 3, 1)).astype(jnp.float32)   # NHWC f32
    x_bf = x.astype(jnp.bfloat16)

    ho = (h + 2 - 3) // stride + 1
    wo = (w + 2 - 3) // stride + 1

    # ---- layer 1: conv3x3(stride) + norm2D + ReLU (fused) ------------------
    w1 = jnp.transpose(params["w1"], (2, 3, 1, 0)).reshape(9, ic, oc)
    w1 = _pad_axis(w1, -1, ocp).astype(jnp.bfloat16)
    prm1 = _pack_params(ocp, params["b1"], params["g1"], params["be1"])

    xp = jnp.pad(x_bf, ((0, 0), (1, 1), (1, 1), (0, 0)))
    xph = _phase_decompose(xp, stride)
    hid = _fused_conv_norm(xph, w1, prm1, stride=stride, ho=ho, wo=wo,
                           out_dtype=jnp.bfloat16)          # (N, Ho*Wo, OCP) bf16

    # ---- layer 2: conv3x3(1) + norm2D + shortcut + ReLU (fused) ------------
    hid_img = hid.reshape(n, ho, wo, ocp)
    hid_pad = jnp.pad(hid_img, ((0, 0), (1, 1), (1, 1), (0, 0)))[:, None]

    w2 = jnp.transpose(params["w2"], (2, 3, 1, 0)).reshape(9, oc, oc)
    w2 = _pad_axis(_pad_axis(w2, -1, ocp), -2, ocp).astype(jnp.bfloat16)

    has_proj = (stride != 1) or (ic != oc)
    if has_proj:
        prm2 = _pack_params(ocp, params["b2"], params["g2"], params["be2"],
                            params["bs"], params["gs"], params["bes"])
        ws = _pad_axis(params["ws"].reshape(oc, ic).T, -1, ocp).astype(jnp.bfloat16)
        xs = x_bf[:, ::stride, ::stride, :][:, :ho, :wo, :].reshape(n, ho * wo, ic)
        out = _fused_conv_norm(hid_pad, w2, prm2, stride=1, ho=ho, wo=wo,
                               out_dtype=jnp.float32, shortcut_mode="proj",
                               ws=ws, xs=xs)
    else:
        prm2 = _pack_params(ocp, params["b2"], params["g2"], params["be2"])
        res = _pad_axis(x.reshape(n, h * w, ic), -1, ocp)   # identity, kept f32
        out = _fused_conv_norm(hid_pad, w2, prm2, stride=1, ho=ho, wo=wo,
                               out_dtype=jnp.float32, shortcut_mode="add",
                               res=res)

    out = out.reshape(n, ho, wo, ocp)[..., :oc]
    return jnp.transpose(out, (0, 3, 1, 2))                 # back to NCHW


# ----------------------------------------------------------------------------
# Pure-JAX reference (mirrors the PyTorch module exactly, f32 / HIGHEST).
# ----------------------------------------------------------------------------
def _norm2d_ref(x, gamma, beta):
    mean = jnp.mean(x, axis=(-1, -2), keepdims=True)
    m = x.shape[-1] * x.shape[-2]
    var = jnp.sum((x - mean) ** 2, axis=(-1, -2), keepdims=True) / (m - 1)
    std = jnp.sqrt(var) + 1e-5
    return (x - mean) / std * gamma + beta


def _conv_ref(x, w, b, stride, pad):
    y = lax.conv_general_dilated(
        x, w, window_strides=(stride, stride),
        padding=[(pad, pad), (pad, pad)],
        dimension_numbers=("NCHW", "OIHW", "NCHW"),
        precision=lax.Precision.HIGHEST)
    return y + b.reshape(1, -1, 1, 1)


def _residual_block_ref(x, params, *, stride):
    ic = x.shape[1]
    oc = params["w1"].shape[0]
    h = _conv_ref(x, params["w1"], params["b1"], stride, 1)
    h = _norm2d_ref(h, params["g1"].reshape(1, oc, 1, 1), params["be1"].reshape(1, oc, 1, 1))
    h = jnp.maximum(h, 0.0)
    h = _conv_ref(h, params["w2"], params["b2"], 1, 1)
    h = _norm2d_ref(h, params["g2"].reshape(1, oc, 1, 1), params["be2"].reshape(1, oc, 1, 1))
    if stride != 1 or ic != oc:
        s = _conv_ref(x, params["ws"], params["bs"], stride, 0)
        s = _norm2d_ref(s, params["gs"].reshape(1, oc, 1, 1), params["bes"].reshape(1, oc, 1, 1))
    else:
        s = x
    return jnp.maximum(h + s, 0.0)


def _make_params(key, ic, oc, stride):
    ks = jax.random.split(key, 12)

    def conv_init(kw_, kb_, oc_, ic_, kh, kwid):
        bound = 1.0 / math.sqrt(ic_ * kh * kwid)
        w_ = jax.random.uniform(kw_, (oc_, ic_, kh, kwid), jnp.float32, -bound, bound)
        b_ = jax.random.uniform(kb_, (oc_,), jnp.float32, -bound, bound)
        return w_, b_

    w1, b1 = conv_init(ks[0], ks[1], oc, ic, 3, 3)
    w2, b2 = conv_init(ks[2], ks[3], oc, oc, 3, 3)
    p = dict(
        w1=w1, b1=b1,
        g1=1.0 + 0.1 * jax.random.normal(ks[4], (oc,), jnp.float32),
        be1=0.1 * jax.random.normal(ks[5], (oc,), jnp.float32),
        w2=w2, b2=b2,
        g2=1.0 + 0.1 * jax.random.normal(ks[6], (oc,), jnp.float32),
        be2=0.1 * jax.random.normal(ks[7], (oc,), jnp.float32),
    )
    if stride != 1 or ic != oc:
        ws, bs = conv_init(ks[8], ks[9], oc, ic, 1, 1)
        p.update(
            ws=ws, bs=bs,
            gs=1.0 + 0.1 * jax.random.normal(ks[10], (oc,), jnp.float32),
            bes=0.1 * jax.random.normal(ks[11], (oc,), jnp.float32),
        )
    return p


if __name__ == "__main__":
    root = jax.random.PRNGKey(0)
    k_x1, k_p1, k_x2, k_p2 = jax.random.split(root, 4)

    fwd = jax.jit(residual_block, static_argnames="stride")

    # Test 1: projection shortcut (stride=2, inchannel != outchannel).
    n, ic, oc, h, w, stride = 2, 64, 128, 16, 16, 2
    x1 = jax.random.normal(k_x1, (n, ic, h, w), dtype=jnp.float32)
    params1 = _make_params(k_p1, ic, oc, stride)
    out1 = jax.block_until_ready(fwd(x1, params1, stride=stride))
    ref1 = _residual_block_ref(x1, params1, stride=stride)
    assert out1.shape == (n, oc, h // stride, w // stride)
    err1 = jnp.abs(out1 - ref1)
    # bf16 matmul operands (f32 accumulation) vs f32/HIGHEST reference.
    assert jnp.allclose(out1, ref1, atol=6e-2, rtol=6e-2), f"max err {float(jnp.max(err1))}"
    assert float(jnp.mean(err1)) < 2e-2, f"mean err {float(jnp.mean(err1))}"

    # Test 2: identity shortcut (stride=1, inchannel == outchannel).
    n2, c2, h2, w2 = 2, 64, 16, 16
    x2 = jax.random.normal(k_x2, (n2, c2, h2, w2), dtype=jnp.float32)
    params2 = _make_params(k_p2, c2, c2, 1)
    out2 = jax.block_until_ready(fwd(x2, params2, stride=1))
    ref2 = _residual_block_ref(x2, params2, stride=1)
    assert out2.shape == (n2, c2, h2, w2)
    err2 = jnp.abs(out2 - ref2)
    assert jnp.allclose(out2, ref2, atol=6e-2, rtol=6e-2), f"max err {float(jnp.max(err2))}"
    assert float(jnp.mean(err2)) < 2e-2, f"mean err {float(jnp.mean(err2))}"

    print("KERNEL_OK")
</pallas_src>

<mosaic_0001>
module attributes {stable_mosaic.version = 11 : i64} {
  func.func @_block_kernel(%arg0: i32, %arg1: i32, %arg2: memref<8x128xf32, #tpu.memory_space<vmem>>, %arg3: memref<9x64x128xbf16, #tpu.memory_space<vmem>>, %arg4: memref<1x4x9x9x64xbf16, #tpu.memory_space<vmem>>, %arg5: memref<1x64x128xbf16, #tpu.memory_space<vmem>>) attributes {dimension_semantics = [#tpu.dimension_semantics<parallel>, #tpu.dimension_semantics<parallel>], iteration_bounds = array<i64: 2, 1>, scalar_prefetch = 0 : i64, scratch_operands = 0 : i64, tpu.core_type = #tpu.core_type<tc>, window_params = [{transform_indices = @transform_0, window_bounds = array<i64: 8, 128>}, {transform_indices = @transform_1, window_bounds = array<i64: 9, 64, 128>}, {transform_indices = @transform_2, window_bounds = array<i64: 1, 4, 9, 9, 64>}, {transform_indices = @transform_3, window_bounds = array<i64: 1, 64, 128>}]} {
    %c0 = arith.constant 0 : index
    %c0_0 = arith.constant 0 : index
    %0 = vector.load %arg2[%c0, %c0_0] : memref<8x128xf32, #tpu.memory_space<vmem>>, vector<8x128xf32>
    %c0_1 = arith.constant 0 : index
    %c0_2 = arith.constant 0 : index
    %c0_3 = arith.constant 0 : index
    %c0_4 = arith.constant 0 : index
    %c0_5 = arith.constant 0 : index
    %1 = vector.load %arg4[%c0_1, %c0_2, %c0_3, %c0_4, %c0_5] : memref<1x4x9x9x64xbf16, #tpu.memory_space<vmem>>, vector<1x1x8x8x64xbf16>
    %2 = vector.shape_cast %1 : vector<1x1x8x8x64xbf16> to vector<8x8x64xbf16>
    %3 = vector.shape_cast %2 : vector<8x8x64xbf16> to vector<64x64xbf16>
    %c0_6 = arith.constant 0 : index
    %c0_7 = arith.constant 0 : index
    %c0_8 = arith.constant 0 : index
    %4 = vector.load %arg3[%c0_6, %c0_7, %c0_8] : memref<9x64x128xbf16, #tpu.memory_space<vmem>>, vector<1x64x128xbf16>
    %5 = vector.shape_cast %4 : vector<1x64x128xbf16> to vector<64x128xbf16>
    %cst = arith.constant dense<0.000000e+00> : vector<64x128xf32>
    %6 = tpu.matmul %3, %5, %cst {dimension_numbers = #tpu.dot_dimension_numbers<[1], [0], [0], [1], [0, 0, 1, 1], [], []>} : vector<64x64xbf16>, vector<64x128xbf16>, vector<64x128xf32> -> vector<64x128xf32>
    %c0_9 = arith.constant 0 : index
    %c1 = arith.constant 1 : index
    %c0_10 = arith.constant 0 : index
    %c0_11 = arith.constant 0 : index
    %c0_12 = arith.constant 0 : index
    %7 = vector.load %arg4[%c0_9, %c1, %c0_10, %c0_11, %c0_12] : memref<1x4x9x9x64xbf16, #tpu.memory_space<vmem>>, vector<1x1x8x8x64xbf16>
    %8 = vector.shape_cast %7 : vector<1x1x8x8x64xbf16> to vector<8x8x64xbf16>
    %9 = vector.shape_cast %8 : vector<8x8x64xbf16> to vector<64x64xbf16>
    %c1_13 = arith.constant 1 : index
    %c0_14 = arith.constant 0 : index
    %c0_15 = arith.constant 0 : index
    %10 = vector.load %arg3[%c1_13, %c0_14, %c0_15] : memref<9x64x128xbf16, #tpu.memory_space<vmem>>, vector<1x64x128xbf16>
    %11 = vector.shape_cast %10 : vector<1x64x128xbf16> to vector<64x128xbf16>
    %cst_16 = arith.constant dense<0.000000e+00> : vector<64x128xf32>
    %12 = tpu.matmul %9, %11, %cst_16 {dimension_numbers = #tpu.dot_dimension_numbers<[1], [0], [0], [1], [0, 0, 1, 1], [], []>} : vector<64x64xbf16>, vector<64x128xbf16>, vector<64x128xf32> -> vector<64x128xf32>
    %13 = arith.addf %6, %12 : vector<64x128xf32>
    %c0_17 = arith.constant 0 : index
    %c0_18 = arith.constant 0 : index
    %c0_19 = arith.constant 0 : index
    %c1_20 = arith.constant 1 : index
    %c0_21 = arith.constant 0 : index
    %14 = vector.load %arg4[%c0_17, %c0_18, %c0_19, %c1_20, %c0_21] : memref<1x4x9x9x64xbf16, #tpu.memory_space<vmem>>, vector<1x1x8x8x64xbf16>
    %15 = vector.shape_cast %14 : vector<1x1x8x8x64xbf16> to vector<8x8x64xbf16>
    %16 = vector.shape_cast %15 : vector<8x8x64xbf16> to vector<64x64xbf16>
    %c2 = arith.constant 2 : index
    %c0_22 = arith.constant 0 : index
    %c0_23 = arith.constant 0 : index
    %17 = vector.load %arg3[%c2, %c0_22, %c0_23] : memref<9x64x128xbf16, #tpu.memory_space<vmem>>, vector<1x64x128xbf16>
    %18 = vector.shape_cast %17 : vector<1x64x128xbf16> to vector<64x128xbf16>
    %cst_24 = arith.constant dense<0.000000e+00> : vector<64x128xf32>
    %19 = tpu.matmul %16, %18, %cst_24 {dimension_numbers = #tpu.dot_dimension_numbers<[1], [0], [0], [1], [0, 0, 1, 1], [], []>} : vector<64x64xbf16>, vector<64x128xbf16>, vector<64x128xf32> -> vector<64x128xf32>
    %20 = arith.addf %13, %19 : vector<64x128xf32>
    %c0_25 = arith.constant 0 : index
    %c2_26 = arith.constant 2 : index
    %c0_27 = arith.constant 0 : index
    %c0_28 = arith.constant 0 : index
    %c0_29 = arith.constant 0 : index
    %21 = vector.load %arg4[%c0_25, %c2_26, %c0_27, %c0_28, %c0_29] : memref<1x4x9x9x64xbf16, #tpu.memory_space<vmem>>, vector<1x1x8x8x64xbf16>
    %22 = vector.shape_cast %21 : vector<1x1x8x8x64xbf16> to vector<8x8x64xbf16>
    %23 = vector.shape_cast %22 : vector<8x8x64xbf16> to vector<64x64xbf16>
    %c3 = arith.constant 3 : index
    %c0_30 = arith.constant 0 : index
    %c0_31 = arith.constant 0 : index
    %24 = vector.load %arg3[%c3, %c0_30, %c0_31] : memref<9x64x128xbf16, #tpu.memory_space<vmem>>, vector<1x64x128xbf16>
    %25 = vector.shape_cast %24 : vector<1x64x128xbf16> to vector<64x128xbf16>
    %cst_32 = arith.constant dense<0.000000e+00> : vector<64x128xf32>
    %26 = tpu.matmul %23, %25, %cst_32 {dimension_numbers = #tpu.dot_dimension_numbers<[1], [0], [0], [1], [0, 0, 1, 1], [], []>} : vector<64x64xbf16>, vector<64x128xbf16>, vector<64x128xf32> -> vector<64x128xf32>
    %27 = arith.addf %20, %26 : vector<64x128xf32>
    %c0_33 = arith.constant 0 : index
    %c3_34 = arith.constant 3 : index
    %c0_35 = arith.constant 0 : index
    %c0_36 = arith.constant 0 : index
    %c0_37 = arith.constant 0 : index
    %28 = vector.load %arg4[%c0_33, %c3_34, %c0_35, %c0_36, %c0_37] : memref<1x4x9x9x64xbf16, #tpu.memory_space<vmem>>, vector<1x1x8x8x64xbf16>
    %29 = vector.shape_cast %28 : vector<1x1x8x8x64xbf16> to vector<8x8x64xbf16>
    %30 = vector.shape_cast %29 : vector<8x8x64xbf16> to vector<64x64xbf16>
    %c4 = arith.constant 4 : index
    %c0_38 = arith.constant 0 : index
    %c0_39 = arith.constant 0 : index
    %31 = vector.load %arg3[%c4, %c0_38, %c0_39] : memref<9x64x128xbf16, #tpu.memory_space<vmem>>, vector<1x64x128xbf16>
    %32 = vector.shape_cast %31 : vector<1x64x128xbf16> to vector<64x128xbf16>
    %cst_40 = arith.constant dense<0.000000e+00> : vector<64x128xf32>
    %33 = tpu.matmul %30, %32, %cst_40 {dimension_numbers = #tpu.dot_dimension_numbers<[1], [0], [0], [1], [0, 0, 1, 1], [], []>} : vector<64x64xbf16>, vector<64x128xbf16>, vector<64x128xf32> -> vector<64x128xf32>
    %34 = arith.addf %27, %33 : vector<64x128xf32>
    %c0_41 = arith.constant 0 : index
    %c2_42 = arith.constant 2 : index
    %c0_43 = arith.constant 0 : index
    %c1_44 = arith.constant 1 : index
    %c0_45 = arith.constant 0 : index
    %35 = vector.load %arg4[%c0_41, %c2_42, %c0_43, %c1_44, %c0_45] : memref<1x4x9x9x64xbf16, #tpu.memory_space<vmem>>, vector<1x1x8x8x64xbf16>
    %36 = vector.shape_cast %35 : vector<1x1x8x8x64xbf16> to vector<8x8x64xbf16>
    %37 = vector.shape_cast %36 : vector<8x8x64xbf16> to vector<64x64xbf16>
    %c5 = arith.constant 5 : index
    %c0_46 = arith.constant 0 : index
    %c0_47 = arith.constant 0 : index
    %38 = vector.load %arg3[%c5, %c0_46, %c0_47] : memref<9x64x128xbf16, #tpu.memory_space<vmem>>, vector<1x64x128xbf16>
    %39 = vector.shape_cast %38 : vector<1x64x128xbf16> to vector<64x128xbf16>
    %cst_48 = arith.constant dense<0.000000e+00> : vector<64x128xf32>
    %40 = tpu.matmul %37, %39, %cst_48 {dimension_numbers = #tpu.dot_dimension_numbers<[1], [0], [0], [1], [0, 0, 1, 1], [], []>} : vector<64x64xbf16>, vector<64x128xbf16>, vector<64x128xf32> -> vector<64x128xf32>
    %41 = arith.addf %34, %40 : vector<64x128xf32>
    %c0_49 = arith.constant 0 : index
    %c0_50 = arith.constant 0 : index
    %c1_51 = arith.constant 1 : index
    %c0_52 = arith.constant 0 : index
    %c0_53 = arith.constant 0 : index
    %42 = vector.load %arg4[%c0_49, %c0_50, %c1_51, %c0_52, %c0_53] : memref<1x4x9x9x64xbf16, #tpu.memory_space<vmem>>, vector<1x1x8x8x64xbf16>
    %43 = vector.shape_cast %42 : vector<1x1x8x8x64xbf16> to vector<8x8x64xbf16>
    %44 = vector.shape_cast %43 : vector<8x8x64xbf16> to vector<64x64xbf16>
    %c6 = arith.constant 6 : index
    %c0_54 = arith.constant 0 : index
    %c0_55 = arith.constant 0 : index
    %45 = vector.load %arg3[%c6, %c0_54, %c0_55] : memref<9x64x128xbf16, #tpu.memory_space<vmem>>, vector<1x64x128xbf16>
    %46 = vector.shape_cast %45 : vector<1x64x128xbf16> to vector<64x128xbf16>
    %cst_56 = arith.constant dense<0.000000e+00> : vector<64x128xf32>
    %47 = tpu.matmul %44, %46, %cst_56 {dimension_numbers = #tpu.dot_dimension_numbers<[1], [0], [0], [1], [0, 0, 1, 1], [], []>} : vector<64x64xbf16>, vector<64x128xbf16>, vector<64x128xf32> -> vector<64x128xf32>
    %48 = arith.addf %41, %47 : vector<64x128xf32>
    %c0_57 = arith.constant 0 : index
    %c1_58 = arith.constant 1 : index
    %c1_59 = arith.constant 1 : index
    %c0_60 = arith.constant 0 : index
    %c0_61 = arith.constant 0 : index
    %49 = vector.load %arg4[%c0_57, %c1_58, %c1_59, %c0_60, %c0_61] : memref<1x4x9x9x64xbf16, #tpu.memory_space<vmem>>, vector<1x1x8x8x64xbf16>
    %50 = vector.shape_cast %49 : vector<1x1x8x8x64xbf16> to vector<8x8x64xbf16>
    %51 = vector.shape_cast %50 : vector<8x8x64xbf16> to vector<64x64xbf16>
    %c7 = arith.constant 7 : index
    %c0_62 = arith.constant 0 : index
    %c0_63 = arith.constant 0 : index
    %52 = vector.load %arg3[%c7, %c0_62, %c0_63] : memref<9x64x128xbf16, #tpu.memory_space<vmem>>, vector<1x64x128xbf16>
    %53 = vector.shape_cast %52 : vector<1x64x128xbf16> to vector<64x128xbf16>
    %cst_64 = arith.constant dense<0.000000e+00> : vector<64x128xf32>
    %54 = tpu.matmul %51, %53, %cst_64 {dimension_numbers = #tpu.dot_dimension_numbers<[1], [0], [0], [1], [0, 0, 1, 1], [], []>} : vector<64x64xbf16>, vector<64x128xbf16>, vector<64x128xf32> -> vector<64x128xf32>
    %55 = arith.addf %48, %54 : vector<64x128xf32>
    %c0_65 = arith.constant 0 : index
    %c0_66 = arith.constant 0 : index
    %c1_67 = arith.constant 1 : index
    %c1_68 = arith.constant 1 : index
    %c0_69 = arith.constant 0 : index
    %56 = vector.load %arg4[%c0_65, %c0_66, %c1_67, %c1_68, %c0_69] : memref<1x4x9x9x64xbf16, #tpu.memory_space<vmem>>, vector<1x1x8x8x64xbf16>
    %57 = vector.shape_cast %56 : vector<1x1x8x8x64xbf16> to vector<8x8x64xbf16>
    %58 = vector.shape_cast %57 : vector<8x8x64xbf16> to vector<64x64xbf16>
    %c8 = arith.constant 8 : index
    %c0_70 = arith.constant 0 : index
    %c0_71 = arith.constant 0 : index
    %59 = vector.load %arg3[%c8, %c0_70, %c0_71] : memref<9x64x128xbf16, #tpu.memory_space<vmem>>, vector<1x64x128xbf16>
    %60 = vector.shape_cast %59 : vector<1x64x128xbf16> to vector<64x128xbf16>
    %cst_72 = arith.constant dense<0.000000e+00> : vector<64x128xf32>
    %61 = tpu.matmul %58, %60, %cst_72 {dimension_numbers = #tpu.dot_dimension_numbers<[1], [0], [0], [1], [0, 0, 1, 1], [], []>} : vector<64x64xbf16>, vector<64x128xbf16>, vector<64x128xf32> -> vector<64x128xf32>
    %62 = arith.addf %55, %61 : vector<64x128xf32>
    %63 = vector.extract_strided_slice %0 {offsets = [0, 0], sizes = [1, 128], strides = [1, 1]} : vector<8x128xf32> to vector<1x128xf32>
    %64 = vector.extract_strided_slice %0 {offsets = [1, 0], sizes = [1, 128], strides = [1, 1]} : vector<8x128xf32> to vector<1x128xf32>
    %65 = vector.extract_strided_slice %0 {offsets = [2, 0], sizes = [1, 128], strides = [1, 1]} : vector<8x128xf32> to vector<1x128xf32>
    %66 = vector.broadcast %63 : vector<1x128xf32> to vector<64x128xf32>
    %67 = arith.addf %62, %66 : vector<64x128xf32>
    %cst_73 = arith.constant dense<0.000000e+00> : vector<128xf32>
    %68 = vector.multi_reduction <add>, %67, %cst_73 [0] : vector<64x128xf32> to vector<128xf32>
    %69 = vector.shape_cast %68 : vector<128xf32> to vector<1x128xf32>
    %70 = arith.mulf %67, %67 : vector<64x128xf32>
    %cst_74 = arith.constant dense<0.000000e+00> : vector<128xf32>
    %71 = vector.multi_reduction <add>, %70, %cst_74 [0] : vector<64x128xf32> to vector<128xf32>
    %72 = vector.shape_cast %71 : vector<128xf32> to vector<1x128xf32>
    %cst_75 = arith.constant 1.562500e-02 : f32
    %73 = vector.broadcast %cst_75 : f32 to vector<1x128xf32>
    %74 = arith.mulf %69, %73 : vector<1x128xf32>
    %75 = arith.mulf %69, %74 : vector<1x128xf32>
    %76 = arith.subf %72, %75 : vector<1x128xf32>
    %cst_76 = arith.constant 0.000000e+00 : f32
    %77 = vector.broadcast %cst_76 : f32 to vector<1x128xf32>
    %78 = arith.maximumf %76, %77 : vector<1x128xf32>
    %cst_77 = arith.constant 0.0158730168 : f32
    %79 = vector.broadcast %cst_77 : f32 to vector<1x128xf32>
    %80 = arith.mulf %78, %79 : vector<1x128xf32>
    %81 = math.sqrt %80 : vector<1x128xf32>
    %cst_78 = arith.constant 9.99999974E-6 : f32
    %82 = vector.broadcast %cst_78 : f32 to vector<1x128xf32>
    %83 = arith.addf %81, %82 : vector<1x128xf32>
    %84 = tpu.reciprocal %83 : vector<1x128xf32> -> vector<1x128xf32>
    %85 = arith.mulf %84, %64 : vector<1x128xf32>
    %86 = vector.broadcast %85 : vector<1x128xf32> to vector<64x128xf32>
    %87 = arith.mulf %67, %86 : vector<64x128xf32>
    %88 = arith.mulf %74, %85 : vector<1x128xf32>
    %89 = arith.subf %65, %88 : vector<1x128xf32>
    %90 = vector.broadcast %89 : vector<1x128xf32> to vector<64x128xf32>
    %91 = arith.addf %87, %90 : vector<64x128xf32>
    %cst_79 = arith.constant 0.000000e+00 : f32
    %92 = vector.broadcast %cst_79 : f32 to vector<64x128xf32>
    %93 = arith.maximumf %91, %92 : vector<64x128xf32>
    %94 = arith.truncf %93 : vector<64x128xf32> to vector<64x128xbf16>
    %c0_80 = arith.constant 0 : index
    %c0_81 = arith.constant 0 : index
    %c0_82 = arith.constant 0 : index
    %95 = vector.load %arg5[%c0_80, %c0_81, %c0_82] : memref<1x64x128xbf16, #tpu.memory_space<vmem>>, vector<1x64x128xbf16>
    %96 = vector.shape_cast %95 : vector<1x64x128xbf16> to vector<64x128xbf16>
    %97 = vector.shape_cast %94 : vector<64x128xbf16> to vector<1x64x128xbf16>
    tpu.vector_store %arg5[%c0_80, %c0_81, %c0_82], %97 {strides = array<i32>} : memref<1x64x128xbf16, #tpu.memory_space<vmem>>, vector<1x64x128xbf16>,
    return
  }
  func.func @transform_0(%arg0: i32, %arg1: i32) -> (i32, i32) {
    %c0_i32 = arith.constant 0 : i32
    %c0_i32_0 = arith.constant 0 : i32
    return %c0_i32, %arg1 : i32, i32
  }
  func.func @transform_1(%arg0: i32, %arg1: i32) -> (i32, i32, i32) {
    %c0_i32 = arith.constant 0 : i32
    %c0_i32_0 = arith.constant 0 : i32
    %c0_i32_1 = arith.constant 0 : i32
    return %c0_i32, %c0_i32_0, %arg1 : i32, i32, i32
  }
  func.func @transform_2(%arg0: i32, %arg1: i32) -> (i32, i32, i32, i32, i32) {
    %c0_i32 = arith.constant 0 : i32
    %c0_i32_0 = arith.constant 0 : i32
    %c0_i32_1 = arith.constant 0 : i32
    %c0_i32_2 = arith.constant 0 : i32
    %c0_i32_3 = arith.constant 0 : i32
    return %arg0, %c0_i32, %c0_i32_0, %c0_i32_1, %c0_i32_2 : i32, i32, i32, i32, i32
  }
  func.func @transform_3(%arg0: i32, %arg1: i32) -> (i32, i32, i32) {
    %c0_i32 = arith.constant 0 : i32
    %c0_i32_0 = arith.constant 0 : i32
    return %arg0, %c0_i32, %arg1 : i32, i32, i32
  }
}

module attributes {stable_mosaic.version = 11 : i64} {
  func.func @_block_kernel(%arg0: i32, %arg1: i32, %arg2: memref<8x128xf32, #tpu.memory_space<vmem>>, %arg3: memref<9x128x128xbf16, #tpu.memory_space<vmem>>, %arg4: memref<1x1x10x10x128xbf16, #tpu.memory_space<vmem>>, %arg5: memref<64x128xbf16, #tpu.memory_space<vmem>>, %arg6: memref<1x64x64xbf16, #tpu.memory_space<vmem>>, %arg7: memref<1x64x128xf32, #tpu.memory_space<vmem>>) attributes {dimension_semantics = [#tpu.dimension_semantics<parallel>, #tpu.dimension_semantics<parallel>], iteration_bounds = array<i64: 2, 1>, scalar_prefetch = 0 : i64, scratch_operands = 0 : i64, tpu.core_type = #tpu.core_type<tc>, window_params = [{transform_indices = @transform_0, window_bounds = array<i64: 8, 128>}, {transform_indices = @transform_1, window_bounds = array<i64: 9, 128, 128>}, {transform_indices = @transform_2, window_bounds = array<i64: 1, 1, 10, 10, 128>}, {transform_indices = @transform_3, window_bounds = array<i64: 64, 128>}, {transform_indices = @transform_4, window_bounds = array<i64: 1, 64, 64>}, {transform_indices = @transform_5, window_bounds = array<i64: 1, 64, 128>}]} {
    %c0 = arith.constant 0 : index
    %c0_0 = arith.constant 0 : index
    %0 = vector.load %arg2[%c0, %c0_0] : memref<8x128xf32, #tpu.memory_space<vmem>>, vector<8x128xf32>
    %c0_1 = arith.constant 0 : index
    %c0_2 = arith.constant 0 : index
    %c0_3 = arith.constant 0 : index
    %c0_4 = arith.constant 0 : index
    %c0_5 = arith.constant 0 : index
    %1 = vector.load %arg4[%c0_1, %c0_2, %c0_3, %c0_4, %c0_5] : memref<1x1x10x10x128xbf16, #tpu.memory_space<vmem>>, vector<1x1x8x8x128xbf16>
    %2 = vector.shape_cast %1 : vector<1x1x8x8x128xbf16> to vector<8x8x128xbf16>
    %3 = vector.shape_cast %2 : vector<8x8x128xbf16> to vector<64x128xbf16>
    %c0_6 = arith.constant 0 : index
    %c0_7 = arith.constant 0 : index
    %c0_8 = arith.constant 0 : index
    %4 = vector.load %arg3[%c0_6, %c0_7, %c0_8] : memref<9x128x128xbf16, #tpu.memory_space<vmem>>, vector<1x128x128xbf16>
    %5 = vector.shape_cast %4 : vector<1x128x128xbf16> to vector<128x128xbf16>
    %cst = arith.constant dense<0.000000e+00> : vector<64x128xf32>
    %6 = tpu.matmul %3, %5, %cst {dimension_numbers = #tpu.dot_dimension_numbers<[1], [0], [0], [1], [0, 0, 1, 1], [], []>} : vector<64x128xbf16>, vector<128x128xbf16>, vector<64x128xf32> -> vector<64x128xf32>
    %c0_9 = arith.constant 0 : index
    %c0_10 = arith.constant 0 : index
    %c0_11 = arith.constant 0 : index
    %c1 = arith.constant 1 : index
    %c0_12 = arith.constant 0 : index
    %7 = vector.load %arg4[%c0_9, %c0_10, %c0_11, %c1, %c0_12] : memref<1x1x10x10x128xbf16, #tpu.memory_space<vmem>>, vector<1x1x8x8x128xbf16>
    %8 = vector.shape_cast %7 : vector<1x1x8x8x128xbf16> to vector<8x8x128xbf16>
    %9 = vector.shape_cast %8 : vector<8x8x128xbf16> to vector<64x128xbf16>
    %c1_13 = arith.constant 1 : index
    %c0_14 = arith.constant 0 : index
    %c0_15 = arith.constant 0 : index
    %10 = vector.load %arg3[%c1_13, %c0_14, %c0_15] : memref<9x128x128xbf16, #tpu.memory_space<vmem>>, vector<1x128x128xbf16>
    %11 = vector.shape_cast %10 : vector<1x128x128xbf16> to vector<128x128xbf16>
    %cst_16 = arith.constant dense<0.000000e+00> : vector<64x128xf32>
    %12 = tpu.matmul %9, %11, %cst_16 {dimension_numbers = #tpu.dot_dimension_numbers<[1], [0], [0], [1], [0, 0, 1, 1], [], []>} : vector<64x128xbf16>, vector<128x128xbf16>, vector<64x128xf32> -> vector<64x128xf32>
    %13 = arith.addf %6, %12 : vector<64x128xf32>
    %c0_17 = arith.constant 0 : index
    %c0_18 = arith.constant 0 : index
    %c0_19 = arith.constant 0 : index
    %c2 = arith.constant 2 : index
    %c0_20 = arith.constant 0 : index
    %14 = vector.load %arg4[%c0_17, %c0_18, %c0_19, %c2, %c0_20] : memref<1x1x10x10x128xbf16, #tpu.memory_space<vmem>>, vector<1x1x8x8x128xbf16>
    %15 = vector.shape_cast %14 : vector<1x1x8x8x128xbf16> to vector<8x8x128xbf16>
    %16 = vector.shape_cast %15 : vector<8x8x128xbf16> to vector<64x128xbf16>
    %c2_21 = arith.constant 2 : index
    %c0_22 = arith.constant 0 : index
    %c0_23 = arith.constant 0 : index
    %17 = vector.load %arg3[%c2_21, %c0_22, %c0_23] : memref<9x128x128xbf16, #tpu.memory_space<vmem>>, vector<1x128x128xbf16>
    %18 = vector.shape_cast %17 : vector<1x128x128xbf16> to vector<128x128xbf16>
    %cst_24 = arith.constant dense<0.000000e+00> : vector<64x128xf32>
    %19 = tpu.matmul %16, %18, %cst_24 {dimension_numbers = #tpu.dot_dimension_numbers<[1], [0], [0], [1], [0, 0, 1, 1], [], []>} : vector<64x128xbf16>, vector<128x128xbf16>, vector<64x128xf32> -> vector<64x128xf32>
    %20 = arith.addf %13, %19 : vector<64x128xf32>
    %c0_25 = arith.constant 0 : index
    %c0_26 = arith.constant 0 : index
    %c1_27 = arith.constant 1 : index
    %c0_28 = arith.constant 0 : index
    %c0_29 = arith.constant 0 : index
    %21 = vector.load %arg4[%c0_25, %c0_26, %c1_27, %c0_28, %c0_29] : memref<1x1x10x10x128xbf16, #tpu.memory_space<vmem>>, vector<1x1x8x8x128xbf16>
    %22 = vector.shape_cast %21 : vector<1x1x8x8x128xbf16> to vector<8x8x128xbf16>
    %23 = vector.shape_cast %22 : vector<8x8x128xbf16> to vector<64x128xbf16>
    %c3 = arith.constant 3 : index
    %c0_30 = arith.constant 0 : index
    %c0_31 = arith.constant 0 : index
    %24 = vector.load %arg3[%c3, %c0_30, %c0_31] : memref<9x128x128xbf16, #tpu.memory_space<vmem>>, vector<1x128x128xbf16>
    %25 = vector.shape_cast %24 : vector<1x128x128xbf16> to vector<128x128xbf16>
    %cst_32 = arith.constant dense<0.000000e+00> : vector<64x128xf32>
    %26 = tpu.matmul %23, %25, %cst_32 {dimension_numbers = #tpu.dot_dimension_numbers<[1], [0], [0], [1], [0, 0, 1, 1], [], []>} : vector<64x128xbf16>, vector<128x128xbf16>, vector<64x128xf32> -> vector<64x128xf32>
    %27 = arith.addf %20, %26 : vector<64x128xf32>
    %c0_33 = arith.constant 0 : index
    %c0_34 = arith.constant 0 : index
    %c1_35 = arith.constant 1 : index
    %c1_36 = arith.constant 1 : index
    %c0_37 = arith.constant 0 : index
    %28 = vector.load %arg4[%c0_33, %c0_34, %c1_35, %c1_36, %c0_37] : memref<1x1x10x10x128xbf16, #tpu.memory_space<vmem>>, vector<1x1x8x8x128xbf16>
    %29 = vector.shape_cast %28 : vector<1x1x8x8x128xbf16> to vector<8x8x128xbf16>
    %30 = vector.shape_cast %29 : vector<8x8x128xbf16> to vector<64x128xbf16>
    %c4 = arith.constant 4 : index
    %c0_38 = arith.constant 0 : index
    %c0_39 = arith.constant 0 : index
    %31 = vector.load %arg3[%c4, %c0_38, %c0_39] : memref<9x128x128xbf16, #tpu.memory_space<vmem>>, vector<1x128x128xbf16>
    %32 = vector.shape_cast %31 : vector<1x128x128xbf16> to vector<128x128xbf16>
    %cst_40 = arith.constant dense<0.000000e+00> : vector<64x128xf32>
    %33 = tpu.matmul %30, %32, %cst_40 {dimension_numbers = #tpu.dot_dimension_numbers<[1], [0], [0], [1], [0, 0, 1, 1], [], []>} : vector<64x128xbf16>, vector<128x128xbf16>, vector<64x128xf32> -> vector<64x128xf32>
    %34 = arith.addf %27, %33 : vector<64x128xf32>
    %c0_41 = arith.constant 0 : index
    %c0_42 = arith.constant 0 : index
    %c1_43 = arith.constant 1 : index
    %c2_44 = arith.constant 2 : index
    %c0_45 = arith.constant 0 : index
    %35 = vector.load %arg4[%c0_41, %c0_42, %c1_43, %c2_44, %c0_45] : memref<1x1x10x10x128xbf16, #tpu.memory_space<vmem>>, vector<1x1x8x8x128xbf16>
    %36 = vector.shape_cast %35 : vector<1x1x8x8x128xbf16> to vector<8x8x128xbf16>
    %37 = vector.shape_cast %36 : vector<8x8x128xbf16> to vector<64x128xbf16>
    %c5 = arith.constant 5 : index
    %c0_46 = arith.constant 0 : index
    %c0_47 = arith.constant 0 : index
    %38 = vector.load %arg3[%c5, %c0_46, %c0_47] : memref<9x128x128xbf16, #tpu.memory_space<vmem>>, vector<1x128x128xbf16>
    %39 = vector.shape_cast %38 : vector<1x128x128xbf16> to vector<128x128xbf16>
    %cst_48 = arith.constant dense<0.000000e+00> : vector<64x128xf32>
    %40 = tpu.matmul %37, %39, %cst_48 {dimension_numbers = #tpu.dot_dimension_numbers<[1], [0], [0], [1], [0, 0, 1, 1], [], []>} : vector<64x128xbf16>, vector<128x128xbf16>, vector<64x128xf32> -> vector<64x128xf32>
    %41 = arith.addf %34, %40 : vector<64x128xf32>
    %c0_49 = arith.constant 0 : index
    %c0_50 = arith.constant 0 : index
    %c2_51 = arith.constant 2 : index
    %c0_52 = arith.constant 0 : index
    %c0_53 = arith.constant 0 : index
    %42 = vector.load %arg4[%c0_49, %c0_50, %c2_51, %c0_52, %c0_53] : memref<1x1x10x10x128xbf16, #tpu.memory_space<vmem>>, vector<1x1x8x8x128xbf16>
    %43 = vector.shape_cast %42 : vector<1x1x8x8x128xbf16> to vector<8x8x128xbf16>
    %44 = vector.shape_cast %43 : vector<8x8x128xbf16> to vector<64x128xbf16>
    %c6 = arith.constant 6 : index
    %c0_54 = arith.constant 0 : index
    %c0_55 = arith.constant 0 : index
    %45 = vector.load %arg3[%c6, %c0_54, %c0_55] : memref<9x128x128xbf16, #tpu.memory_space<vmem>>, vector<1x128x128xbf16>
    %46 = vector.shape_cast %45 : vector<1x128x128xbf16> to vector<128x128xbf16>
    %cst_56 = arith.constant dense<0.000000e+00> : vector<64x128xf32>
    %47 = tpu.matmul %44, %46, %cst_56 {dimension_numbers = #tpu.dot_dimension_numbers<[1], [0], [0], [1], [0, 0, 1, 1], [], []>} : vector<64x128xbf16>, vector<128x128xbf16>, vector<64x128xf32> -> vector<64x128xf32>
    %48 = arith.addf %41, %47 : vector<64x128xf32>
    %c0_57 = arith.constant 0 : index
    %c0_58 = arith.constant 0 : index
    %c2_59 = arith.constant 2 : index
    %c1_60 = arith.constant 1 : index
    %c0_61 = arith.constant 0 : index
    %49 = vector.load %arg4[%c0_57, %c0_58, %c2_59, %c1_60, %c0_61] : memref<1x1x10x10x128xbf16, #tpu.memory_space<vmem>>, vector<1x1x8x8x128xbf16>
    %50 = vector.shape_cast %49 : vector<1x1x8x8x128xbf16> to vector<8x8x128xbf16>
    %51 = vector.shape_cast %50 : vector<8x8x128xbf16> to vector<64x128xbf16>
    %c7 = arith.constant 7 : index
    %c0_62 = arith.constant 0 : index
    %c0_63 = arith.constant 0 : index
    %52 = vector.load %arg3[%c7, %c0_62, %c0_63] : memref<9x128x128xbf16, #tpu.memory_space<vmem>>, vector<1x128x128xbf16>
    %53 = vector.shape_cast %52 : vector<1x128x128xbf16> to vector<128x128xbf16>
    %cst_64 = arith.constant dense<0.000000e+00> : vector<64x128xf32>
    %54 = tpu.matmul %51, %53, %cst_64 {dimension_numbers = #tpu.dot_dimension_numbers<[1], [0], [0], [1], [0, 0, 1, 1], [], []>} : vector<64x128xbf16>, vector<128x128xbf16>, vector<64x128xf32> -> vector<64x128xf32>
    %55 = arith.addf %48, %54 : vector<64x128xf32>
    %c0_65 = arith.constant 0 : index
    %c0_66 = arith.constant 0 : index
    %c2_67 = arith.constant 2 : index
    %c2_68 = arith.constant 2 : index
    %c0_69 = arith.constant 0 : index
    %56 = vector.load %arg4[%c0_65, %c0_66, %c2_67, %c2_68, %c0_69] : memref<1x1x10x10x128xbf16, #tpu.memory_space<vmem>>, vector<1x1x8x8x128xbf16>
    %57 = vector.shape_cast %56 : vector<1x1x8x8x128xbf16> to vector<8x8x128xbf16>
    %58 = vector.shape_cast %57 : vector<8x8x128xbf16> to vector<64x128xbf16>
    %c8 = arith.constant 8 : index
    %c0_70 = arith.constant 0 : index
    %c0_71 = arith.constant 0 : index
    %59 = vector.load %arg3[%c8, %c0_70, %c0_71] : memref<9x128x128xbf16, #tpu.memory_space<vmem>>, vector<1x128x128xbf16>
    %60 = vector.shape_cast %59 : vector<1x128x128xbf16> to vector<128x128xbf16>
    %cst_72 = arith.constant dense<0.000000e+00> : vector<64x128xf32>
    %61 = tpu.matmul %58, %60, %cst_72 {dimension_numbers = #tpu.dot_dimension_numbers<[1], [0], [0], [1], [0, 0, 1, 1], [], []>} : vector<64x128xbf16>, vector<128x128xbf16>, vector<64x128xf32> -> vector<64x128xf32>
    %62 = arith.addf %55, %61 : vector<64x128xf32>
    %63 = vector.extract_strided_slice %0 {offsets = [0, 0], sizes = [1, 128], strides = [1, 1]} : vector<8x128xf32> to vector<1x128xf32>
    %64 = vector.extract_strided_slice %0 {offsets = [1, 0], sizes = [1, 128], strides = [1, 1]} : vector<8x128xf32> to vector<1x128xf32>
    %65 = vector.extract_strided_slice %0 {offsets = [2, 0], sizes = [1, 128], strides = [1, 1]} : vector<8x128xf32> to vector<1x128xf32>
    %66 = vector.broadcast %63 : vector<1x128xf32> to vector<64x128xf32>
    %67 = arith.addf %62, %66 : vector<64x128xf32>
    %cst_73 = arith.constant dense<0.000000e+00> : vector<128xf32>
    %68 = vector.multi_reduction <add>, %67, %cst_73 [0] : vector<64x128xf32> to vector<128xf32>
    %69 = vector.shape_cast %68 : vector<128xf32> to vector<1x128xf32>
    %70 = arith.mulf %67, %67 : vector<64x128xf32>
    %cst_74 = arith.constant dense<0.000000e+00> : vector<128xf32>
    %71 = vector.multi_reduction <add>, %70, %cst_74 [0] : vector<64x128xf32> to vector<128xf32>
    %72 = vector.shape_cast %71 : vector<128xf32> to vector<1x128xf32>
    %cst_75 = arith.constant 1.562500e-02 : f32
    %73 = vector.broadcast %cst_75 : f32 to vector<1x128xf32>
    %74 = arith.mulf %69, %73 : vector<1x128xf32>
    %75 = arith.mulf %69, %74 : vector<1x128xf32>
    %76 = arith.subf %72, %75 : vector<1x128xf32>
    %cst_76 = arith.constant 0.000000e+00 : f32
    %77 = vector.broadcast %cst_76 : f32 to vector<1x128xf32>
    %78 = arith.maximumf %76, %77 : vector<1x128xf32>
    %cst_77 = arith.constant 0.0158730168 : f32
    %79 = vector.broadcast %cst_77 : f32 to vector<1x128xf32>
    %80 = arith.mulf %78, %79 : vector<1x128xf32>
    %81 = math.sqrt %80 : vector<1x128xf32>
    %cst_78 = arith.constant 9.99999974E-6 : f32
    %82 = vector.broadcast %cst_78 : f32 to vector<1x128xf32>
    %83 = arith.addf %81, %82 : vector<1x128xf32>
    %84 = tpu.reciprocal %83 : vector<1x128xf32> -> vector<1x128xf32>
    %85 = arith.mulf %84, %64 : vector<1x128xf32>
    %86 = vector.broadcast %85 : vector<1x128xf32> to vector<64x128xf32>
    %87 = arith.mulf %67, %86 : vector<64x128xf32>
    %88 = arith.mulf %74, %85 : vector<1x128xf32>
    %89 = arith.subf %65, %88 : vector<1x128xf32>
    %90 = vector.broadcast %89 : vector<1x128xf32> to vector<64x128xf32>
    %91 = arith.addf %87, %90 : vector<64x128xf32>
    %c0_79 = arith.constant 0 : index
    %c0_80 = arith.constant 0 : index
    %c0_81 = arith.constant 0 : index
    %92 = vector.load %arg6[%c0_79, %c0_80, %c0_81] : memref<1x64x64xbf16, #tpu.memory_space<vmem>>, vector<1x64x64xbf16>
    %93 = vector.shape_cast %92 : vector<1x64x64xbf16> to vector<64x64xbf16>
    %c0_82 = arith.constant 0 : index
    %c0_83 = arith.constant 0 : index
    %94 = vector.load %arg5[%c0_82, %c0_83] : memref<64x128xbf16, #tpu.memory_space<vmem>>, vector<64x128xbf16>
    %cst_84 = arith.constant dense<0.000000e+00> : vector<64x128xf32>
    %95 = tpu.matmul %93, %94, %cst_84 {dimension_numbers = #tpu.dot_dimension_numbers<[1], [0], [0], [1], [0, 0, 1, 1], [], []>} : vector<64x64xbf16>, vector<64x128xbf16>, vector<64x128xf32> -> vector<64x128xf32>
    %96 = vector.extract_strided_slice %0 {offsets = [3, 0], sizes = [1, 128], strides = [1, 1]} : vector<8x128xf32> to vector<1x128xf32>
    %97 = vector.extract_strided_slice %0 {offsets = [4, 0], sizes = [1, 128], strides = [1, 1]} : vector<8x128xf32> to vector<1x128xf32>
    %98 = vector.extract_strided_slice %0 {offsets = [5, 0], sizes = [1, 128], strides = [1, 1]} : vector<8x128xf32> to vector<1x128xf32>
    %99 = vector.broadcast %96 : vector<1x128xf32> to vector<64x128xf32>
    %100 = arith.addf %95, %99 : vector<64x128xf32>
    %cst_85 = arith.constant dense<0.000000e+00> : vector<128xf32>
    %101 = vector.multi_reduction <add>, %100, %cst_85 [0] : vector<64x128xf32> to vector<128xf32>
    %102 = vector.shape_cast %101 : vector<128xf32> to vector<1x128xf32>
    %103 = arith.mulf %100, %100 : vector<64x128xf32>
    %cst_86 = arith.constant dense<0.000000e+00> : vector<128xf32>
    %104 = vector.multi_reduction <add>, %103, %cst_86 [0] : vector<64x128xf32> to vector<128xf32>
    %105 = vector.shape_cast %104 : vector<128xf32> to vector<1x128xf32>
    %cst_87 = arith.constant 1.562500e-02 : f32
    %106 = vector.broadcast %cst_87 : f32 to vector<1x128xf32>
    %107 = arith.mulf %102, %106 : vector<1x128xf32>
    %108 = arith.mulf %102, %107 : vector<1x128xf32>
    %109 = arith.subf %105, %108 : vector<1x128xf32>
    %cst_88 = arith.constant 0.000000e+00 : f32
    %110 = vector.broadcast %cst_88 : f32 to vector<1x128xf32>
    %111 = arith.maximumf %109, %110 : vector<1x128xf32>
    %cst_89 = arith.constant 0.0158730168 : f32
    %112 = vector.broadcast %cst_89 : f32 to vector<1x128xf32>
    %113 = arith.mulf %111, %112 : vector<1x128xf32>
    %114 = math.sqrt %113 : vector<1x128xf32>
    %cst_90 = arith.constant 9.99999974E-6 : f32
    %115 = vector.broadcast %cst_90 : f32 to vector<1x128xf32>
    %116 = arith.addf %114, %115 : vector<1x128xf32>
    %117 = tpu.reciprocal %116 : vector<1x128xf32> -> vector<1x128xf32>
    %118 = arith.mulf %117, %97 : vector<1x128xf32>
    %119 = vector.broadcast %118 : vector<1x128xf32> to vector<64x128xf32>
    %120 = arith.mulf %100, %119 : vector<64x128xf32>
    %121 = arith.mulf %107, %118 : vector<1x128xf32>
    %122 = arith.subf %98, %121 : vector<1x128xf32>
    %123 = vector.broadcast %122 : vector<1x128xf32> to vector<64x128xf32>
    %124 = arith.addf %120, %123 : vector<64x128xf32>
    %125 = arith.addf %91, %124 : vector<64x128xf32>
    %cst_91 = arith.constant 0.000000e+00 : f32
    %126 = vector.broadcast %cst_91 : f32 to vector<64x128xf32>
    %127 = arith.maximumf %125, %126 : vector<64x128xf32>
    %c0_92 = arith.constant 0 : index
    %c0_93 = arith.constant 0 : index
    %c0_94 = arith.constant 0 : index
    %128 = vector.load %arg7[%c0_92, %c0_93, %c0_94] : memref<1x64x128xf32, #tpu.memory_space<vmem>>, vector<1x64x128xf32>
    %129 = vector.shape_cast %128 : vector<1x64x128xf32> to vector<64x128xf32>
    %130 = vector.shape_cast %127 : vector<64x128xf32> to vector<1x64x128xf32>
    tpu.vector_store %arg7[%c0_92, %c0_93, %c0_94], %130 {strides = array<i32>} : memref<1x64x128xf32, #tpu.memory_space<vmem>>, vector<1x64x128xf32>,
    return
  }
  func.func @transform_0(%arg0: i32, %arg1: i32) -> (i32, i32) {
    %c0_i32 = arith.constant 0 : i32
    %c0_i32_0 = arith.constant 0 : i32
    return %c0_i32, %arg1 : i32, i32
  }
  func.func @transform_1(%arg0: i32, %arg1: i32) -> (i32, i32, i32) {
    %c0_i32 = arith.constant 0 : i32
    %c0_i32_0 = arith.constant 0 : i32
    %c0_i32_1 = arith.constant 0 : i32
    return %c0_i32, %c0_i32_0, %arg1 : i32, i32, i32
  }
  func.func @transform_2(%arg0: i32, %arg1: i32) -> (i32, i32, i32, i32, i32) {
    %c0_i32 = arith.constant 0 : i32
    %c0_i32_0 = arith.constant 0 : i32
    %c0_i32_1 = arith.constant 0 : i32
    %c0_i32_2 = arith.constant 0 : i32
    %c0_i32_3 = arith.constant 0 : i32
    return %arg0, %c0_i32, %c0_i32_0, %c0_i32_1, %c0_i32_2 : i32, i32, i32, i32, i32
  }
  func.func @transform_3(%arg0: i32, %arg1: i32) -> (i32, i32) {
    %c0_i32 = arith.constant 0 : i32
    %c0_i32_0 = arith.constant 0 : i32
    return %c0_i32, %arg1 : i32, i32
  }
  func.func @transform_4(%arg0: i32, %arg1: i32) -> (i32, i32, i32) {
    %c0_i32 = arith.constant 0 : i32
    %c0_i32_0 = arith.constant 0 : i32
    %c0_i32_1 = arith.constant 0 : i32
    return %arg0, %c0_i32, %c0_i32_0 : i32, i32, i32
  }
  func.func @transform_5(%arg0: i32, %arg1: i32) -> (i32, i32, i32) {
    %c0_i32 = arith.constant 0 : i32
    %c0_i32_0 = arith.constant 0 : i32
    return %arg0, %c0_i32, %arg1 : i32, i32, i32
  }
}

</mosaic_0001>

<llo_original>
// kernel: residual_block.2
$region0: #{residual_block.2}
  #allocation0 [shape = 'u32[]', space=smem, size = 0x4, offset = 0x4, fixed_abs, tag = 'smem constant byte address 0x4 - core index']
  #allocation1 [shape = 'u32[72,128]{1,0:T(1,128)}', space=vmem, size = 0x9000, scoped, tag = 'internal scratch']
  %s0 = inlined_call_operand.vmem [shape: f32[8,128], index: 0, kind: input, shape index: {}]
  %s1 = inlined_call_operand.vmem [shape: bf16[9,64,128], index: 1, kind: input, shape index: {}]
  %s2 = inlined_call_operand.vmem [shape: bf16[2,4,9,9,64], index: 2, kind: input, shape index: {}]
  %s3 = inlined_call_operand.vmem [shape: bf16[2,64,128], index: 3, kind: output, shape index: {}]
  %s4 = sld [smem:[#allocation0]]
  $region45: #{residual_block.2} parent=0
    _
  %s6 = ssub.s32 1, %s4
  %s7 = scalar_select 0, %s6, %s4
  loop: start=0, step=1, limit=4
  $region2: #{residual_block.2} parent=0 // loop_pre_header
    _
  $region3: #{residual_block.2} parent=0 // loop_header
    %s9 = sphi 0, %s13
    %p10 = scmp.ge.s32.totalorder %s9, 4
    %s16 = sphi 0, %s28
    %s17 = sphi 0, %s24
    %s18 = sphi 0, %s16
    %s19 = sphi 0, %s17
    %s20 = sphi 0, %s18
    %s21 = sphi 0, %s19
    %s31 = sphi 0, %s33
    %s34 = sphi 0, %s31
    %s35 = sphi 0, %s34
    %s51 = sphi 0, %s35
    %s57 = sphi 0, %s59
    %s60 = sphi 0, %s57
    %s61 = sphi 0, %s60
    %s77 = sphi 0, %s61
    %s83 = sphi 0, %s85
    %s86 = sphi 0, %s83
    %s87 = sphi 0, %s86
    %s103 = sphi 0, %s87
    %s111 = sphi 0, %s113
    %s114 = sphi 0, %s111
    %s115 = sphi 0, %s114
    %s131 = sphi 0, %s115
  $region4: #{residual_block.2} parent=0 // loop_header_branch
    %12 = sbr.rel (%p10) target = $region8
  $region5: #{residual_block.2} parent=0 // loop_body
    %s14 = ssub.s32 %s9, 1
    %s15 = ssub.s32 %s9, 2
    %s22 = sadd.s32 1, %s17
    %p23 = scmp.ge.s32.totalorder %s22, 1
    %s24 = scalar_select %p23, 0, %s22
    %s25 = sadd.s32 1, %s16
    %s26 = scalar_select %p23, %s25, %s16
    %p27 = scmp.ge.s32.totalorder %s26, 2
    %s28 = scalar_select %p27, 0, %s26
    %s29 = ssub.s32 %s17, %s24
    %p30 = scmp.eq.s32.totalorder %s29, 0
    %s32 = sadd.s32 %s31, 1
    %s33 = scalar_select %p30, %s31, %s32
    %p36 = pneg %p30
    %p37 = scmp.eq.s32.totalorder %s9, 1
    %p38 = por %p36, %p37
    %p39 = scmp.ne.s32.totalorder %s31, %s34
    %p40 = scmp.eq.s32.totalorder %s9, 0
    %p41 = por %p39, %p40
    %p42 = scmp.ne.s32.totalorder %s31, %s34
    %p43 = scmp.eq.s32.totalorder %s14, 1
    %p44 = por %p42, %p43
    %p45 = scmp.ne.s32.totalorder %s34, %s35
    %p46 = scmp.eq.s32.totalorder %s14, 0
    %p47 = por %p45, %p46
    %p48 = scmp.ne.s32.totalorder %s34, %s35
    %p49 = scmp.eq.s32.totalorder %s15, 1
    %p50 = por %p48, %p49
    %p52 = scmp.ne.s32.totalorder %s35, %s51
    %p53 = scmp.eq.s32.totalorder %s15, 0
    %p54 = por %p52, %p53
    %s55 = ssub.s32 %s17, %s24
    %p56 = scmp.eq.s32.totalorder %s55, 0
    %s58 = sadd.s32 %s57, 1
    %s59 = scalar_select %p56, %s57, %s58
    %p62 = pneg %p56
    %p63 = scmp.eq.s32.totalorder %s9, 1
    %p64 = por %p62, %p63
    %p65 = scmp.ne.s32.totalorder %s57, %s60
    %p66 = scmp.eq.s32.totalorder %s9, 0
    %p67 = por %p65, %p66
    %p68 = scmp.ne.s32.totalorder %s57, %s60
    %p69 = scmp.eq.s32.totalorder %s14, 1
    %p70 = por %p68, %p69
    %p71 = scmp.ne.s32.totalorder %s60, %s61
    %p72 = scmp.eq.s32.totalorder %s14, 0
    %p73 = por %p71, %p72
    %p74 = scmp.ne.s32.totalorder %s60, %s61
    %p75 = scmp.eq.s32.totalorder %s15, 1
    %p76 = por %p74, %p75
    %p78 = scmp.ne.s32.totalorder %s61, %s77
    %p79 = scmp.eq.s32.totalorder %s15, 0
    %p80 = por %p78, %p79
    %s81 = ssub.s32 %s16, %s28
    %p82 = scmp.eq.s32.totalorder %s81, 0
    %s84 = sadd.s32 %s83, 1
    %s85 = scalar_select %p82, %s83, %s84
    %p88 = pneg %p82
    %p89 = scmp.eq.s32.totalorder %s9, 1
    %p90 = por %p88, %p89
    %p91 = scmp.ne.s32.totalorder %s83, %s86
    %p92 = scmp.eq.s32.totalorder %s9, 0
    %p93 = por %p91, %p92
    %p94 = scmp.ne.s32.totalorder %s83, %s86
    %p95 = scmp.eq.s32.totalorder %s14, 1
    %p96 = por %p94, %p95
    %p97 = scmp.ne.s32.totalorder %s86, %s87
    %p98 = scmp.eq.s32.totalorder %s14, 0
    %p99 = por %p97, %p98
    %p100 = scmp.ne.s32.totalorder %s86, %s87
    %p101 = scmp.eq.s32.totalorder %s15, 1
    %p102 = por %p100, %p101
    %p104 = scmp.ne.s32.totalorder %s87, %s103
    %p105 = scmp.eq.s32.totalorder %s15, 0
    %p106 = por %p104, %p105
    %s107 = ssub.s32 %s16, %s28
    %s108 = ssub.s32 %s17, %s24
    %s109 = sor.u32 %s107, %s108
    %p110 = scmp.eq.s32.totalorder %s109, 0
    %s112 = sadd.s32 %s111, 1
    %s113 = scalar_select %p110, %s111, %s112
    %p116 = pneg %p110
    %p117 = scmp.eq.s32.totalorder %s9, 1
    %p118 = por %p116, %p117
    %p119 = scmp.ne.s32.totalorder %s111, %s114
    %p120 = scmp.eq.s32.totalorder %s9, 0
    %p121 = por %p119, %p120
    %p122 = scmp.ne.s32.totalorder %s111, %s114
    %p123 = scmp.eq.s32.totalorder %s14, 1
    %p124 = por %p122, %p123
    %p125 = scmp.ne.s32.totalorder %s114, %s115
    %p126 = scmp.eq.s32.totalorder %s14, 0
    %p127 = por %p125, %p126
    %p128 = scmp.ne.s32.totalorder %s114, %s115
    %p129 = scmp.eq.s32.totalorder %s15, 1
    %p130 = por %p128, %p129
    %p132 = scmp.ne.s32.totalorder %s115, %s131
    %p133 = scmp.eq.s32.totalorder %s15, 0
    %p134 = por %p132, %p133
    %p135 = scmp.le.s32.totalorder 1, %s9
    %p136 = scmp.lt.s32.totalorder %s9, 3
    %p137 = pnand %p135, %p136
    %p138 = pneg %p137
    // Predicated region
    $region9: #{residual_block.2} parent=5 // pred_check
      _
    $region10: #{residual_block.2} parent=5 // pred_check_branch
      %140 = sbr.rel (%p137) target = $region12
    $region11: #{residual_block.2} parent=5 // pred_region
      %s141 = ssub.s32 %s9, 1
      // Predicated region
      $region13: #{residual_block.2} parent=11 // pred_check
        %p142 = pneg %p47
      $region14: #{residual_block.2} parent=11 // pred_check_branch
        %144 = sbr.rel (%p142) target = $region16
      $region15: #{residual_block.2} parent=11 // pred_region
        %p145 = scmp.lt.s32.totalorder %s19, 0
        %s146 = scalar_select %p145, %s19, 0
        %s147 = smul.addr %s146, 8
        %s148 = scalar_lea.vmem %s0, %s147
      $region16: #{residual_block.2} parent=11 // pred_fallthru
        _
      // Predicated region
      $region17: #{residual_block.2} parent=11 // pred_check
        %p149 = pneg %p73
      $region18: #{residual_block.2} parent=11 // pred_check_branch
        %151 = sbr.rel (%p149) target = $region20
      $region19: #{residual_block.2} parent=11 // pred_region
        %p152 = scmp.lt.s32.totalorder %s19, 0
        %s153 = scalar_select %p152, %s19, 0
        %s154 = smul.addr %s153, 4
        %s155 = scalar_lea.vmem %s1, %s154
      $region20: #{residual_block.2} parent=11 // pred_fallthru
        _
    $region12: #{residual_block.2} parent=5 // pred_fallthru
      _
    %p156 = scmp.lt.s32.totalorder %s9, 2
    // Predicated region
    $region21: #{residual_block.2} parent=5 // pred_check
      %p157 = pneg %p156
    $region22: #{residual_block.2} parent=5 // pred_check_branch
      %159 = sbr.rel (%p157) target = $region24
    $region23: #{residual_block.2} parent=5 // pred_region
      // Predicated region
      $region25: #{residual_block.2} parent=23 // pred_check
        %p160 = pneg %p93
      $region26: #{residual_block.2} parent=23 // pred_check_branch
        %162 = sbr.rel (%p160) target = $region28
      $region27: #{residual_block.2} parent=23 // pred_region
        %p163 = scmp.lt.s32.totalorder %s16, 1
        %s164 = scalar_select %p163, %s16, 1
        %s165 = smul.addr %s164, 72
        %s166 = smul.addr %s165, 4
        %s167 = scalar_lea.vmem %s2, %s166
      $region28: #{residual_block.2} parent=23 // pred_fallthru
        _
    $region24: #{residual_block.2} parent=5 // pred_fallthru
      _
    %p168 = scmp.le.s32.totalorder 1, %s9
    %p169 = scmp.lt.s32.totalorder %s9, 3
    %p170 = pnand %p168, %p169
    %p171 = pneg %p170
    // Predicated region
    $region29: #{residual_block.2} parent=5 // pred_check
      _
    $region30: #{residual_block.2} parent=5 // pred_check_branch
      %173 = sbr.rel (%p170) target = $region32
    $region31: #{residual_block.2} parent=5 // pred_region
      %s174 = ssub.s32 %s9, 1
      %p175 = scmp.lt.s32.totalorder %s19, 0
      %s176 = scalar_select %p175, %s19, 0
      %s177 = smul.addr %s176, 8
      %s178 = scalar_lea.vmem %s0, %s177
      %p179 = pneg %p47
      %p180 = pneg %p44
      %p181 = scmp.lt.s32.totalorder %s19, 0
      %s182 = scalar_select %p181, %s19, 0
      %s183 = smul.addr %s182, 4
      %s184 = scalar_lea.vmem %s1, %s183
      %p185 = pneg %p73
      %p186 = pneg %p70
      %p187 = scmp.lt.s32.totalorder %s18, 1
      %s188 = scalar_select %p187, %s18, 1
      %s189 = smul.addr %s188, 72
      %s190 = smul.addr %s189, 4
      %s191 = scalar_lea.vmem %s2, %s190
      %p192 = pneg %p99
      %p193 = pneg %p96
      %p194 = pneg %p127
      %p195 = pneg %p124
      %p196 = scmp.lt.s32.totalorder %s18, 1
      %s197 = scalar_select %p196, %s18, 1
      %p198 = scmp.lt.s32.totalorder %s19, 0
      %s199 = scalar_select %p198, %s19, 0
      %s200 = smul.addr %s197, 8
      %s201 = sadd.s32 %s199, %s200
      %s202 = smul.addr %s201, 4
      %s203 = scalar_lea.vmem %s3, %s202
      %p204 = scmp.lt.s32.totalorder %s19, 0
      %s205 = scalar_select %p204, %s19, 0
      %s206 = smul.addr %s205, 8
      %s207 = scalar_lea.vmem %s0, %s206
      %p208 = scmp.lt.s32.totalorder %s19, 0
      %s209 = scalar_select %p208, %s19, 0
      %s210 = smul.addr %s209, 4
      %s211 = scalar_lea.vmem %s1, %s210
      %p212 = scmp.lt.s32.totalorder %s18, 1
      %s213 = scalar_select %p212, %s18, 1
      %s214 = smul.addr %s213, 72
      %s215 = smul.addr %s214, 4
      %s216 = scalar_lea.vmem %s2, %s215
      %p217 = scmp.lt.s32.totalorder %s18, 1
      %s218 = scalar_select %p217, %s18, 1
      %p219 = scmp.lt.s32.totalorder %s19, 0
      %s220 = scalar_select %p219, %s19, 0
      %s221 = smul.addr %s218, 8
      %s222 = sadd.s32 %s220, %s221
      %s223 = smul.addr %s222, 4
      %s224 = scalar_lea.vmem %s3, %s223
      %v226 = vld [vmem:[%s207] sm:$0xff]
      %v227 = vld [vmem:[%s216] sm:$0xf]
      %v228 = vld [vmem:[%s216 + $0x8] sm:$0xf]
      %v229 = vld [vmem:[%s216 + $0x10] sm:$0xf]
      %v230 = vld [vmem:[%s216 + $0x18] sm:$0xf]
      %v231 = vld [vmem:[%s216 + $0x20] sm:$0xf]
      %v232 = vld [vmem:[%s216 + $0x28] sm:$0xf]
      %v233 = vld [vmem:[%s216 + $0x30] sm:$0xf]
      %v234 = vld [vmem:[%s216 + $0x38] sm:$0xf]
      %v235 = vld [vmem:[%s211] sm:$0xf]
      %v236 = vld [vmem:[%s211 + $0x4] sm:$0xf]
      %v237 = vld [vmem:[%s211 + $0x8] sm:$0xf]
      %v238 = vld [vmem:[%s211 + $0xc] sm:$0xf]
      %v239 = vld [vmem:[%s211 + $0x10] sm:$0xf]
      %v240 = vld [vmem:[%s211 + $0x14] sm:$0xf]
      %v241 = vld [vmem:[%s211 + $0x18] sm:$0xf]
      %v242 = vld [vmem:[%s211 + $0x1c] sm:$0xf]
      %s243 = scalar_lea.vmem %s216, 72
      %v244 = vld [vmem:[%s243] sm:$0xf]
      %v245 = vld [vmem:[%s243 + $0x8] sm:$0xf]
      %v246 = vld [vmem:[%s243 + $0x10] sm:$0xf]
      %v247 = vld [vmem:[%s243 + $0x18] sm:$0xf]
      %v248 = vld [vmem:[%s243 + $0x20] sm:$0xf]
      %v249 = vld [vmem:[%s243 + $0x28] sm:$0xf]
      %v250 = vld [vmem:[%s243 + $0x30] sm:$0xf]
      %v251 = vld [vmem:[%s243 + $0x38] sm:$0xf]
      %s252 = scalar_lea.vmem %s211, 32
      %v253 = vld [vmem:[%s252] sm:$0xf]
      %v254 = vld [vmem:[%s252 + $0x4] sm:$0xf]
      %v255 = vld [vmem:[%s252 + $0x8] sm:$0xf]
      %v256 = vld [vmem:[%s252 + $0xc] sm:$0xf]
      %v257 = vld [vmem:[%s252 + $0x10] sm:$0xf]
      %v258 = vld [vmem:[%s252 + $0x14] sm:$0xf]
      %v259 = vld [vmem:[%s252 + $0x18] sm:$0xf]
      %v260 = vld [vmem:[%s252 + $0x1c] sm:$0xf]
      %v269 = vunpack.c.l.b16 %v244
      %v270 = vunpack.c.l.b16 %v245
      %v271 = vunpack.c.l.b16 %v246
      %v272 = vunpack.c.l.b16 %v247
      %v273 = vunpack.c.l.b16 %v248
      %v274 = vunpack.c.l.b16 %v249
      %v275 = vunpack.c.l.b16 %v250
      %v276 = vunpack.c.l.b16 %v251
      %v277 = vpack.c.b16 %v270, %v269
      %v278 = vpack.c.b16 %v272, %v271
      %v279 = vpack.c.b16 %v274, %v273
      %v280 = vpack.c.b16 %v276, %v275
      %v289 = vunpack.c.l.b16 %v253
      %v290 = vunpack.c.l.b16 %v254
      %v291 = vunpack.c.l.b16 %v255
      %v292 = vunpack.c.l.b16 %v256
      %v293 = vunpack.c.l.b16 %v257
      %v294 = vunpack.c.l.b16 %v258
      %v295 = vunpack.c.l.b16 %v259
      %v296 = vunpack.c.l.b16 %v260
      %v297 = vpack.c.b16 %v290, %v289
      %v298 = vpack.c.b16 %v292, %v291
      %v299 = vpack.c.b16 %v294, %v293
      %v300 = vpack.c.b16 %v296, %v295
      %vm305 = vcmask 523264
      %v307 = vsel %vm305, %v277, 0
      %v310 = vsel %vm305, %v278, 0
      %v313 = vsel %vm305, %v279, 0
      %v316 = vsel %vm305, %v280, 0
      %318 = vmatpush.bf16.msra.mxu0 0
      %319 = vmatpush.bf16.msra.mxu0 0
      %320 = vmatpush.bf16.msra.mxu0 0
      %321 = vmatpush.bf16.msra.mxu0 0
      %322 = vmatpush.bf16.msra.mxu0 %v300
      %323 = vmatpush.bf16.msra.mxu0 %v299
      %324 = vmatpush.bf16.msra.mxu0 %v298
      %325 = vmatpush.bf16.msra.mxu0 %v297
      %326 = vmatmul.bf16.gmra.mxu0 %v307
      %v327 = vpop.f32.mrf.mxu0
      %v328 = vadd.f32 0.0, %v327
      %v329 = vpop.f32.mrf.mxu0
      %v330 = vadd.f32 0.0, %v329
      %331 = vmatmul.bf16.gmra.mxu0 %v310
      %v332 = vpop.f32.mrf.mxu0
      %v333 = vadd.f32 0.0, %v332
      %v334 = vpop.f32.mrf.mxu0
      %v335 = vadd.f32 0.0, %v334
      %336 = vmatmul.bf16.gmra.mxu0 %v313
      %v337 = vpop.f32.mrf.mxu0
      %v338 = vadd.f32 0.0, %v337
      %v339 = vpop.f32.mrf.mxu0
      %v340 = vadd.f32 0.0, %v339
      %341 = vmatmul.bf16.gmra.mxu0 %v316
      %v342 = vpop.f32.mrf.mxu0
      %v343 = vadd.f32 0.0, %v342
      %v344 = vpop.f32.mrf.mxu0
      %v345 = vadd.f32 0.0, %v344
      %346 = vdwg.mxu0
      %v355 = vunpack.c.l.b16 %v227
      %v356 = vunpack.c.l.b16 %v228
      %v357 = vunpack.c.l.b16 %v229
      %v358 = vunpack.c.l.b16 %v230
      %v359 = vunpack.c.l.b16 %v231
      %v360 = vunpack.c.l.b16 %v232
      %v361 = vunpack.c.l.b16 %v233
      %v362 = vunpack.c.l.b16 %v234
      %v363 = vpack.c.b16 %v356, %v355
      %v364 = vpack.c.b16 %v358, %v357
      %v365 = vpack.c.b16 %v360, %v359
      %v366 = vpack.c.b16 %v362, %v361
      %v375 = vunpack.c.l.b16 %v235
      %v376 = vunpack.c.l.b16 %v236
      %v377 = vunpack.c.l.b16 %v237
      %v378 = vunpack.c.l.b16 %v238
      %v379 = vunpack.c.l.b16 %v239
      %v380 = vunpack.c.l.b16 %v240
      %v381 = vunpack.c.l.b16 %v241
      %v382 = vunpack.c.l.b16 %v242
      %v383 = vpack.c.b16 %v376, %v375
      %v384 = vpack.c.b16 %v378, %v377
      %v385 = vpack.c.b16 %v380, %v379
      %v386 = vpack.c.b16 %v382, %v381
      %v392 = vsel %vm305, %v363, 0
      %v395 = vsel %vm305, %v364, 0
      %v398 = vsel %vm305, %v365, 0
      %v401 = vsel %vm305, %v366, 0
      %403 = vmatpush.bf16.msra.mxu0 0
      %404 = vmatpush.bf16.msra.mxu0 0
      %405 = vmatpush.bf16.msra.mxu0 0
      %406 = vmatpush.bf16.msra.mxu0 0
      %407 = vmatpush.bf16.msra.mxu0 %v386
      %408 = vmatpush.bf16.msra.mxu0 %v385
      %409 = vmatpush.bf16.msra.mxu0 %v384
      %410 = vmatpush.bf16.msra.mxu0 %v383
      %411 = vmatmul.bf16.gmra.mxu0 %v392
      %v412 = vpop.f32.mrf.mxu0
      %v413 = vadd.f32 %v328, %v412
      %v414 = vpop.f32.mrf.mxu0
      %v415 = vadd.f32 %v330, %v414
      %416 = vmatmul.bf16.gmra.mxu0 %v395
      %v417 = vpop.f32.mrf.mxu0
      %v418 = vadd.f32 %v333, %v417
      %v419 = vpop.f32.mrf.mxu0
      %v420 = vadd.f32 %v335, %v419
      %421 = vmatmul.bf16.gmra.mxu0 %v398
      %v422 = vpop.f32.mrf.mxu0
      %v423 = vadd.f32 %v338, %v422
      %v424 = vpop.f32.mrf.mxu0
      %v425 = vadd.f32 %v340, %v424
      %426 = vmatmul.bf16.gmra.mxu0 %v401
      %v427 = vpop.f32.mrf.mxu0
      %v428 = vadd.f32 %v343, %v427
      %v429 = vpop.f32.mrf.mxu0
      %v430 = vadd.f32 %v345, %v429
      %431 = vdwg.mxu0
      %v432 = vld [vmem:[%s216] sm:$0xf]
      %v433 = vld [vmem:[%s216 + $0x4] sm:$0x1]
      %v434 = vld [vmem:[%s216 + $0x8] sm:$0xf]
      %v435 = vld [vmem:[%s216 + $0xc] sm:$0x1]
      %v436 = vld [vmem:[%s216 + $0x10] sm:$0xf]
      %v437 = vld [vmem:[%s216 + $0x14] sm:$0x1]
      %v438 = vld [vmem:[%s216 + $0x18] sm:$0xf]
      %v439 = vld [vmem:[%s216 + $0x1c] sm:$0x1]
      %v440 = vld [vmem:[%s216 + $0x20] sm:$0xf]
      %v441 = vld [vmem:[%s216 + $0x24] sm:$0x1]
      %v442 = vld [vmem:[%s216 + $0x28] sm:$0xf]
      %v443 = vld [vmem:[%s216 + $0x2c] sm:$0x1]
      %v444 = vld [vmem:[%s216 + $0x30] sm:$0xf]
      %v445 = vld [vmem:[%s216 + $0x34] sm:$0x1]
      %v446 = vld [vmem:[%s216 + $0x38] sm:$0xf]
      %v447 = vld [vmem:[%s216 + $0x3c] sm:$0x1]
      %vm448 = vsmask.f32 3328
      %vm449 = vsmask.f32 7440
      %vm450 = vmor %vm448, %vm449
      %v452 = vshrl.u32 %v432, 16
      %v454 = vrot.slane %v452, 4
      %v455 = vshll.u32 %v432, 16
      %v457 = vrot.slane %v455, 5
      %v458 = vor.u32 %v454, %v457
      %v459 = vrot.slane %v458, 4
      %v461 = vshll.u32 %v433, 16
      %v463 = vrot.slane %v461, 5
      %v464 = vsel %vm450, %v459, %v463
      %v466 = vshrl.u32 %v434, 16
      %v468 = vrot.slane %v466, 4
      %v469 = vshll.u32 %v434, 16
      %v471 = vrot.slane %v469, 5
      %v472 = vor.u32 %v468, %v471
      %v473 = vrot.slane %v472, 4
      %v475 = vshll.u32 %v435, 16
      %v477 = vrot.slane %v475, 5
      %v478 = vsel %vm450, %v473, %v477
      %v480 = vshrl.u32 %v436, 16
      %v482 = vrot.slane %v480, 4
      %v483 = vshll.u32 %v436, 16
      %v485 = vrot.slane %v483, 5
      %v486 = vor.u32 %v482, %v485
      %v487 = vrot.slane %v486, 4
      %v489 = vshll.u32 %v437, 16
      %v491 = vrot.slane %v489, 5
      %v492 = vsel %vm450, %v487, %v491
      %v494 = vshrl.u32 %v438, 16
      %v496 = vrot.slane %v494, 4
      %v497 = vshll.u32 %v438, 16
      %v499 = vrot.slane %v497, 5
      %v500 = vor.u32 %v496, %v499
      %v501 = vrot.slane %v500, 4
      %v503 = vshll.u32 %v439, 16
      %v505 = vrot.slane %v503, 5
      %v506 = vsel %vm450, %v501, %v505
      %v508 = vshrl.u32 %v440, 16
      %v510 = vrot.slane %v508, 4
      %v511 = vshll.u32 %v440, 16
      %v513 = vrot.slane %v511, 5
      %v514 = vor.u32 %v510, %v513
      %v515 = vrot.slane %v514, 4
      %v517 = vshll.u32 %v441, 16
      %v519 = vrot.slane %v517, 5
      %v520 = vsel %vm450, %v515, %v519
      %v522 = vshrl.u32 %v442, 16
      %v524 = vrot.slane %v522, 4
      %v525 = vshll.u32 %v442, 16
      %v527 = vrot.slane %v525, 5
      %v528 = vor.u32 %v524, %v527
      %v529 = vrot.slane %v528, 4
      %v531 = vshll.u32 %v443, 16
      %v533 = vrot.slane %v531, 5
      %v534 = vsel %vm450, %v529, %v533
      %v536 = vshrl.u32 %v444, 16
      %v538 = vrot.slane %v536, 4
      %v539 = vshll.u32 %v444, 16
      %v541 = vrot.slane %v539, 5
      %v542 = vor.u32 %v538, %v541
      %v543 = vrot.slane %v542, 4
      %v545 = vshll.u32 %v445, 16
      %v547 = vrot.slane %v545, 5
      %v548 = vsel %vm450, %v543, %v547
      %v550 = vshrl.u32 %v446, 16
      %v552 = vrot.slane %v550, 4
      %v553 = vshll.u32 %v446, 16
      %v555 = vrot.slane %v553, 5
      %v556 = vor.u32 %v552, %v555
      %v557 = vrot.slane %v556, 4
      %v559 = vshll.u32 %v447, 16
      %v561 = vrot.slane %v559, 5
      %v562 = vsel %vm450, %v557, %v561
      %s563 = scalar_lea.vmem %s211, 64
      %v564 = vld [vmem:[%s563] sm:$0xf]
      %v565 = vld [vmem:[%s563 + $0x4] sm:$0xf]
      %v566 = vld [vmem:[%s563 + $0x8] sm:$0xf]
      %v567 = vld [vmem:[%s563 + $0xc] sm:$0xf]
      %v568 = vld [vmem:[%s563 + $0x10] sm:$0xf]
      %v569 = vld [vmem:[%s563 + $0x14] sm:$0xf]
      %v570 = vld [vmem:[%s563 + $0x18] sm:$0xf]
      %v571 = vld [vmem:[%s563 + $0x1c] sm:$0xf]
      %v572 = vunpack.c.l.b16 %v464
      %v573 = vunpack.c.l.b16 %v478
      %v574 = vunpack.c.l.b16 %v492
      %v575 = vunpack.c.l.b16 %v506
      %v576 = vunpack.c.l.b16 %v520
      %v577 = vunpack.c.l.b16 %v534
      %v578 = vunpack.c.l.b16 %v548
      %v579 = vunpack.c.l.b16 %v562
      %v580 = vpack.c.b16 %v573, %v572
      %v581 = vpack.c.b16 %v575, %v574
      %v582 = vpack.c.b16 %v577, %v576
      %v583 = vpack.c.b16 %v579, %v578
      %v592 = vunpack.c.l.b16 %v564
      %v593 = vunpack.c.l.b16 %v565
      %v594 = vunpack.c.l.b16 %v566
      %v595 = vunpack.c.l.b16 %v567
      %v596 = vunpack.c.l.b16 %v568
      %v597 = vunpack.c.l.b16 %v569
      %v598 = vunpack.c.l.b16 %v570
      %v599 = vunpack.c.l.b16 %v571
      %v600 = vpack.c.b16 %v593, %v592
      %v601 = vpack.c.b16 %v595, %v594
      %v602 = vpack.c.b16 %v597, %v596
      %v603 = vpack.c.b16 %v599, %v598
      %v609 = vsel %vm305, %v580, 0
      %v612 = vsel %vm305, %v581, 0
      %v615 = vsel %vm305, %v582, 0
      %v618 = vsel %vm305, %v583, 0
      %620 = vmatpush.bf16.msra.mxu0 0
      %621 = vmatpush.bf16.msra.mxu0 0
      %622 = vmatpush.bf16.msra.mxu0 0
      %623 = vmatpush.bf16.msra.mxu0 0
      %624 = vmatpush.bf16.msra.mxu0 %v603
      %625 = vmatpush.bf16.msra.mxu0 %v602
      %626 = vmatpush.bf16.msra.mxu0 %v601
      %627 = vmatpush.bf16.msra.mxu0 %v600
      %628 = vmatmul.bf16.gmra.mxu0 %v609
      %v629 = vpop.f32.mrf.mxu0
      %v630 = vadd.f32 0.0, %v629
      %v631 = vpop.f32.mrf.mxu0
      %v632 = vadd.f32 0.0, %v631
      %633 = vmatmul.bf16.gmra.mxu0 %v612
      %v634 = vpop.f32.mrf.mxu0
      %v635 = vadd.f32 0.0, %v634
      %v636 = vpop.f32.mrf.mxu0
      %v637 = vadd.f32 0.0, %v636
      %638 = vmatmul.bf16.gmra.mxu0 %v615
      %v639 = vpop.f32.mrf.mxu0
      %v640 = vadd.f32 0.0, %v639
      %v641 = vpop.f32.mrf.mxu0
      %v642 = vadd.f32 0.0, %v641
      %643 = vmatmul.bf16.gmra.mxu0 %v618
      %v644 = vpop.f32.mrf.mxu0
      %v645 = vadd.f32 0.0, %v644
      %v646 = vpop.f32.mrf.mxu0
      %v647 = vadd.f32 0.0, %v646
      %648 = vdwg.mxu0
      %v649 = vadd.f32 %v413, %v630
      %v650 = vadd.f32 %v415, %v632
      %v651 = vadd.f32 %v418, %v635
      %v652 = vadd.f32 %v420, %v637
      %v653 = vadd.f32 %v423, %v640
      %v654 = vadd.f32 %v425, %v642
      %v655 = vadd.f32 %v428, %v645
      %v656 = vadd.f32 %v430, %v647
      %s657 = scalar_lea.vmem %s216, 144
      %v658 = vld [vmem:[%s657] sm:$0xf]
      %v659 = vld [vmem:[%s657 + $0x8] sm:$0xf]
      %v660 = vld [vmem:[%s657 + $0x10] sm:$0xf]
      %v661 = vld [vmem:[%s657 + $0x18] sm:$0xf]
      %v662 = vld [vmem:[%s657 + $0x20] sm:$0xf]
      %v663 = vld [vmem:[%s657 + $0x28] sm:$0xf]
      %v664 = vld [vmem:[%s657 + $0x30] sm:$0xf]
      %v665 = vld [vmem:[%s657 + $0x38] sm:$0xf]
      %s666 = scalar_lea.vmem %s211, 96
      %v667 = vld [vmem:[%s666] sm:$0xf]
      %v668 = vld [vmem:[%s666 + $0x4] sm:$0xf]
      %v669 = vld [vmem:[%s666 + $0x8] sm:$0xf]
      %v670 = vld [vmem:[%s666 + $0xc] sm:$0xf]
      %v671 = vld [vmem:[%s666 + $0x10] sm:$0xf]
      %v672 = vld [vmem:[%s666 + $0x14] sm:$0xf]
      %v673 = vld [vmem:[%s666 + $0x18] sm:$0xf]
      %v674 = vld [vmem:[%s666 + $0x1c] sm:$0xf]
      %v683 = vunpack.c.l.b16 %v658
      %v684 = vunpack.c.l.b16 %v659
      %v685 = vunpack.c.l.b16 %v660
      %v686 = vunpack.c.l.b16 %v661
      %v687 = vunpack.c.l.b16 %v662
      %v688 = vunpack.c.l.b16 %v663
      %v689 = vunpack.c.l.b16 %v664
      %v690 = vunpack.c.l.b16 %v665
      %v691 = vpack.c.b16 %v684, %v683
      %v692 = vpack.c.b16 %v686, %v685
      %v693 = vpack.c.b16 %v688, %v687
      %v694 = vpack.c.b16 %v690, %v689
      %v703 = vunpack.c.l.b16 %v667
      %v704 = vunpack.c.l.b16 %v668
      %v705 = vunpack.c.l.b16 %v669
      %v706 = vunpack.c.l.b16 %v670
      %v707 = vunpack.c.l.b16 %v671
      %v708 = vunpack.c.l.b16 %v672
      %v709 = vunpack.c.l.b16 %v673
      %v710 = vunpack.c.l.b16 %v674
      %v711 = vpack.c.b16 %v704, %v703
      %v712 = vpack.c.b16 %v706, %v705
      %v713 = vpack.c.b16 %v708, %v707
      %v714 = vpack.c.b16 %v710, %v709
      %v720 = vsel %vm305, %v691, 0
      %v723 = vsel %vm305, %v692, 0
      %v726 = vsel %vm305, %v693, 0
      %v729 = vsel %vm305, %v694, 0
      %731 = vmatpush.bf16.msra.mxu0 0
      %732 = vmatpush.bf16.msra.mxu0 0
      %733 = vmatpush.bf16.msra.mxu0 0
      %734 = vmatpush.bf16.msra.mxu0 0
      %735 = vmatpush.bf16.msra.mxu0 %v714
      %736 = vmatpush.bf16.msra.mxu0 %v713
      %737 = vmatpush.bf16.msra.mxu0 %v712
      %738 = vmatpush.bf16.msra.mxu0 %v711
      %739 = vmatmul.bf16.gmra.mxu0 %v720
      %v740 = vpop.f32.mrf.mxu0
      %v741 = vadd.f32 0.0, %v740
      %v742 = vpop.f32.mrf.mxu0
      %v743 = vadd.f32 0.0, %v742
      %744 = vmatmul.bf16.gmra.mxu0 %v723
      %v745 = vpop.f32.mrf.mxu0
      %v746 = vadd.f32 0.0, %v745
      %v747 = vpop.f32.mrf.mxu0
      %v748 = vadd.f32 0.0, %v747
      %749 = vmatmul.bf16.gmra.mxu0 %v726
      %v750 = vpop.f32.mrf.mxu0
      %v751 = vadd.f32 0.0, %v750
      %v752 = vpop.f32.mrf.mxu0
      %v753 = vadd.f32 0.0, %v752
      %754 = vmatmul.bf16.gmra.mxu0 %v729
      %v755 = vpop.f32.mrf.mxu0
      %v756 = vadd.f32 0.0, %v755
      %v757 = vpop.f32.mrf.mxu0
      %v758 = vadd.f32 0.0, %v757
      %759 = vdwg.mxu0
      %v760 = vadd.f32 %v649, %v741
      %v761 = vadd.f32 %v650, %v743
      %v762 = vadd.f32 %v651, %v746
      %v763 = vadd.f32 %v652, %v748
      %v764 = vadd.f32 %v653, %v751
      %v765 = vadd.f32 %v654, %v753
      %v766 = vadd.f32 %v655, %v756
      %v767 = vadd.f32 %v656, %v758
      %s768 = scalar_lea.vmem %s216, 216
      %v769 = vld [vmem:[%s768] sm:$0xf]
      %v770 = vld [vmem:[%s768 + $0x8] sm:$0xf]
      %v771 = vld [vmem:[%s768 + $0x10] sm:$0xf]
      %v772 = vld [vmem:[%s768 + $0x18] sm:$0xf]
      %v773 = vld [vmem:[%s768 + $0x20] sm:$0xf]
      %v774 = vld [vmem:[%s768 + $0x28] sm:$0xf]
      %v775 = vld [vmem:[%s768 + $0x30] sm:$0xf]
      %v776 = vld [vmem:[%s768 + $0x38] sm:$0xf]
      %s777 = scalar_lea.vmem %s211, 128
      %v778 = vld [vmem:[%s777] sm:$0xf]
      %v779 = vld [vmem:[%s777 + $0x4] sm:$0xf]
      %v780 = vld [vmem:[%s777 + $0x8] sm:$0xf]
      %v781 = vld [vmem:[%s777 + $0xc] sm:$0xf]
      %v782 = vld [vmem:[%s777 + $0x10] sm:$0xf]
      %v783 = vld [vmem:[%s777 + $0x14] sm:$0xf]
      %v784 = vld [vmem:[%s777 + $0x18] sm:$0xf]
      %v785 = vld [vmem:[%s777 + $0x1c] sm:$0xf]
      %v794 = vunpack.c.l.b16 %v769
      %v795 = vunpack.c.l.b16 %v770
      %v796 = vunpack.c.l.b16 %v771
      %v797 = vunpack.c.l.b16 %v772
      %v798 = vunpack.c.l.b16 %v773
      %v799 = vunpack.c.l.b16 %v774
      %v800 = vunpack.c.l.b16 %v775
      %v801 = vunpack.c.l.b16 %v776
      %v802 = vpack.c.b16 %v795, %v794
      %v803 = vpack.c.b16 %v797, %v796
      %v804 = vpack.c.b16 %v799, %v798
      %v805 = vpack.c.b16 %v801, %v800
      %v814 = vunpack.c.l.b16 %v778
      %v815 = vunpack.c.l.b16 %v779
      %v816 = vunpack.c.l.b16 %v780
      %v817 = vunpack.c.l.b16 %v781
      %v818 = vunpack.c.l.b16 %v782
      %v819 = vunpack.c.l.b16 %v783
      %v820 = vunpack.c.l.b16 %v784
      %v821 = vunpack.c.l.b16 %v785
      %v822 = vpack.c.b16 %v815, %v814
      %v823 = vpack.c.b16 %v817, %v816
      %v824 = vpack.c.b16 %v819, %v818
      %v825 = vpack.c.b16 %v821, %v820
      %v831 = vsel %vm305, %v802, 0
      %v834 = vsel %vm305, %v803, 0
      %v837 = vsel %vm305, %v804, 0
      %v840 = vsel %vm305, %v805, 0
      %842 = vmatpush.bf16.msra.mxu0 0
      %843 = vmatpush.bf16.msra.mxu0 0
      %844 = vmatpush.bf16.msra.mxu0 0
      %845 = vmatpush.bf16.msra.mxu0 0
      %846 = vmatpush.bf16.msra.mxu0 %v825
      %847 = vmatpush.bf16.msra.mxu0 %v824
      %848 = vmatpush.bf16.msra.mxu0 %v823
      %849 = vmatpush.bf16.msra.mxu0 %v822
      %850 = vmatmul.bf16.gmra.mxu0 %v831
      %v851 = vpop.f32.mrf.mxu0
      %v852 = vadd.f32 0.0, %v851
      %v853 = vpop.f32.mrf.mxu0
      %v854 = vadd.f32 0.0, %v853
      %855 = vmatmul.bf16.gmra.mxu0 %v834
      %v856 = vpop.f32.mrf.mxu0
      %v857 = vadd.f32 0.0, %v856
      %v858 = vpop.f32.mrf.mxu0
      %v859 = vadd.f32 0.0, %v858
      %860 = vmatmul.bf16.gmra.mxu0 %v837
      %v861 = vpop.f32.mrf.mxu0
      %v862 = vadd.f32 0.0, %v861
      %v863 = vpop.f32.mrf.mxu0
      %v864 = vadd.f32 0.0, %v863
      %865 = vmatmul.bf16.gmra.mxu0 %v840
      %v866 = vpop.f32.mrf.mxu0
      %v867 = vadd.f32 0.0, %v866
      %v868 = vpop.f32.mrf.mxu0
      %v869 = vadd.f32 0.0, %v868
      %870 = vdwg.mxu0
      %v871 = vadd.f32 %v760, %v852
      %v872 = vadd.f32 %v761, %v854
      %v873 = vadd.f32 %v762, %v857
      %v874 = vadd.f32 %v763, %v859
      %v875 = vadd.f32 %v764, %v862
      %v876 = vadd.f32 %v765, %v864
      %v877 = vadd.f32 %v766, %v867
      %v878 = vadd.f32 %v767, %v869
      %v879 = vld [vmem:[%s657] sm:$0xf]
      %v880 = vld [vmem:[%s657 + $0x4] sm:$0x1]
      %v881 = vld [vmem:[%s657 + $0x8] sm:$0xf]
      %v882 = vld [vmem:[%s657 + $0xc] sm:$0x1]
      %v883 = vld [vmem:[%s657 + $0x10] sm:$0xf]
      %v884 = vld [vmem:[%s657 + $0x14] sm:$0x1]
      %v885 = vld [vmem:[%s657 + $0x18] sm:$0xf]
      %v886 = vld [vmem:[%s657 + $0x1c] sm:$0x1]
      %v887 = vld [vmem:[%s657 + $0x20] sm:$0xf]
      %v888 = vld [vmem:[%s657 + $0x24] sm:$0x1]
      %v889 = vld [vmem:[%s657 + $0x28] sm:$0xf]
      %v890 = vld [vmem:[%s657 + $0x2c] sm:$0x1]
      %v891 = vld [vmem:[%s657 + $0x30] sm:$0xf]
      %v892 = vld [vmem:[%s657 + $0x34] sm:$0x1]
      %v893 = vld [vmem:[%s657 + $0x38] sm:$0xf]
      %v894 = vld [vmem:[%s657 + $0x3c] sm:$0x1]
      %v896 = vshrl.u32 %v879, 16
      %v898 = vrot.slane %v896, 4
      %v899 = vshll.u32 %v879, 16
      %v901 = vrot.slane %v899, 5
      %v902 = vor.u32 %v898, %v901
      %v903 = vrot.slane %v902, 4
      %v905 = vshll.u32 %v880, 16
      %v907 = vrot.slane %v905, 5
      %v908 = vsel %vm450, %v903, %v907
      %v910 = vshrl.u32 %v881, 16
      %v912 = vrot.slane %v910, 4
      %v913 = vshll.u32 %v881, 16
      %v915 = vrot.slane %v913, 5
      %v916 = vor.u32 %v912, %v915
      %v917 = vrot.slane %v916, 4
      %v919 = vshll.u32 %v882, 16
      %v921 = vrot.slane %v919, 5
      %v922 = vsel %vm450, %v917, %v921
      %v924 = vshrl.u32 %v883, 16
      %v926 = vrot.slane %v924, 4
      %v927 = vshll.u32 %v883, 16
      %v929 = vrot.slane %v927, 5
      %v930 = vor.u32 %v926, %v929
      %v931 = vrot.slane %v930, 4
      %v933 = vshll.u32 %v884, 16
      %v935 = vrot.slane %v933, 5
      %v936 = vsel %vm450, %v931, %v935
      %v938 = vshrl.u32 %v885, 16
      %v940 = vrot.slane %v938, 4
      %v941 = vshll.u32 %v885, 16
      %v943 = vrot.slane %v941, 5
      %v944 = vor.u32 %v940, %v943
      %v945 = vrot.slane %v944, 4
      %v947 = vshll.u32 %v886, 16
      %v949 = vrot.slane %v947, 5
      %v950 = vsel %vm450, %v945, %v949
      %v952 = vshrl.u32 %v887, 16
      %v954 = vrot.slane %v952, 4
      %v955 = vshll.u32 %v887, 16
      %v957 = vrot.slane %v955, 5
      %v958 = vor.u32 %v954, %v957
      %v959 = vrot.slane %v958, 4
      %v961 = vshll.u32 %v888, 16
      %v963 = vrot.slane %v961, 5
      %v964 = vsel %vm450, %v959, %v963
      %v966 = vshrl.u32 %v889, 16
      %v968 = vrot.slane %v966, 4
      %v969 = vshll.u32 %v889, 16
      %v971 = vrot.slane %v969, 5
      %v972 = vor.u32 %v968, %v971
      %v973 = vrot.slane %v972, 4
      %v975 = vshll.u32 %v890, 16
      %v977 = vrot.slane %v975, 5
      %v978 = vsel %vm450, %v973, %v977
      %v980 = vshrl.u32 %v891, 16
      %v982 = vrot.slane %v980, 4
      %v983 = vshll.u32 %v891, 16
      %v985 = vrot.slane %v983, 5
      %v986 = vor.u32 %v982, %v985
      %v987 = vrot.slane %v986, 4
      %v989 = vshll.u32 %v892, 16
      %v991 = vrot.slane %v989, 5
      %v992 = vsel %vm450, %v987, %v991
      %v994 = vshrl.u32 %v893, 16
      %v996 = vrot.slane %v994, 4
      %v997 = vshll.u32 %v893, 16
      %v999 = vrot.slane %v997, 5
      %v1000 = vor.u32 %v996, %v999
      %v1001 = vrot.slane %v1000, 4
      %v1003 = vshll.u32 %v894, 16
      %v1005 = vrot.slane %v1003, 5
      %v1006 = vsel %vm450, %v1001, %v1005
      %s1007 = scalar_lea.vmem %s211, 160
      %v1008 = vld [vmem:[%s1007] sm:$0xf]
      %v1009 = vld [vmem:[%s1007 + $0x4] sm:$0xf]
      %v1010 = vld [vmem:[%s1007 + $0x8] sm:$0xf]
      %v1011 = vld [vmem:[%s1007 + $0xc] sm:$0xf]
      %v1012 = vld [vmem:[%s1007 + $0x10] sm:$0xf]
      %v1013 = vld [vmem:[%s1007 + $0x14] sm:$0xf]
      %v1014 = vld [vmem:[%s1007 + $0x18] sm:$0xf]
      %v1015 = vld [vmem:[%s1007 + $0x1c] sm:$0xf]
      %v1016 = vunpack.c.l.b16 %v908
      %v1017 = vunpack.c.l.b16 %v922
      %v1018 = vunpack.c.l.b16 %v936
      %v1019 = vunpack.c.l.b16 %v950
      %v1020 = vunpack.c.l.b16 %v964
      %v1021 = vunpack.c.l.b16 %v978
      %v1022 = vunpack.c.l.b16 %v992
      %v1023 = vunpack.c.l.b16 %v1006
      %v1024 = vpack.c.b16 %v1017, %v1016
      %v1025 = vpack.c.b16 %v1019, %v1018
      %v1026 = vpack.c.b16 %v1021, %v1020
      %v1027 = vpack.c.b16 %v1023, %v1022
      %v1036 = vunpack.c.l.b16 %v1008
      %v1037 = vunpack.c.l.b16 %v1009
      %v1038 = vunpack.c.l.b16 %v1010
      %v1039 = vunpack.c.l.b16 %v1011
      %v1040 = vunpack.c.l.b16 %v1012
      %v1041 = vunpack.c.l.b16 %v1013
      %v1042 = vunpack.c.l.b16 %v1014
      %v1043 = vunpack.c.l.b16 %v1015
      %v1044 = vpack.c.b16 %v1037, %v1036
      %v1045 = vpack.c.b16 %v1039, %v1038
      %v1046 = vpack.c.b16 %v1041, %v1040
      %v1047 = vpack.c.b16 %v1043, %v1042
      %v1053 = vsel %vm305, %v1024, 0
      %v1056 = vsel %vm305, %v1025, 0
      %v1059 = vsel %vm305, %v1026, 0
      %v1062 = vsel %vm305, %v1027, 0
      %1064 = vmatpush.bf16.msra.mxu0 0
      %1065 = vmatpush.bf16.msra.mxu0 0
      %1066 = vmatpush.bf16.msra.mxu0 0
      %1067 = vmatpush.bf16.msra.mxu0 0
      %1068 = vmatpush.bf16.msra.mxu0 %v1047
      %1069 = vmatpush.bf16.msra.mxu0 %v1046
      %1070 = vmatpush.bf16.msra.mxu0 %v1045
      %1071 = vmatpush.bf16.msra.mxu0 %v1044
      %1072 = vmatmul.bf16.gmra.mxu0 %v1053
      %v1073 = vpop.f32.mrf.mxu0
      %v1074 = vadd.f32 0.0, %v1073
      %v1075 = vpop.f32.mrf.mxu0
      %v1076 = vadd.f32 0.0, %v1075
      %1077 = vmatmul.bf16.gmra.mxu0 %v1056
      %v1078 = vpop.f32.mrf.mxu0
      %v1079 = vadd.f32 0.0, %v1078
      %v1080 = vpop.f32.mrf.mxu0
      %v1081 = vadd.f32 0.0, %v1080
      %1082 = vmatmul.bf16.gmra.mxu0 %v1059
      %v1083 = vpop.f32.mrf.mxu0
      %v1084 = vadd.f32 0.0, %v1083
      %v1085 = vpop.f32.mrf.mxu0
      %v1086 = vadd.f32 0.0, %v1085
      %1087 = vmatmul.bf16.gmra.mxu0 %v1062
      %v1088 = vpop.f32.mrf.mxu0
      %v1089 = vadd.f32 0.0, %v1088
      %v1090 = vpop.f32.mrf.mxu0
      %v1091 = vadd.f32 0.0, %v1090
      %1092 = vdwg.mxu0
      %v1093 = vadd.f32 %v871, %v1074
      %v1094 = vadd.f32 %v872, %v1076
      %v1095 = vadd.f32 %v873, %v1079
      %v1096 = vadd.f32 %v874, %v1081
      %v1097 = vadd.f32 %v875, %v1084
      %v1098 = vadd.f32 %v876, %v1086
      %v1099 = vadd.f32 %v877, %v1089
      %v1100 = vadd.f32 %v878, %v1091
      %s1101 = scalar_lea.vmem %s216, 8
      %v1102 = vld [vmem:[%s1101] sm:$0xf]
      %v1103 = vld [vmem:[%s1101 + $0x8] sm:$0xf]
      %v1104 = vld [vmem:[%s1101 + $0x10] sm:$0xf]
      %v1105 = vld [vmem:[%s1101 + $0x18] sm:$0xf]
      %v1106 = vld [vmem:[%s1101 + $0x20] sm:$0xf]
      %v1107 = vld [vmem:[%s1101 + $0x28] sm:$0xf]
      %v1108 = vld [vmem:[%s1101 + $0x30] sm:$0xf]
      %v1109 = vld [vmem:[%s1101 + $0x38] sm:$0xf]
      %s1110 = scalar_lea.vmem %s211, 192
      %v1111 = vld [vmem:[%s1110] sm:$0xf]
      %v1112 = vld [vmem:[%s1110 + $0x4] sm:$0xf]
      %v1113 = vld [vmem:[%s1110 + $0x8] sm:$0xf]
      %v1114 = vld [vmem:[%s1110 + $0xc] sm:$0xf]
      %v1115 = vld [vmem:[%s1110 + $0x10] sm:$0xf]
      %v1116 = vld [vmem:[%s1110 + $0x14] sm:$0xf]
      %v1117 = vld [vmem:[%s1110 + $0x18] sm:$0xf]
      %v1118 = vld [vmem:[%s1110 + $0x1c] sm:$0xf]
      %v1127 = vunpack.c.l.b16 %v1102
      %v1128 = vunpack.c.l.b16 %v1103
      %v1129 = vunpack.c.l.b16 %v1104
      %v1130 = vunpack.c.l.b16 %v1105
      %v1131 = vunpack.c.l.b16 %v1106
      %v1132 = vunpack.c.l.b16 %v1107
      %v1133 = vunpack.c.l.b16 %v1108
      %v1134 = vunpack.c.l.b16 %v1109
      %v1135 = vpack.c.b16 %v1128, %v1127
      %v1136 = vpack.c.b16 %v1130, %v1129
      %v1137 = vpack.c.b16 %v1132, %v1131
      %v1138 = vpack.c.b16 %v1134, %v1133
      %v1147 = vunpack.c.l.b16 %v1111
      %v1148 = vunpack.c.l.b16 %v1112
      %v1149 = vunpack.c.l.b16 %v1113
      %v1150 = vunpack.c.l.b16 %v1114
      %v1151 = vunpack.c.l.b16 %v1115
      %v1152 = vunpack.c.l.b16 %v1116
      %v1153 = vunpack.c.l.b16 %v1117
      %v1154 = vunpack.c.l.b16 %v1118
      %v1155 = vpack.c.b16 %v1148, %v1147
      %v1156 = vpack.c.b16 %v1150, %v1149
      %v1157 = vpack.c.b16 %v1152, %v1151
      %v1158 = vpack.c.b16 %v1154, %v1153
      %v1164 = vsel %vm305, %v1135, 0
      %v1167 = vsel %vm305, %v1136, 0
      %v1170 = vsel %vm305, %v1137, 0
      %v1173 = vsel %vm305, %v1138, 0
      %1175 = vmatpush.bf16.msra.mxu0 0
      %1176 = vmatpush.bf16.msra.mxu0 0
      %1177 = vmatpush.bf16.msra.mxu0 0
      %1178 = vmatpush.bf16.msra.mxu0 0
      %1179 = vmatpush.bf16.msra.mxu0 %v1158
      %1180 = vmatpush.bf16.msra.mxu0 %v1157
      %1181 = vmatpush.bf16.msra.mxu0 %v1156
      %1182 = vmatpush.bf16.msra.mxu0 %v1155
      %1183 = vmatmul.bf16.gmra.mxu0 %v1164
      %v1184 = vpop.f32.mrf.mxu0
      %v1185 = vadd.f32 0.0, %v1184
      %v1186 = vpop.f32.mrf.mxu0
      %v1187 = vadd.f32 0.0, %v1186
      %1188 = vmatmul.bf16.gmra.mxu0 %v1167
      %v1189 = vpop.f32.mrf.mxu0
      %v1190 = vadd.f32 0.0, %v1189
      %v1191 = vpop.f32.mrf.mxu0
      %v1192 = vadd.f32 0.0, %v1191
      %1193 = vmatmul.bf16.gmra.mxu0 %v1170
      %v1194 = vpop.f32.mrf.mxu0
      %v1195 = vadd.f32 0.0, %v1194
      %v1196 = vpop.f32.mrf.mxu0
      %v1197 = vadd.f32 0.0, %v1196
      %1198 = vmatmul.bf16.gmra.mxu0 %v1173
      %v1199 = vpop.f32.mrf.mxu0
      %v1200 = vadd.f32 0.0, %v1199
      %v1201 = vpop.f32.mrf.mxu0
      %v1202 = vadd.f32 0.0, %v1201
      %1203 = vdwg.mxu0
      %v1204 = vadd.f32 %v1093, %v1185
      %v1205 = vadd.f32 %v1094, %v1187
      %v1206 = vadd.f32 %v1095, %v1190
      %v1207 = vadd.f32 %v1096, %v1192
      %v1208 = vadd.f32 %v1097, %v1195
      %v1209 = vadd.f32 %v1098, %v1197
      %v1210 = vadd.f32 %v1099, %v1200
      %v1211 = vadd.f32 %v1100, %v1202
      %s1212 = scalar_lea.vmem %s216, 80
      %v1213 = vld [vmem:[%s1212] sm:$0xf]
      %v1214 = vld [vmem:[%s1212 + $0x8] sm:$0xf]
      %v1215 = vld [vmem:[%s1212 + $0x10] sm:$0xf]
      %v1216 = vld [vmem:[%s1212 + $0x18] sm:$0xf]
      %v1217 = vld [vmem:[%s1212 + $0x20] sm:$0xf]
      %v1218 = vld [vmem:[%s1212 + $0x28] sm:$0xf]
      %v1219 = vld [vmem:[%s1212 + $0x30] sm:$0xf]
      %v1220 = vld [vmem:[%s1212 + $0x38] sm:$0xf]
      %s1221 = scalar_lea.vmem %s211, 224
      %v1222 = vld [vmem:[%s1221] sm:$0xf]
      %v1223 = vld [vmem:[%s1221 + $0x4] sm:$0xf]
      %v1224 = vld [vmem:[%s1221 + $0x8] sm:$0xf]
      %v1225 = vld [vmem:[%s1221 + $0xc] sm:$0xf]
      %v1226 = vld [vmem:[%s1221 + $0x10] sm:$0xf]
      %v1227 = vld [vmem:[%s1221 + $0x14] sm:$0xf]
      %v1228 = vld [vmem:[%s1221 + $0x18] sm:$0xf]
      %v1229 = vld [vmem:[%s1221 + $0x1c] sm:$0xf]
      %v1238 = vunpack.c.l.b16 %v1213
      %v1239 = vunpack.c.l.b16 %v1214
      %v1240 = vunpack.c.l.b16 %v1215
      %v1241 = vunpack.c.l.b16 %v1216
      %v1242 = vunpack.c.l.b16 %v1217
      %v1243 = vunpack.c.l.b16 %v1218
      %v1244 = vunpack.c.l.b16 %v1219
      %v1245 = vunpack.c.l.b16 %v1220
      %v1246 = vpack.c.b16 %v1239, %v1238
      %v1247 = vpack.c.b16 %v1241, %v1240
      %v1248 = vpack.c.b16 %v1243, %v1242
      %v1249 = vpack.c.b16 %v1245, %v1244
      %v1258 = vunpack.c.l.b16 %v1222
      %v1259 = vunpack.c.l.b16 %v1223
      %v1260 = vunpack.c.l.b16 %v1224
      %v1261 = vunpack.c.l.b16 %v1225
      %v1262 = vunpack.c.l.b16 %v1226
      %v1263 = vunpack.c.l.b16 %v1227
      %v1264 = vunpack.c.l.b16 %v1228
      %v1265 = vunpack.c.l.b16 %v1229
      %v1266 = vpack.c.b16 %v1259, %v1258
      %v1267 = vpack.c.b16 %v1261, %v1260
      %v1268 = vpack.c.b16 %v1263, %v1262
      %v1269 = vpack.c.b16 %v1265, %v1264
      %v1275 = vsel %vm305, %v1246, 0
      %v1278 = vsel %vm305, %v1247, 0
      %v1281 = vsel %vm305, %v1248, 0
      %v1284 = vsel %vm305, %v1249, 0
      %1286 = vmatpush.bf16.msra.mxu0 0
      %1287 = vmatpush.bf16.msra.mxu0 0
      %1288 = vmatpush.bf16.msra.mxu0 0
      %1289 = vmatpush.bf16.msra.mxu0 0
      %1290 = vmatpush.bf16.msra.mxu0 %v1269
      %1291 = vmatpush.bf16.msra.mxu0 %v1268
      %1292 = vmatpush.bf16.msra.mxu0 %v1267
      %1293 = vmatpush.bf16.msra.mxu0 %v1266
      %1294 = vmatmul.bf16.gmra.mxu0 %v1275
      %v1295 = vpop.f32.mrf.mxu0
      %v1296 = vadd.f32 0.0, %v1295
      %v1297 = vpop.f32.mrf.mxu0
      %v1298 = vadd.f32 0.0, %v1297
      %1299 = vmatmul.bf16.gmra.mxu0 %v1278
      %v1300 = vpop.f32.mrf.mxu0
      %v1301 = vadd.f32 0.0, %v1300
      %v1302 = vpop.f32.mrf.mxu0
      %v1303 = vadd.f32 0.0, %v1302
      %1304 = vmatmul.bf16.gmra.mxu0 %v1281
      %v1305 = vpop.f32.mrf.mxu0
      %v1306 = vadd.f32 0.0, %v1305
      %v1307 = vpop.f32.mrf.mxu0
      %v1308 = vadd.f32 0.0, %v1307
      %1309 = vmatmul.bf16.gmra.mxu0 %v1284
      %v1310 = vpop.f32.mrf.mxu0
      %v1311 = vadd.f32 0.0, %v1310
      %v1312 = vpop.f32.mrf.mxu0
      %v1313 = vadd.f32 0.0, %v1312
      %1314 = vdwg.mxu0
      %v1315 = vadd.f32 %v1204, %v1296
      %v1316 = vadd.f32 %v1205, %v1298
      %v1317 = vadd.f32 %v1206, %v1301
      %v1318 = vadd.f32 %v1207, %v1303
      %v1319 = vadd.f32 %v1208, %v1306
      %v1320 = vadd.f32 %v1209, %v1308
      %v1321 = vadd.f32 %v1210, %v1311
      %v1322 = vadd.f32 %v1211, %v1313
      %v1323 = vld [vmem:[%s1101] sm:$0xf]
      %v1324 = vld [vmem:[%s1101 + $0x4] sm:$0x1]
      %v1325 = vld [vmem:[%s1101 + $0x8] sm:$0xf]
      %v1326 = vld [vmem:[%s1101 + $0xc] sm:$0x1]
      %v1327 = vld [vmem:[%s1101 + $0x10] sm:$0xf]
      %v1328 = vld [vmem:[%s1101 + $0x14] sm:$0x1]
      %v1329 = vld [vmem:[%s1101 + $0x18] sm:$0xf]
      %v1330 = vld [vmem:[%s1101 + $0x1c] sm:$0x1]
      %v1331 = vld [vmem:[%s1101 + $0x20] sm:$0xf]
      %v1332 = vld [vmem:[%s1101 + $0x24] sm:$0x1]
      %v1333 = vld [vmem:[%s1101 + $0x28] sm:$0xf]
      %v1334 = vld [vmem:[%s1101 + $0x2c] sm:$0x1]
      %v1335 = vld [vmem:[%s1101 + $0x30] sm:$0xf]
      %v1336 = vld [vmem:[%s1101 + $0x34] sm:$0x1]
      %v1337 = vld [vmem:[%s1101 + $0x38] sm:$0xf]
      %v1338 = vld [vmem:[%s1101 + $0x3c] sm:$0x1]
      %v1340 = vshrl.u32 %v1323, 16
      %v1342 = vrot.slane %v1340, 4
      %v1343 = vshll.u32 %v1323, 16
      %v1345 = vrot.slane %v1343, 5
      %v1346 = vor.u32 %v1342, %v1345
      %v1347 = vrot.slane %v1346, 4
      %v1349 = vshll.u32 %v1324, 16
      %v1351 = vrot.slane %v1349, 5
      %v1352 = vsel %vm450, %v1347, %v1351
      %v1354 = vshrl.u32 %v1325, 16
      %v1356 = vrot.slane %v1354, 4
      %v1357 = vshll.u32 %v1325, 16
      %v1359 = vrot.slane %v1357, 5
      %v1360 = vor.u32 %v1356, %v1359
      %v1361 = vrot.slane %v1360, 4
      %v1363 = vshll.u32 %v1326, 16
      %v1365 = vrot.slane %v1363, 5
      %v1366 = vsel %vm450, %v1361, %v1365
      %v1368 = vshrl.u32 %v1327, 16
      %v1370 = vrot.slane %v1368, 4
      %v1371 = vshll.u32 %v1327, 16
      %v1373 = vrot.slane %v1371, 5
      %v1374 = vor.u32 %v1370, %v1373
      %v1375 = vrot.slane %v1374, 4
      %v1377 = vshll.u32 %v1328, 16
      %v1379 = vrot.slane %v1377, 5
      %v1380 = vsel %vm450, %v1375, %v1379
      %v1382 = vshrl.u32 %v1329, 16
      %v1384 = vrot.slane %v1382, 4
      %v1385 = vshll.u32 %v1329, 16
      %v1387 = vrot.slane %v1385, 5
      %v1388 = vor.u32 %v1384, %v1387
      %v1389 = vrot.slane %v1388, 4
      %v1391 = vshll.u32 %v1330, 16
      %v1393 = vrot.slane %v1391, 5
      %v1394 = vsel %vm450, %v1389, %v1393
      %v1396 = vshrl.u32 %v1331, 16
      %v1398 = vrot.slane %v1396, 4
      %v1399 = vshll.u32 %v1331, 16
      %v1401 = vrot.slane %v1399, 5
      %v1402 = vor.u32 %v1398, %v1401
      %v1403 = vrot.slane %v1402, 4
      %v1405 = vshll.u32 %v1332, 16
      %v1407 = vrot.slane %v1405, 5
      %v1408 = vsel %vm450, %v1403, %v1407
      %v1410 = vshrl.u32 %v1333, 16
      %v1412 = vrot.slane %v1410, 4
      %v1413 = vshll.u32 %v1333, 16
      %v1415 = vrot.slane %v1413, 5
      %v1416 = vor.u32 %v1412, %v1415
      %v1417 = vrot.slane %v1416, 4
      %v1419 = vshll.u32 %v1334, 16
      %v1421 = vrot.slane %v1419, 5
      %v1422 = vsel %vm450, %v1417, %v1421
      %v1424 = vshrl.u32 %v1335, 16
      %v1426 = vrot.slane %v1424, 4
      %v1427 = vshll.u32 %v1335, 16
      %v1429 = vrot.slane %v1427, 5
      %v1430 = vor.u32 %v1426, %v1429
      %v1431 = vrot.slane %v1430, 4
      %v1433 = vshll.u32 %v1336, 16
      %v1435 = vrot.slane %v1433, 5
      %v1436 = vsel %vm450, %v1431, %v1435
      %v1438 = vshrl.u32 %v1337, 16
      %v1440 = vrot.slane %v1438, 4
      %v1441 = vshll.u32 %v1337, 16
      %v1443 = vrot.slane %v1441, 5
      %v1444 = vor.u32 %v1440, %v1443
      %v1445 = vrot.slane %v1444, 4
      %v1447 = vshll.u32 %v1338, 16
      %v1449 = vrot.slane %v1447, 5
      %v1450 = vsel %vm450, %v1445, %v1449
      %s1451 = scalar_lea.vmem %s211, 256
      %v1452 = vld [vmem:[%s1451] sm:$0xf]
      %v1453 = vld [vmem:[%s1451 + $0x4] sm:$0xf]
      %v1454 = vld [vmem:[%s1451 + $0x8] sm:$0xf]
      %v1455 = vld [vmem:[%s1451 + $0xc] sm:$0xf]
      %v1456 = vld [vmem:[%s1451 + $0x10] sm:$0xf]
      %v1457 = vld [vmem:[%s1451 + $0x14] sm:$0xf]
      %v1458 = vld [vmem:[%s1451 + $0x18] sm:$0xf]
      %v1459 = vld [vmem:[%s1451 + $0x1c] sm:$0xf]
      %v1460 = vunpack.c.l.b16 %v1352
      %v1461 = vunpack.c.l.b16 %v1366
      %v1462 = vunpack.c.l.b16 %v1380
      %v1463 = vunpack.c.l.b16 %v1394
      %v1464 = vunpack.c.l.b16 %v1408
      %v1465 = vunpack.c.l.b16 %v1422
      %v1466 = vunpack.c.l.b16 %v1436
      %v1467 = vunpack.c.l.b16 %v1450
      %v1468 = vpack.c.b16 %v1461, %v1460
      %v1469 = vpack.c.b16 %v1463, %v1462
      %v1470 = vpack.c.b16 %v1465, %v1464
      %v1471 = vpack.c.b16 %v1467, %v1466
      %v1480 = vunpack.c.l.b16 %v1452
      %v1481 = vunpack.c.l.b16 %v1453
      %v1482 = vunpack.c.l.b16 %v1454
      %v1483 = vunpack.c.l.b16 %v1455
      %v1484 = vunpack.c.l.b16 %v1456
      %v1485 = vunpack.c.l.b16 %v1457
      %v1486 = vunpack.c.l.b16 %v1458
      %v1487 = vunpack.c.l.b16 %v1459
      %v1488 = vpack.c.b16 %v1481, %v1480
      %v1489 = vpack.c.b16 %v1483, %v1482
      %v1490 = vpack.c.b16 %v1485, %v1484
      %v1491 = vpack.c.b16 %v1487, %v1486
      %v1497 = vsel %vm305, %v1468, 0
      %v1500 = vsel %vm305, %v1469, 0
      %v1503 = vsel %vm305, %v1470, 0
      %v1506 = vsel %vm305, %v1471, 0
      %1508 = vmatpush.bf16.msra.mxu0 0
      %1509 = vmatpush.bf16.msra.mxu0 0
      %1510 = vmatpush.bf16.msra.mxu0 0
      %1511 = vmatpush.bf16.msra.mxu0 0
      %1512 = vmatpush.bf16.msra.mxu0 %v1491
      %1513 = vmatpush.bf16.msra.mxu0 %v1490
      %1514 = vmatpush.bf16.msra.mxu0 %v1489
      %1515 = vmatpush.bf16.msra.mxu0 %v1488
      %1516 = vmatmul.bf16.gmra.mxu0 %v1497
      %v1517 = vpop.f32.mrf.mxu0
      %v1518 = vadd.f32 0.0, %v1517
      %v1519 = vpop.f32.mrf.mxu0
      %v1520 = vadd.f32 0.0, %v1519
      %1521 = vmatmul.bf16.gmra.mxu0 %v1500
      %v1522 = vpop.f32.mrf.mxu0
      %v1523 = vadd.f32 0.0, %v1522
      %v1524 = vpop.f32.mrf.mxu0
      %v1525 = vadd.f32 0.0, %v1524
      %1526 = vmatmul.bf16.gmra.mxu0 %v1503
      %v1527 = vpop.f32.mrf.mxu0
      %v1528 = vadd.f32 0.0, %v1527
      %v1529 = vpop.f32.mrf.mxu0
      %v1530 = vadd.f32 0.0, %v1529
      %1531 = vmatmul.bf16.gmra.mxu0 %v1506
      %v1532 = vpop.f32.mrf.mxu0
      %v1533 = vadd.f32 0.0, %v1532
      %v1534 = vpop.f32.mrf.mxu0
      %v1535 = vadd.f32 0.0, %v1534
      %1536 = vdwg.mxu0
      %v1537 = vadd.f32 %v1315, %v1518
      %v1538 = vadd.f32 %v1316, %v1520
      %v1539 = vadd.f32 %v1317, %v1523
      %v1540 = vadd.f32 %v1318, %v1525
      %v1541 = vadd.f32 %v1319, %v1528
      %v1542 = vadd.f32 %v1320, %v1530
      %v1543 = vadd.f32 %v1321, %v1533
      %v1544 = vadd.f32 %v1322, %v1535
      %v1545 = vperm.slane %v226, 0
      %v1546 = vadd.f32 %v1537, %v1545
      %v1547 = vadd.f32 %v1538, %v1545
      %v1548 = vadd.f32 %v1539, %v1545
      %v1549 = vadd.f32 %v1540, %v1545
      %v1550 = vadd.f32 %v1541, %v1545
      %v1551 = vadd.f32 %v1542, %v1545
      %v1552 = vadd.f32 %v1543, %v1545
      %v1553 = vadd.f32 %v1544, %v1545
      %v1554 = vadd.f32 %v1546, %v1547
      %v1555 = vadd.f32 %v1554, %v1548
      %v1556 = vadd.f32 %v1555, %v1549
      %v1557 = vadd.f32 %v1556, %v1550
      %v1558 = vadd.f32 %v1557, %v1551
      %v1559 = vadd.f32 %v1558, %v1552
      %v1560 = vadd.f32 %v1559, %v1553
      %v1561 = vrot.slane %v1560, 4
      %v1562 = vadd.f32 %v1560, %v1561
      %v1563 = vrot.slane %v1562, 2
      %v1564 = vadd.f32 %v1562, %v1563
      %v1565 = vrot.slane %v1564, 1
      %v1566 = vadd.f32 %v1564, %v1565
      %v1567 = vmul.f32 %v1546, %v1546
      %v1568 = vmul.f32 %v1547, %v1547
      %v1569 = vmul.f32 %v1548, %v1548
      %v1570 = vmul.f32 %v1549, %v1549
      %v1571 = vmul.f32 %v1550, %v1550
      %v1572 = vmul.f32 %v1551, %v1551
      %v1573 = vmul.f32 %v1552, %v1552
      %v1574 = vmul.f32 %v1553, %v1553
      %v1575 = vadd.f32 %v1567, %v1568
      %v1576 = vadd.f32 %v1575, %v1569
      %v1577 = vadd.f32 %v1576, %v1570
      %v1578 = vadd.f32 %v1577, %v1571
      %v1579 = vadd.f32 %v1578, %v1572
      %v1580 = vadd.f32 %v1579, %v1573
      %v1581 = vadd.f32 %v1580, %v1574
      %v1582 = vrot.slane %v1581, 4
      %v1583 = vadd.f32 %v1581, %v1582
      %v1584 = vrot.slane %v1583, 2
      %v1585 = vadd.f32 %v1583, %v1584
      %v1586 = vrot.slane %v1585, 1
      %v1587 = vadd.f32 %v1585, %v1586
      %v1588 = vmul.f32 %v1566, 0.015625
      %v1589 = vmul.f32 %v1566, %v1588
      %v1590 = vsub.f32 %v1587, %v1589
      %v1591 = vmax.f32 %v1590, 0.0
      %v1592 = vmul.f32 %v1591, 0.015873017
      %v1593 = vrsqrt.pop %v1592
      %v1594 = vmul.f32 %v1593, %v1592
      %v1595 = vmul.f32 %v1594, %v1593
      %v1596 = vmul.f32 0.5, %v1595
      %v1597 = vsub.f32 1.5, %v1596
      %v1598 = vmul.f32 %v1593, %v1597
      %v1599 = vmul.f32 %v1592, %v1598
      %vm1600 = vcmp.eq.f32.partialorder %v1592, inf
      %v1601 = vsel %vm1600, %v1592, %v1599
      %vm1602 = vcmp.eq.f32.partialorder %v1592, 0.0
      %v1603 = vand.u32 %v1592, 2147483648
      %v1604 = vsel %vm1602, %v1603, %v1601
      %v1605 = vadd.f32 %v1604, 1e-05
      %v1606 = vrcp.pop %v1605
      %v1607 = vmul.f32 %v1605, %v1606
      %v1608 = vsub.f32 1.0, %v1607
      %v1609 = vmul.f32 %v1606, %v1608
      %v1610 = vadd.f32 %v1606, %v1609
      %vm1611 = vweird.f32 %v1605
      %vm1612 = vweird.f32 %v1606
      %vm1613 = vmor %vm1611, %vm1612
      %v1614 = vsel %vm1613, %v1606, %v1610
      %v1615 = vand.u32 2147483647, %v1605
      %vm1616 = vcmp.eq.f32.partialorder %v1615, 8.507059e+37
      %v1617 = vand.u32 %v1605, 2147483648
      %v1618 = vor.u32 1.1754944e-38, %v1617
      %v1619 = vsel %vm1616, %v1618, %v1614
      %v1620 = vmul.f32 %v1619, %v226
      %v1621 = vperm.slane %v1620, 1
      %v1622 = vmul.f32 %v1546, %v1621
      %v1623 = vmul.f32 %v1547, %v1621
      %v1624 = vmul.f32 %v1548, %v1621
      %v1625 = vmul.f32 %v1549, %v1621
      %v1626 = vmul.f32 %v1550, %v1621
      %v1627 = vmul.f32 %v1551, %v1621
      %v1628 = vmul.f32 %v1552, %v1621
      %v1629 = vmul.f32 %v1553, %v1621
      %v1630 = vmul.f32 %v1588, %v1620
      %v1632 = vrot.slane %v1630, 7
      %v1634 = vsub.f32 %v226, %v1632
      %v1635 = vperm.slane %v1634, 2
      %v1636 = vadd.f32 %v1622, %v1635
      %v1637 = vadd.f32 %v1623, %v1635
      %v1638 = vadd.f32 %v1624, %v1635
      %v1639 = vadd.f32 %v1625, %v1635
      %v1640 = vadd.f32 %v1626, %v1635
      %v1641 = vadd.f32 %v1627, %v1635
      %v1642 = vadd.f32 %v1628, %v1635
      %v1643 = vadd.f32 %v1629, %v1635
      %v1644 = vmax.f32 %v1636, 0.0
      %v1645 = vmax.f32 %v1637, 0.0
      %v1646 = vmax.f32 %v1638, 0.0
      %v1647 = vmax.f32 %v1639, 0.0
      %v1648 = vmax.f32 %v1640, 0.0
      %v1649 = vmax.f32 %v1641, 0.0
      %v1650 = vmax.f32 %v1642, 0.0
      %v1651 = vmax.f32 %v1643, 0.0
      %v1652 = vpack.c.bf16 %v1644, %v1644
      %v1653 = vpack.c.bf16 %v1645, %v1645
      %v1654 = vpack.c.bf16 %v1646, %v1646
      %v1655 = vpack.c.bf16 %v1647, %v1647
      %v1656 = vpack.c.bf16 %v1648, %v1648
      %v1657 = vpack.c.bf16 %v1649, %v1649
      %v1658 = vpack.c.bf16 %v1650, %v1650
      %v1659 = vpack.c.bf16 %v1651, %v1651
      %1660 = vst [vmem:[%s224] sm:$0xf] %v1652
      %1661 = vst [vmem:[%s224 + $0x4] sm:$0xf] %v1653
      %1662 = vst [vmem:[%s224 + $0x8] sm:$0xf] %v1654
      %1663 = vst [vmem:[%s224 + $0xc] sm:$0xf] %v1655
      %1664 = vst [vmem:[%s224 + $0x10] sm:$0xf] %v1656
      %1665 = vst [vmem:[%s224 + $0x14] sm:$0xf] %v1657
      %1666 = vst [vmem:[%s224 + $0x18] sm:$0xf] %v1658
      %1667 = vst [vmem:[%s224 + $0x1c] sm:$0xf] %v1659
      %p1668 = scmp.lt.s32.totalorder %s18, 1
      %s1669 = scalar_select %p1668, %s18, 1
      %p1670 = scmp.lt.s32.totalorder %s19, 0
      %s1671 = scalar_select %p1670, %s19, 0
      %s1672 = smul.addr %s1669, 8
      %s1673 = sadd.s32 %s1671, %s1672
      %s1674 = smul.addr %s1673, 4
      %s1675 = scalar_lea.vmem %s3, %s1674
      // Predicated region
      $region33: #{residual_block.2} parent=31 // pred_check
        %p1676 = pneg %p124
      $region34: #{residual_block.2} parent=31 // pred_check_branch
        %1678 = sbr.rel (%p1676) target = $region36
      $region35: #{residual_block.2} parent=31 // pred_region
        _
      $region36: #{residual_block.2} parent=31 // pred_fallthru
        _
    $region32: #{residual_block.2} parent=5 // pred_fallthru
      _
    %p1679 = scmp.le.s32.totalorder 2, %s9
    // Predicated region
    $region37: #{residual_block.2} parent=5 // pred_check
      %p1680 = pneg %p1679
    $region38: #{residual_block.2} parent=5 // pred_check_branch
      %1682 = sbr.rel (%p1680) target = $region40
    $region39: #{residual_block.2} parent=5 // pred_region
      %s1683 = ssub.s32 %s9, 2
      // Predicated region
      $region41: #{residual_block.2} parent=39 // pred_check
        %p1684 = pneg %p130
      $region42: #{residual_block.2} parent=39 // pred_check_branch
        %1686 = sbr.rel (%p1684) target = $region44
      $region43: #{residual_block.2} parent=39 // pred_region
        %p1687 = scmp.lt.s32.totalorder %s20, 1
        %s1688 = scalar_select %p1687, %s20, 1
        %p1689 = scmp.lt.s32.totalorder %s21, 0
        %s1690 = scalar_select %p1689, %s21, 0
        %s1691 = smul.addr %s1688, 8
        %s1692 = sadd.s32 %s1690, %s1691
        %s1693 = smul.addr %s1692, 4
        %s1694 = scalar_lea.vmem %s3, %s1693
      $region44: #{residual_block.2} parent=39 // pred_fallthru
        _
    $region40: #{residual_block.2} parent=5 // pred_fallthru
      _
  $region6: #{residual_block.2} parent=0 // loop_footer
    %s13 = sadd.s32 1, %s9
  $region7: #{residual_block.2} parent=0 // loop_footer_branch
    %8 = sbr.rel target = $region3
  $region8: #{residual_block.2} parent=0 // loop_exit
    _

// kernel: residual_block.3
$region0: #{residual_block.3}
  #allocation0 [shape = 'u32[]', space=smem, size = 0x4, offset = 0x4, fixed_abs, tag = 'smem constant byte address 0x4 - core index']
  #allocation1 [shape = 'u32[72,128]{1,0:T(1,128)}', space=vmem, size = 0x9000, scoped, tag = 'internal scratch']
  %s0 = inlined_call_operand.vmem [shape: f32[8,128], index: 0, kind: input, shape index: {}]
  %s1 = inlined_call_operand.vmem [shape: bf16[9,128,128], index: 1, kind: input, shape index: {}]
  %s2 = inlined_call_operand.vmem [shape: bf16[2,1,10,10,128], index: 2, kind: input, shape index: {}]
  %s3 = inlined_call_operand.vmem [shape: bf16[64,128], index: 3, kind: input, shape index: {}]
  %s4 = inlined_call_operand.vmem [shape: bf16[2,64,64], index: 4, kind: input, shape index: {}]
  %s5 = inlined_call_operand.hbm [shape: f32[2,64,128], index: 5, kind: output, shape index: {}]
  %s6 = sld [smem:[#allocation0]]
  $region53: #{residual_block.3} parent=0
    _
  %s8 = ssub.s32 1, %s6
  %s9 = scalar_select 0, %s8, %s6
  $region1: #{residual_block.3} parent=0
    #allocation2 [shape = 'u8[65536]{0}', space=vmem, size = 0x10000, scoped, tag = 'output window, operand 0']
    #allocation3 [shape = 's32[2]{0}', space=sflag, size = 0x8, scoped, tag = 'scoped memory for residual_block.3']
    %10 = vsyncpa [#allocation3], 0
    %s11 = scalar_lea.sflag [#allocation3], 1
    %12 = vsyncpa %s11, 0
    loop: start=0, step=1, limit=4
    $region2: #{residual_block.3} parent=1 // loop_pre_header
      _
    $region3: #{residual_block.3} parent=1 // loop_header
      %s14 = sphi 0, %s18
      %p15 = scmp.ge.s32.totalorder %s14, 4
      %s21 = sphi 0, %s33
      %s22 = sphi 0, %s29
      %s23 = sphi 0, %s21
      %s24 = sphi 0, %s22
      %s25 = sphi 0, %s23
      %s26 = sphi 0, %s24
      %s36 = sphi 0, %s38
      %s39 = sphi 0, %s36
      %s40 = sphi 0, %s39
      %s56 = sphi 0, %s40
      %s62 = sphi 0, %s64
      %s65 = sphi 0, %s62
      %s66 = sphi 0, %s65
      %s82 = sphi 0, %s66
      %s88 = sphi 0, %s90
      %s91 = sphi 0, %s88
      %s92 = sphi 0, %s91
      %s108 = sphi 0, %s92
      %s114 = sphi 0, %s116
      %s117 = sphi 0, %s114
      %s118 = sphi 0, %s117
      %s134 = sphi 0, %s118
      %s140 = sphi 0, %s142
      %s143 = sphi 0, %s140
      %s144 = sphi 0, %s143
      %s160 = sphi 0, %s144
      %s168 = sphi 0, %s170
      %s171 = sphi 0, %s168
      %s172 = sphi 0, %s171
      %s188 = sphi 0, %s172
    $region4: #{residual_block.3} parent=1 // loop_header_branch
      %17 = sbr.rel (%p15) target = $region8
    $region5: #{residual_block.3} parent=1 // loop_body
      %s19 = ssub.s32 %s14, 1
      %s20 = ssub.s32 %s14, 2
      %s27 = sadd.s32 1, %s22
      %p28 = scmp.ge.s32.totalorder %s27, 1
      %s29 = scalar_select %p28, 0, %s27
      %s30 = sadd.s32 1, %s21
      %s31 = scalar_select %p28, %s30, %s21
      %p32 = scmp.ge.s32.totalorder %s31, 2
      %s33 = scalar_select %p32, 0, %s31
      %s34 = ssub.s32 %s22, %s29
      %p35 = scmp.eq.s32.totalorder %s34, 0
      %s37 = sadd.s32 %s36, 1
      %s38 = scalar_select %p35, %s36, %s37
      %p41 = pneg %p35
      %p42 = scmp.eq.s32.totalorder %s14, 1
      %p43 = por %p41, %p42
      %p44 = scmp.ne.s32.totalorder %s36, %s39
      %p45 = scmp.eq.s32.totalorder %s14, 0
      %p46 = por %p44, %p45
      %p47 = scmp.ne.s32.totalorder %s36, %s39
      %p48 = scmp.eq.s32.totalorder %s19, 1
      %p49 = por %p47, %p48
      %p50 = scmp.ne.s32.totalorder %s39, %s40
      %p51 = scmp.eq.s32.totalorder %s19, 0
      %p52 = por %p50, %p51
      %p53 = scmp.ne.s32.totalorder %s39, %s40
      %p54 = scmp.eq.s32.totalorder %s20, 1
      %p55 = por %p53, %p54
      %p57 = scmp.ne.s32.totalorder %s40, %s56
      %p58 = scmp.eq.s32.totalorder %s20, 0
      %p59 = por %p57, %p58
      %s60 = ssub.s32 %s22, %s29
      %p61 = scmp.eq.s32.totalorder %s60, 0
      %s63 = sadd.s32 %s62, 1
      %s64 = scalar_select %p61, %s62, %s63
      %p67 = pneg %p61
      %p68 = scmp.eq.s32.totalorder %s14, 1
      %p69 = por %p67, %p68
      %p70 = scmp.ne.s32.totalorder %s62, %s65
      %p71 = scmp.eq.s32.totalorder %s14, 0
      %p72 = por %p70, %p71
      %p73 = scmp.ne.s32.totalorder %s62, %s65
      %p74 = scmp.eq.s32.totalorder %s19, 1
      %p75 = por %p73, %p74
      %p76 = scmp.ne.s32.totalorder %s65, %s66
      %p77 = scmp.eq.s32.totalorder %s19, 0
      %p78 = por %p76, %p77
      %p79 = scmp.ne.s32.totalorder %s65, %s66
      %p80 = scmp.eq.s32.totalorder %s20, 1
      %p81 = por %p79, %p80
      %p83 = scmp.ne.s32.totalorder %s66, %s82
      %p84 = scmp.eq.s32.totalorder %s20, 0
      %p85 = por %p83, %p84
      %s86 = ssub.s32 %s21, %s33
      %p87 = scmp.eq.s32.totalorder %s86, 0
      %s89 = sadd.s32 %s88, 1
      %s90 = scalar_select %p87, %s88, %s89
      %p93 = pneg %p87
      %p94 = scmp.eq.s32.totalorder %s14, 1
      %p95 = por %p93, %p94
      %p96 = scmp.ne.s32.totalorder %s88, %s91
      %p97 = scmp.eq.s32.totalorder %s14, 0
      %p98 = por %p96, %p97
      %p99 = scmp.ne.s32.totalorder %s88, %s91
      %p100 = scmp.eq.s32.totalorder %s19, 1
      %p101 = por %p99, %p100
      %p102 = scmp.ne.s32.totalorder %s91, %s92
      %p103 = scmp.eq.s32.totalorder %s19, 0
      %p104 = por %p102, %p103
      %p105 = scmp.ne.s32.totalorder %s91, %s92
      %p106 = scmp.eq.s32.totalorder %s20, 1
      %p107 = por %p105, %p106
      %p109 = scmp.ne.s32.totalorder %s92, %s108
      %p110 = scmp.eq.s32.totalorder %s20, 0
      %p111 = por %p109, %p110
      %s112 = ssub.s32 %s22, %s29
      %p113 = scmp.eq.s32.totalorder %s112, 0
      %s115 = sadd.s32 %s114, 1
      %s116 = scalar_select %p113, %s114, %s115
      %p119 = pneg %p113
      %p120 = scmp.eq.s32.totalorder %s14, 1
      %p121 = por %p119, %p120
      %p122 = scmp.ne.s32.totalorder %s114, %s117
      %p123 = scmp.eq.s32.totalorder %s14, 0
      %p124 = por %p122, %p123
      %p125 = scmp.ne.s32.totalorder %s114, %s117
      %p126 = scmp.eq.s32.totalorder %s19, 1
      %p127 = por %p125, %p126
      %p128 = scmp.ne.s32.totalorder %s117, %s118
      %p129 = scmp.eq.s32.totalorder %s19, 0
      %p130 = por %p128, %p129
      %p131 = scmp.ne.s32.totalorder %s117, %s118
      %p132 = scmp.eq.s32.totalorder %s20, 1
      %p133 = por %p131, %p132
      %p135 = scmp.ne.s32.totalorder %s118, %s134
      %p136 = scmp.eq.s32.totalorder %s20, 0
      %p137 = por %p135, %p136
      %s138 = ssub.s32 %s21, %s33
      %p139 = scmp.eq.s32.totalorder %s138, 0
      %s141 = sadd.s32 %s140, 1
      %s142 = scalar_select %p139, %s140, %s141
      %p145 = pneg %p139
      %p146 = scmp.eq.s32.totalorder %s14, 1
      %p147 = por %p145, %p146
      %p148 = scmp.ne.s32.totalorder %s140, %s143
      %p149 = scmp.eq.s32.totalorder %s14, 0
      %p150 = por %p148, %p149
      %p151 = scmp.ne.s32.totalorder %s140, %s143
      %p152 = scmp.eq.s32.totalorder %s19, 1
      %p153 = por %p151, %p152
      %p154 = scmp.ne.s32.totalorder %s143, %s144
      %p155 = scmp.eq.s32.totalorder %s19, 0
      %p156 = por %p154, %p155
      %p157 = scmp.ne.s32.totalorder %s143, %s144
      %p158 = scmp.eq.s32.totalorder %s20, 1
      %p159 = por %p157, %p158
      %p161 = scmp.ne.s32.totalorder %s144, %s160
      %p162 = scmp.eq.s32.totalorder %s20, 0
      %p163 = por %p161, %p162
      %s164 = ssub.s32 %s21, %s33
      %s165 = ssub.s32 %s22, %s29
      %s166 = sor.u32 %s164, %s165
      %p167 = scmp.eq.s32.totalorder %s166, 0
      %s169 = sadd.s32 %s168, 1
      %s170 = scalar_select %p167, %s168, %s169
      %p173 = pneg %p167
      %p174 = scmp.eq.s32.totalorder %s14, 1
      %p175 = por %p173, %p174
      %p176 = scmp.ne.s32.totalorder %s168, %s171
      %p177 = scmp.eq.s32.totalorder %s14, 0
      %p178 = por %p176, %p177
      %p179 = scmp.ne.s32.totalorder %s168, %s171
      %p180 = scmp.eq.s32.totalorder %s19, 1
      %p181 = por %p179, %p180
      %p182 = scmp.ne.s32.totalorder %s171, %s172
      %p183 = scmp.eq.s32.totalorder %s19, 0
      %p184 = por %p182, %p183
      %p185 = scmp.ne.s32.totalorder %s171, %s172
      %p186 = scmp.eq.s32.totalorder %s20, 1
      %p187 = por %p185, %p186
      %p189 = scmp.ne.s32.totalorder %s172, %s188
      %p190 = scmp.eq.s32.totalorder %s20, 0
      %p191 = por %p189, %p190
      %p192 = scmp.le.s32.totalorder 1, %s14
      %p193 = scmp.lt.s32.totalorder %s14, 3
      %p194 = pnand %p192, %p193
      %p195 = pneg %p194
      // Predicated region
      $region9: #{residual_block.3} parent=5 // pred_check
        _
      $region10: #{residual_block.3} parent=5 // pred_check_branch
        %197 = sbr.rel (%p194) target = $region12
      $region11: #{residual_block.3} parent=5 // pred_region
        %s198 = ssub.s32 %s14, 1
        // Predicated region
        $region13: #{residual_block.3} parent=11 // pred_check
          %p199 = pneg %p52
        $region14: #{residual_block.3} parent=11 // pred_check_branch
          %201 = sbr.rel (%p199) target = $region16
        $region15: #{residual_block.3} parent=11 // pred_region
          %p202 = scmp.lt.s32.totalorder %s24, 0
          %s203 = scalar_select %p202, %s24, 0
          %s204 = smul.addr %s203, 8
          %s205 = scalar_lea.vmem %s0, %s204
        $region16: #{residual_block.3} parent=11 // pred_fallthru
          _
        // Predicated region
        $region17: #{residual_block.3} parent=11 // pred_check
          %p206 = pneg %p78
        $region18: #{residual_block.3} parent=11 // pred_check_branch
          %208 = sbr.rel (%p206) target = $region20
        $region19: #{residual_block.3} parent=11 // pred_region
          %p209 = scmp.lt.s32.totalorder %s24, 0
          %s210 = scalar_select %p209, %s24, 0
          %s211 = smul.addr %s210, 4
          %s212 = scalar_lea.vmem %s1, %s211
        $region20: #{residual_block.3} parent=11 // pred_fallthru
          _
        // Predicated region
        $region21: #{residual_block.3} parent=11 // pred_check
          %p213 = pneg %p130
        $region22: #{residual_block.3} parent=11 // pred_check_branch
          %215 = sbr.rel (%p213) target = $region24
        $region23: #{residual_block.3} parent=11 // pred_region
          %p216 = scmp.lt.s32.totalorder %s24, 0
          %s217 = scalar_select %p216, %s24, 0
          %s218 = smul.addr %s217, 4
          %s219 = scalar_lea.vmem %s3, %s218
        $region24: #{residual_block.3} parent=11 // pred_fallthru
          _
      $region12: #{residual_block.3} parent=5 // pred_fallthru
        _
      %p220 = scmp.lt.s32.totalorder %s14, 2
      // Predicated region
      $region25: #{residual_block.3} parent=5 // pred_check
        %p221 = pneg %p220
      $region26: #{residual_block.3} parent=5 // pred_check_branch
        %223 = sbr.rel (%p221) target = $region28
      $region27: #{residual_block.3} parent=5 // pred_region
        // Predicated region
        $region29: #{residual_block.3} parent=27 // pred_check
          %p224 = pneg %p98
        $region30: #{residual_block.3} parent=27 // pred_check_branch
          %226 = sbr.rel (%p224) target = $region32
        $region31: #{residual_block.3} parent=27 // pred_region
          %p227 = scmp.lt.s32.totalorder %s21, 1
          %s228 = scalar_select %p227, %s21, 1
          %s229 = smul.addr %s228, 20
          %s230 = smul.addr %s229, 4
          %s231 = scalar_lea.vmem %s2, %s230
        $region32: #{residual_block.3} parent=27 // pred_fallthru
          _
        // Predicated region
        $region33: #{residual_block.3} parent=27 // pred_check
          %p232 = pneg %p150
        $region34: #{residual_block.3} parent=27 // pred_check_branch
          %234 = sbr.rel (%p232) target = $region36
        $region35: #{residual_block.3} parent=27 // pred_region
          %p235 = scmp.lt.s32.totalorder %s21, 1
          %s236 = scalar_select %p235, %s21, 1
          %s237 = smul.addr %s236, 8
          %s238 = smul.addr %s237, 4
          %s239 = scalar_lea.vmem %s4, %s238
        $region36: #{residual_block.3} parent=27 // pred_fallthru
          _
      $region28: #{residual_block.3} parent=5 // pred_fallthru
        _
      %p240 = scmp.le.s32.totalorder 1, %s14
      %p241 = scmp.lt.s32.totalorder %s14, 3
      %p242 = pnand %p240, %p241
      %p243 = pneg %p242
      // Predicated region
      $region37: #{residual_block.3} parent=5 // pred_check
        _
      $region38: #{residual_block.3} parent=5 // pred_check_branch
        %245 = sbr.rel (%p242) target = $region40
      $region39: #{residual_block.3} parent=5 // pred_region
        %s246 = ssub.s32 %s14, 1
        %p247 = scmp.lt.s32.totalorder %s24, 0
        %s248 = scalar_select %p247, %s24, 0
        %s249 = smul.addr %s248, 8
        %s250 = scalar_lea.vmem %s0, %s249
        %p251 = pneg %p52
        %p252 = pneg %p49
        %p253 = scmp.lt.s32.totalorder %s24, 0
        %s254 = scalar_select %p253, %s24, 0
        %s255 = smul.addr %s254, 4
        %s256 = scalar_lea.vmem %s1, %s255
        %p257 = pneg %p78
        %p258 = pneg %p75
        %p259 = scmp.lt.s32.totalorder %s23, 1
        %s260 = scalar_select %p259, %s23, 1
        %s261 = smul.addr %s260, 20
        %s262 = smul.addr %s261, 4
        %s263 = scalar_lea.vmem %s2, %s262
        %p264 = pneg %p104
        %p265 = pneg %p101
        %p266 = scmp.lt.s32.totalorder %s24, 0
        %s267 = scalar_select %p266, %s24, 0
        %s268 = smul.addr %s267, 4
        %s269 = scalar_lea.vmem %s3, %s268
        %p270 = pneg %p130
        %p271 = pneg %p127
        %p272 = scmp.lt.s32.totalorder %s23, 1
        %s273 = scalar_select %p272, %s23, 1
        %s274 = smul.addr %s273, 8
        %s275 = smul.addr %s274, 4
        %s276 = scalar_lea.vmem %s4, %s275
        %p277 = pneg %p156
        %p278 = pneg %p153
        %p279 = pneg %p184
        %p280 = pneg %p181
        %s281 = sand.u32 %s171, 1
        %s282 = scalar_lea.sflag [#allocation3], %s281
        %s283 = sand.u32 %s171, 1
        %s284 = smul.addr %s283, 64
        %s285 = scalar_lea.vmem [#allocation2], %s284
        %p286 = scmp.lt.s32.totalorder %s24, 0
        %s287 = scalar_select %p286, %s24, 0
        %s288 = smul.addr %s287, 8
        %s289 = scalar_lea.vmem %s0, %s288
        %p290 = scmp.lt.s32.totalorder %s24, 0
        %s291 = scalar_select %p290, %s24, 0
        %s292 = smul.addr %s291, 4
        %s293 = scalar_lea.vmem %s1, %s292
        %p294 = scmp.lt.s32.totalorder %s23, 1
        %s295 = scalar_select %p294, %s23, 1
        %s296 = smul.addr %s295, 20
        %s297 = smul.addr %s296, 4
        %s298 = scalar_lea.vmem %s2, %s297
        %p299 = scmp.lt.s32.totalorder %s24, 0
        %s300 = scalar_select %p299, %s24, 0
        %s301 = smul.addr %s300, 4
        %s302 = scalar_lea.vmem %s3, %s301
        %p303 = scmp.lt.s32.totalorder %s23, 1
        %s304 = scalar_select %p303, %s23, 1
        %s305 = smul.addr %s304, 8
        %s306 = smul.addr %s305, 4
        %s307 = scalar_lea.vmem %s4, %s306
        %v309 = vld [vmem:[%s289] sm:$0xff]
        %v310 = vld [vmem:[%s298] sm:$0xf]
        %v311 = vld [vmem:[%s298 + $0x8] sm:$0xf]
        %v312 = vld [vmem:[%s298 + $0x10] sm:$0xf]
        %v313 = vld [vmem:[%s298 + $0x18] sm:$0xf]
        %v314 = vld [vmem:[%s298 + $0x20] sm:$0xf]
        %v315 = vld [vmem:[%s298 + $0x28] sm:$0xf]
        %v316 = vld [vmem:[%s298 + $0x30] sm:$0xf]
        %v317 = vld [vmem:[%s298 + $0x38] sm:$0xf]
        %v318 = vld [vmem:[%s293] sm:$0xf]
        %v319 = vld [vmem:[%s293 + $0x4] sm:$0xf]
        %v320 = vld [vmem:[%s293 + $0x8] sm:$0xf]
        %v321 = vld [vmem:[%s293 + $0xc] sm:$0xf]
        %v322 = vld [vmem:[%s293 + $0x10] sm:$0xf]
        %v323 = vld [vmem:[%s293 + $0x14] sm:$0xf]
        %v324 = vld [vmem:[%s293 + $0x18] sm:$0xf]
        %v325 = vld [vmem:[%s293 + $0x1c] sm:$0xf]
        %v326 = vld [vmem:[%s293 + $0x20] sm:$0xf]
        %v327 = vld [vmem:[%s293 + $0x24] sm:$0xf]
        %v328 = vld [vmem:[%s293 + $0x28] sm:$0xf]
        %v329 = vld [vmem:[%s293 + $0x2c] sm:$0xf]
        %v330 = vld [vmem:[%s293 + $0x30] sm:$0xf]
        %v331 = vld [vmem:[%s293 + $0x34] sm:$0xf]
        %v332 = vld [vmem:[%s293 + $0x38] sm:$0xf]
        %v333 = vld [vmem:[%s293 + $0x3c] sm:$0xf]
        %v334 = vld [vmem:[%s298 + $0x4] sm:$0x1]
        %v335 = vld [vmem:[%s298 + $0xc] sm:$0x1]
        %v336 = vld [vmem:[%s298 + $0x14] sm:$0x1]
        %v337 = vld [vmem:[%s298 + $0x1c] sm:$0x1]
        %v338 = vld [vmem:[%s298 + $0x24] sm:$0x1]
        %v339 = vld [vmem:[%s298 + $0x2c] sm:$0x1]
        %v340 = vld [vmem:[%s298 + $0x34] sm:$0x1]
        %v341 = vld [vmem:[%s298 + $0x3c] sm:$0x1]
        %vm342 = vsmask.f32 3328
        %vm343 = vsmask.f32 7440
        %vm344 = vmor %vm342, %vm343
        %v346 = vshrl.u32 %v310, 16
        %v348 = vrot.slane %v346, 4
        %v349 = vshll.u32 %v310, 16
        %v351 = vrot.slane %v349, 5
        %v352 = vor.u32 %v348, %v351
        %v353 = vrot.slane %v352, 4
        %v355 = vshll.u32 %v334, 16
        %v357 = vrot.slane %v355, 5
        %v358 = vsel %vm344, %v353, %v357
        %v360 = vshrl.u32 %v311, 16
        %v362 = vrot.slane %v360, 4
        %v363 = vshll.u32 %v311, 16
        %v365 = vrot.slane %v363, 5
        %v366 = vor.u32 %v362, %v365
        %v367 = vrot.slane %v366, 4
        %v369 = vshll.u32 %v335, 16
        %v371 = vrot.slane %v369, 5
        %v372 = vsel %vm344, %v367, %v371
        %v374 = vshrl.u32 %v312, 16
        %v376 = vrot.slane %v374, 4
        %v377 = vshll.u32 %v312, 16
        %v379 = vrot.slane %v377, 5
        %v380 = vor.u32 %v376, %v379
        %v381 = vrot.slane %v380, 4
        %v383 = vshll.u32 %v336, 16
        %v385 = vrot.slane %v383, 5
        %v386 = vsel %vm344, %v381, %v385
        %v388 = vshrl.u32 %v313, 16
        %v390 = vrot.slane %v388, 4
        %v391 = vshll.u32 %v313, 16
        %v393 = vrot.slane %v391, 5
        %v394 = vor.u32 %v390, %v393
        %v395 = vrot.slane %v394, 4
        %v397 = vshll.u32 %v337, 16
        %v399 = vrot.slane %v397, 5
        %v400 = vsel %vm344, %v395, %v399
        %v402 = vshrl.u32 %v314, 16
        %v404 = vrot.slane %v402, 4
        %v405 = vshll.u32 %v314, 16
        %v407 = vrot.slane %v405, 5
        %v408 = vor.u32 %v404, %v407
        %v409 = vrot.slane %v408, 4
        %v411 = vshll.u32 %v338, 16
        %v413 = vrot.slane %v411, 5
        %v414 = vsel %vm344, %v409, %v413
        %v416 = vshrl.u32 %v315, 16
        %v418 = vrot.slane %v416, 4
        %v419 = vshll.u32 %v315, 16
        %v421 = vrot.slane %v419, 5
        %v422 = vor.u32 %v418, %v421
        %v423 = vrot.slane %v422, 4
        %v425 = vshll.u32 %v339, 16
        %v427 = vrot.slane %v425, 5
        %v428 = vsel %vm344, %v423, %v427
        %v430 = vshrl.u32 %v316, 16
        %v432 = vrot.slane %v430, 4
        %v433 = vshll.u32 %v316, 16
        %v435 = vrot.slane %v433, 5
        %v436 = vor.u32 %v432, %v435
        %v437 = vrot.slane %v436, 4
        %v439 = vshll.u32 %v340, 16
        %v441 = vrot.slane %v439, 5
        %v442 = vsel %vm344, %v437, %v441
        %v444 = vshrl.u32 %v317, 16
        %v446 = vrot.slane %v444, 4
        %v447 = vshll.u32 %v317, 16
        %v449 = vrot.slane %v447, 5
        %v450 = vor.u32 %v446, %v449
        %v451 = vrot.slane %v450, 4
        %v453 = vshll.u32 %v341, 16
        %v455 = vrot.slane %v453, 5
        %v456 = vsel %vm344, %v451, %v455
        %s457 = scalar_lea.vmem %s293, 64
        %v458 = vld [vmem:[%s457] sm:$0xf]
        %v459 = vld [vmem:[%s457 + $0x4] sm:$0xf]
        %v460 = vld [vmem:[%s457 + $0x8] sm:$0xf]
        %v461 = vld [vmem:[%s457 + $0xc] sm:$0xf]
        %v462 = vld [vmem:[%s457 + $0x10] sm:$0xf]
        %v463 = vld [vmem:[%s457 + $0x14] sm:$0xf]
        %v464 = vld [vmem:[%s457 + $0x18] sm:$0xf]
        %v465 = vld [vmem:[%s457 + $0x1c] sm:$0xf]
        %v466 = vld [vmem:[%s457 + $0x20] sm:$0xf]
        %v467 = vld [vmem:[%s457 + $0x24] sm:$0xf]
        %v468 = vld [vmem:[%s457 + $0x28] sm:$0xf]
        %v469 = vld [vmem:[%s457 + $0x2c] sm:$0xf]
        %v470 = vld [vmem:[%s457 + $0x30] sm:$0xf]
        %v471 = vld [vmem:[%s457 + $0x34] sm:$0xf]
        %v472 = vld [vmem:[%s457 + $0x38] sm:$0xf]
        %v473 = vld [vmem:[%s457 + $0x3c] sm:$0xf]
        %v474 = vunpack.c.l.b16 %v358
        %v475 = vunpack.c.l.b16 %v372
        %v476 = vunpack.c.l.b16 %v386
        %v477 = vunpack.c.l.b16 %v400
        %v478 = vunpack.c.l.b16 %v414
        %v479 = vunpack.c.l.b16 %v428
        %v480 = vunpack.c.l.b16 %v442
        %v481 = vunpack.c.l.b16 %v456
        %v482 = vpack.c.b16 %v475, %v474
        %v483 = vpack.c.b16 %v477, %v476
        %v484 = vpack.c.b16 %v479, %v478
        %v485 = vpack.c.b16 %v481, %v480
        %v506 = vunpack.c.l.b16 %v458
        %v507 = vunpack.c.l.b16 %v459
        %v508 = vunpack.c.l.b16 %v460
        %v509 = vunpack.c.l.b16 %v461
        %v510 = vunpack.c.l.b16 %v462
        %v511 = vunpack.c.l.b16 %v463
        %v512 = vunpack.c.l.b16 %v464
        %v513 = vunpack.c.l.b16 %v465
        %v514 = vunpack.c.l.b16 %v466
        %v515 = vunpack.c.l.b16 %v467
        %v516 = vunpack.c.l.b16 %v468
        %v517 = vunpack.c.l.b16 %v469
        %v518 = vunpack.c.l.b16 %v470
        %v519 = vunpack.c.l.b16 %v471
        %v520 = vunpack.c.l.b16 %v472
        %v521 = vunpack.c.l.b16 %v473
        %v522 = vpack.c.b16 %v507, %v506
        %v523 = vpack.c.b16 %v509, %v508
        %v524 = vpack.c.b16 %v511, %v510
        %v525 = vpack.c.b16 %v513, %v512
        %v526 = vpack.c.b16 %v515, %v514
        %v527 = vpack.c.b16 %v517, %v516
        %v528 = vpack.c.b16 %v519, %v518
        %v529 = vpack.c.b16 %v521, %v520
        %538 = vmatpush.bf16.msra.mxu0 %v529
        %539 = vmatpush.bf16.msra.mxu0 %v528
        %540 = vmatpush.bf16.msra.mxu0 %v527
        %541 = vmatpush.bf16.msra.mxu0 %v526
        %542 = vmatpush.bf16.msra.mxu0 %v525
        %543 = vmatpush.bf16.msra.mxu0 %v524
        %544 = vmatpush.bf16.msra.mxu0 %v523
        %545 = vmatpush.bf16.msra.mxu0 %v522
        %546 = vmatmul.bf16.gmra.mxu0 %v482
        %v547 = vpop.f32.mrf.mxu0
        %v548 = vadd.f32 0.0, %v547
        %v549 = vpop.f32.mrf.mxu0
        %v550 = vadd.f32 0.0, %v549
        %551 = vmatmul.bf16.gmra.mxu0 %v483
        %v552 = vpop.f32.mrf.mxu0
        %v553 = vadd.f32 0.0, %v552
        %v554 = vpop.f32.mrf.mxu0
        %v555 = vadd.f32 0.0, %v554
        %556 = vmatmul.bf16.gmra.mxu0 %v484
        %v557 = vpop.f32.mrf.mxu0
        %v558 = vadd.f32 0.0, %v557
        %v559 = vpop.f32.mrf.mxu0
        %v560 = vadd.f32 0.0, %v559
        %561 = vmatmul.bf16.gmra.mxu0 %v485
        %v562 = vpop.f32.mrf.mxu0
        %v563 = vadd.f32 0.0, %v562
        %v564 = vpop.f32.mrf.mxu0
        %v565 = vadd.f32 0.0, %v564
        %566 = vdwg.mxu0
        %v575 = vunpack.c.l.b16 %v310
        %v576 = vunpack.c.l.b16 %v311
        %v577 = vunpack.c.l.b16 %v312
        %v578 = vunpack.c.l.b16 %v313
        %v579 = vunpack.c.l.b16 %v314
        %v580 = vunpack.c.l.b16 %v315
        %v581 = vunpack.c.l.b16 %v316
        %v582 = vunpack.c.l.b16 %v317
        %v583 = vpack.c.b16 %v576, %v575
        %v584 = vpack.c.b16 %v578, %v577
        %v585 = vpack.c.b16 %v580, %v579
        %v586 = vpack.c.b16 %v582, %v581
        %v607 = vunpack.c.l.b16 %v318
        %v608 = vunpack.c.l.b16 %v319
        %v609 = vunpack.c.l.b16 %v320
        %v610 = vunpack.c.l.b16 %v321
        %v611 = vunpack.c.l.b16 %v322
        %v612 = vunpack.c.l.b16 %v323
        %v613 = vunpack.c.l.b16 %v324
        %v614 = vunpack.c.l.b16 %v325
        %v615 = vunpack.c.l.b16 %v326
        %v616 = vunpack.c.l.b16 %v327
        %v617 = vunpack.c.l.b16 %v328
        %v618 = vunpack.c.l.b16 %v329
        %v619 = vunpack.c.l.b16 %v330
        %v620 = vunpack.c.l.b16 %v331
        %v621 = vunpack.c.l.b16 %v332
        %v622 = vunpack.c.l.b16 %v333
        %v623 = vpack.c.b16 %v608, %v607
        %v624 = vpack.c.b16 %v610, %v609
        %v625 = vpack.c.b16 %v612, %v611
        %v626 = vpack.c.b16 %v614, %v613
        %v627 = vpack.c.b16 %v616, %v615
        %v628 = vpack.c.b16 %v618, %v617
        %v629 = vpack.c.b16 %v620, %v619
        %v630 = vpack.c.b16 %v622, %v621
        %639 = vmatpush.bf16.msra.mxu0 %v630
        %640 = vmatpush.bf16.msra.mxu0 %v629
        %641 = vmatpush.bf16.msra.mxu0 %v628
        %642 = vmatpush.bf16.msra.mxu0 %v627
        %643 = vmatpush.bf16.msra.mxu0 %v626
        %644 = vmatpush.bf16.msra.mxu0 %v625
        %645 = vmatpush.bf16.msra.mxu0 %v624
        %646 = vmatpush.bf16.msra.mxu0 %v623
        %647 = vmatmul.bf16.gmra.mxu0 %v583
        %v648 = vpop.f32.mrf.mxu0
        %v649 = vadd.f32 %v548, %v648
        %v650 = vpop.f32.mrf.mxu0
        %v651 = vadd.f32 %v550, %v650
        %652 = vmatmul.bf16.gmra.mxu0 %v584
        %v653 = vpop.f32.mrf.mxu0
        %v654 = vadd.f32 %v553, %v653
        %v655 = vpop.f32.mrf.mxu0
        %v656 = vadd.f32 %v555, %v655
        %657 = vmatmul.bf16.gmra.mxu0 %v585
        %v658 = vpop.f32.mrf.mxu0
        %v659 = vadd.f32 %v558, %v658
        %v660 = vpop.f32.mrf.mxu0
        %v661 = vadd.f32 %v560, %v660
        %662 = vmatmul.bf16.gmra.mxu0 %v586
        %v663 = vpop.f32.mrf.mxu0
        %v664 = vadd.f32 %v563, %v663
        %v665 = vpop.f32.mrf.mxu0
        %v666 = vadd.f32 %v565, %v665
        %667 = vdwg.mxu0
        %v668 = vld [vmem:[%s298] sm:$0xe]
        %v669 = vld [vmem:[%s298 + $0x8] sm:$0xe]
        %v670 = vld [vmem:[%s298 + $0x10] sm:$0xe]
        %v671 = vld [vmem:[%s298 + $0x18] sm:$0xe]
        %v672 = vld [vmem:[%s298 + $0x20] sm:$0xe]
        %v673 = vld [vmem:[%s298 + $0x28] sm:$0xe]
        %v674 = vld [vmem:[%s298 + $0x30] sm:$0xe]
        %v675 = vld [vmem:[%s298 + $0x38] sm:$0xe]
        %vm692 = vcmask 1042432
        %vm693 = vcmask 1046532
        %vm694 = vmor %vm692, %vm693
        %v695 = vrot.slane %v668, 5
        %v696 = vrot.slane %v695, 4
        %v697 = vrot.slane %v334, 5
        %v698 = vsel %vm694, %v696, %v697
        %v699 = vrot.slane %v669, 5
        %v700 = vrot.slane %v699, 4
        %v701 = vrot.slane %v335, 5
        %v702 = vsel %vm694, %v700, %v701
        %v703 = vrot.slane %v670, 5
        %v704 = vrot.slane %v703, 4
        %v705 = vrot.slane %v336, 5
        %v706 = vsel %vm694, %v704, %v705
        %v707 = vrot.slane %v671, 5
        %v708 = vrot.slane %v707, 4
        %v709 = vrot.slane %v337, 5
        %v710 = vsel %vm694, %v708, %v709
        %v711 = vrot.slane %v672, 5
        %v712 = vrot.slane %v711, 4
        %v713 = vrot.slane %v338, 5
        %v714 = vsel %vm694, %v712, %v713
        %v715 = vrot.slane %v673, 5
        %v716 = vrot.slane %v715, 4
        %v717 = vrot.slane %v339, 5
        %v718 = vsel %vm694, %v716, %v717
        %v719 = vrot.slane %v674, 5
        %v720 = vrot.slane %v719, 4
        %v721 = vrot.slane %v340, 5
        %v722 = vsel %vm694, %v720, %v721
        %v723 = vrot.slane %v675, 5
        %v724 = vrot.slane %v723, 4
        %v725 = vrot.slane %v341, 5
        %v726 = vsel %vm694, %v724, %v725
        %s727 = scalar_lea.vmem %s293, 128
        %v728 = vld [vmem:[%s727] sm:$0xf]
        %v729 = vld [vmem:[%s727 + $0x4] sm:$0xf]
        %v730 = vld [vmem:[%s727 + $0x8] sm:$0xf]
        %v731 = vld [vmem:[%s727 + $0xc] sm:$0xf]
        %v732 = vld [vmem:[%s727 + $0x10] sm:$0xf]
        %v733 = vld [vmem:[%s727 + $0x14] sm:$0xf]
        %v734 = vld [vmem:[%s727 + $0x18] sm:$0xf]
        %v735 = vld [vmem:[%s727 + $0x1c] sm:$0xf]
        %v736 = vld [vmem:[%s727 + $0x20] sm:$0xf]
        %v737 = vld [vmem:[%s727 + $0x24] sm:$0xf]
        %v738 = vld [vmem:[%s727 + $0x28] sm:$0xf]
        %v739 = vld [vmem:[%s727 + $0x2c] sm:$0xf]
        %v740 = vld [vmem:[%s727 + $0x30] sm:$0xf]
        %v741 = vld [vmem:[%s727 + $0x34] sm:$0xf]
        %v742 = vld [vmem:[%s727 + $0x38] sm:$0xf]
        %v743 = vld [vmem:[%s727 + $0x3c] sm:$0xf]
        %v744 = vunpack.c.l.b16 %v698
        %v745 = vunpack.c.l.b16 %v702
        %v746 = vunpack.c.l.b16 %v706
        %v747 = vunpack.c.l.b16 %v710
        %v748 = vunpack.c.l.b16 %v714
        %v749 = vunpack.c.l.b16 %v718
        %v750 = vunpack.c.l.b16 %v722
        %v751 = vunpack.c.l.b16 %v726
        %v752 = vpack.c.b16 %v745, %v744
        %v753 = vpack.c.b16 %v747, %v746
        %v754 = vpack.c.b16 %v749, %v748
        %v755 = vpack.c.b16 %v751, %v750
        %v776 = vunpack.c.l.b16 %v728
        %v777 = vunpack.c.l.b16 %v729
        %v778 = vunpack.c.l.b16 %v730
        %v779 = vunpack.c.l.b16 %v731
        %v780 = vunpack.c.l.b16 %v732
        %v781 = vunpack.c.l.b16 %v733
        %v782 = vunpack.c.l.b16 %v734
        %v783 = vunpack.c.l.b16 %v735
        %v784 = vunpack.c.l.b16 %v736
        %v785 = vunpack.c.l.b16 %v737
        %v786 = vunpack.c.l.b16 %v738
        %v787 = vunpack.c.l.b16 %v739
        %v788 = vunpack.c.l.b16 %v740
        %v789 = vunpack.c.l.b16 %v741
        %v790 = vunpack.c.l.b16 %v742
        %v791 = vunpack.c.l.b16 %v743
        %v792 = vpack.c.b16 %v777, %v776
        %v793 = vpack.c.b16 %v779, %v778
        %v794 = vpack.c.b16 %v781, %v780
        %v795 = vpack.c.b16 %v783, %v782
        %v796 = vpack.c.b16 %v785, %v784
        %v797 = vpack.c.b16 %v787, %v786
        %v798 = vpack.c.b16 %v789, %v788
        %v799 = vpack.c.b16 %v791, %v790
        %808 = vmatpush.bf16.msra.mxu0 %v799
        %809 = vmatpush.bf16.msra.mxu0 %v798
        %810 = vmatpush.bf16.msra.mxu0 %v797
        %811 = vmatpush.bf16.msra.mxu0 %v796
        %812 = vmatpush.bf16.msra.mxu0 %v795
        %813 = vmatpush.bf16.msra.mxu0 %v794
        %814 = vmatpush.bf16.msra.mxu0 %v793
        %815 = vmatpush.bf16.msra.mxu0 %v792
        %816 = vmatmul.bf16.gmra.mxu0 %v752
        %v817 = vpop.f32.mrf.mxu0
        %v818 = vadd.f32 0.0, %v817
        %v819 = vpop.f32.mrf.mxu0
        %v820 = vadd.f32 0.0, %v819
        %821 = vmatmul.bf16.gmra.mxu0 %v753
        %v822 = vpop.f32.mrf.mxu0
        %v823 = vadd.f32 0.0, %v822
        %v824 = vpop.f32.mrf.mxu0
        %v825 = vadd.f32 0.0, %v824
        %826 = vmatmul.bf16.gmra.mxu0 %v754
        %v827 = vpop.f32.mrf.mxu0
        %v828 = vadd.f32 0.0, %v827
        %v829 = vpop.f32.mrf.mxu0
        %v830 = vadd.f32 0.0, %v829
        %831 = vmatmul.bf16.gmra.mxu0 %v755
        %v832 = vpop.f32.mrf.mxu0
        %v833 = vadd.f32 0.0, %v832
        %v834 = vpop.f32.mrf.mxu0
        %v835 = vadd.f32 0.0, %v834
        %836 = vdwg.mxu0
        %v837 = vadd.f32 %v649, %v818
        %v838 = vadd.f32 %v651, %v820
        %v839 = vadd.f32 %v654, %v823
        %v840 = vadd.f32 %v656, %v825
        %v841 = vadd.f32 %v659, %v828
        %v842 = vadd.f32 %v661, %v830
        %v843 = vadd.f32 %v664, %v833
        %v844 = vadd.f32 %v666, %v835
        %s845 = scalar_lea.vmem %s298, 8
        %v846 = vld [vmem:[%s845] sm:$0xf]
        %v847 = vld [vmem:[%s845 + $0x8] sm:$0xf]
        %v848 = vld [vmem:[%s845 + $0x10] sm:$0xf]
        %v849 = vld [vmem:[%s845 + $0x18] sm:$0xf]
        %v850 = vld [vmem:[%s845 + $0x20] sm:$0xf]
        %v851 = vld [vmem:[%s845 + $0x28] sm:$0xf]
        %v852 = vld [vmem:[%s845 + $0x30] sm:$0xf]
        %v853 = vld [vmem:[%s845 + $0x38] sm:$0xf]
        %s854 = scalar_lea.vmem %s293, 192
        %v855 = vld [vmem:[%s854] sm:$0xf]
        %v856 = vld [vmem:[%s854 + $0x4] sm:$0xf]
        %v857 = vld [vmem:[%s854 + $0x8] sm:$0xf]
        %v858 = vld [vmem:[%s854 + $0xc] sm:$0xf]
        %v859 = vld [vmem:[%s854 + $0x10] sm:$0xf]
        %v860 = vld [vmem:[%s854 + $0x14] sm:$0xf]
        %v861 = vld [vmem:[%s854 + $0x18] sm:$0xf]
        %v862 = vld [vmem:[%s854 + $0x1c] sm:$0xf]
        %v863 = vld [vmem:[%s854 + $0x20] sm:$0xf]
        %v864 = vld [vmem:[%s854 + $0x24] sm:$0xf]
        %v865 = vld [vmem:[%s854 + $0x28] sm:$0xf]
        %v866 = vld [vmem:[%s854 + $0x2c] sm:$0xf]
        %v867 = vld [vmem:[%s854 + $0x30] sm:$0xf]
        %v868 = vld [vmem:[%s854 + $0x34] sm:$0xf]
        %v869 = vld [vmem:[%s854 + $0x38] sm:$0xf]
        %v870 = vld [vmem:[%s854 + $0x3c] sm:$0xf]
        %v879 = vunpack.c.l.b16 %v846
        %v880 = vunpack.c.l.b16 %v847
        %v881 = vunpack.c.l.b16 %v848
        %v882 = vunpack.c.l.b16 %v849
        %v883 = vunpack.c.l.b16 %v850
        %v884 = vunpack.c.l.b16 %v851
        %v885 = vunpack.c.l.b16 %v852
        %v886 = vunpack.c.l.b16 %v853
        %v887 = vpack.c.b16 %v880, %v879
        %v888 = vpack.c.b16 %v882, %v881
        %v889 = vpack.c.b16 %v884, %v883
        %v890 = vpack.c.b16 %v886, %v885
        %v911 = vunpack.c.l.b16 %v855
        %v912 = vunpack.c.l.b16 %v856
        %v913 = vunpack.c.l.b16 %v857
        %v914 = vunpack.c.l.b16 %v858
        %v915 = vunpack.c.l.b16 %v859
        %v916 = vunpack.c.l.b16 %v860
        %v917 = vunpack.c.l.b16 %v861
        %v918 = vunpack.c.l.b16 %v862
        %v919 = vunpack.c.l.b16 %v863
        %v920 = vunpack.c.l.b16 %v864
        %v921 = vunpack.c.l.b16 %v865
        %v922 = vunpack.c.l.b16 %v866
        %v923 = vunpack.c.l.b16 %v867
        %v924 = vunpack.c.l.b16 %v868
        %v925 = vunpack.c.l.b16 %v869
        %v926 = vunpack.c.l.b16 %v870
        %v927 = vpack.c.b16 %v912, %v911
        %v928 = vpack.c.b16 %v914, %v913
        %v929 = vpack.c.b16 %v916, %v915
        %v930 = vpack.c.b16 %v918, %v917
        %v931 = vpack.c.b16 %v920, %v919
        %v932 = vpack.c.b16 %v922, %v921
        %v933 = vpack.c.b16 %v924, %v923
        %v934 = vpack.c.b16 %v926, %v925
        %943 = vmatpush.bf16.msra.mxu0 %v934
        %944 = vmatpush.bf16.msra.mxu0 %v933
        %945 = vmatpush.bf16.msra.mxu0 %v932
        %946 = vmatpush.bf16.msra.mxu0 %v931
        %947 = vmatpush.bf16.msra.mxu0 %v930
        %948 = vmatpush.bf16.msra.mxu0 %v929
        %949 = vmatpush.bf16.msra.mxu0 %v928
        %950 = vmatpush.bf16.msra.mxu0 %v927
        %951 = vmatmul.bf16.gmra.mxu0 %v887
        %v952 = vpop.f32.mrf.mxu0
        %v953 = vadd.f32 0.0, %v952
        %v954 = vpop.f32.mrf.mxu0
        %v955 = vadd.f32 0.0, %v954
        %956 = vmatmul.bf16.gmra.mxu0 %v888
        %v957 = vpop.f32.mrf.mxu0
        %v958 = vadd.f32 0.0, %v957
        %v959 = vpop.f32.mrf.mxu0
        %v960 = vadd.f32 0.0, %v959
        %961 = vmatmul.bf16.gmra.mxu0 %v889
        %v962 = vpop.f32.mrf.mxu0
        %v963 = vadd.f32 0.0, %v962
        %v964 = vpop.f32.mrf.mxu0
        %v965 = vadd.f32 0.0, %v964
        %966 = vmatmul.bf16.gmra.mxu0 %v890
        %v967 = vpop.f32.mrf.mxu0
        %v968 = vadd.f32 0.0, %v967
        %v969 = vpop.f32.mrf.mxu0
        %v970 = vadd.f32 0.0, %v969
        %971 = vdwg.mxu0
        %v972 = vadd.f32 %v837, %v953
        %v973 = vadd.f32 %v838, %v955
        %v974 = vadd.f32 %v839, %v958
        %v975 = vadd.f32 %v840, %v960
        %v976 = vadd.f32 %v841, %v963
        %v977 = vadd.f32 %v842, %v965
        %v978 = vadd.f32 %v843, %v968
        %v979 = vadd.f32 %v844, %v970
        %v980 = vld [vmem:[%s845] sm:$0xf]
        %v981 = vld [vmem:[%s845 + $0x4] sm:$0x1]
        %v982 = vld [vmem:[%s845 + $0x8] sm:$0xf]
        %v983 = vld [vmem:[%s845 + $0xc] sm:$0x1]
        %v984 = vld [vmem:[%s845 + $0x10] sm:$0xf]
        %v985 = vld [vmem:[%s845 + $0x14] sm:$0x1]
        %v986 = vld [vmem:[%s845 + $0x18] sm:$0xf]
        %v987 = vld [vmem:[%s845 + $0x1c] sm:$0x1]
        %v988 = vld [vmem:[%s845 + $0x20] sm:$0xf]
        %v989 = vld [vmem:[%s845 + $0x24] sm:$0x1]
        %v990 = vld [vmem:[%s845 + $0x28] sm:$0xf]
        %v991 = vld [vmem:[%s845 + $0x2c] sm:$0x1]
        %v992 = vld [vmem:[%s845 + $0x30] sm:$0xf]
        %v993 = vld [vmem:[%s845 + $0x34] sm:$0x1]
        %v994 = vld [vmem:[%s845 + $0x38] sm:$0xf]
        %v995 = vld [vmem:[%s845 + $0x3c] sm:$0x1]
        %v997 = vshrl.u32 %v980, 16
        %v999 = vrot.slane %v997, 4
        %v1000 = vshll.u32 %v980, 16
        %v1002 = vrot.slane %v1000, 5
        %v1003 = vor.u32 %v999, %v1002
        %v1004 = vrot.slane %v1003, 4
        %v1006 = vshll.u32 %v981, 16
        %v1008 = vrot.slane %v1006, 5
        %v1009 = vsel %vm344, %v1004, %v1008
        %v1011 = vshrl.u32 %v982, 16
        %v1013 = vrot.slane %v1011, 4
        %v1014 = vshll.u32 %v982, 16
        %v1016 = vrot.slane %v1014, 5
        %v1017 = vor.u32 %v1013, %v1016
        %v1018 = vrot.slane %v1017, 4
        %v1020 = vshll.u32 %v983, 16
        %v1022 = vrot.slane %v1020, 5
        %v1023 = vsel %vm344, %v1018, %v1022
        %v1025 = vshrl.u32 %v984, 16
        %v1027 = vrot.slane %v1025, 4
        %v1028 = vshll.u32 %v984, 16
        %v1030 = vrot.slane %v1028, 5
        %v1031 = vor.u32 %v1027, %v1030
        %v1032 = vrot.slane %v1031, 4
        %v1034 = vshll.u32 %v985, 16
        %v1036 = vrot.slane %v1034, 5
        %v1037 = vsel %vm344, %v1032, %v1036
        %v1039 = vshrl.u32 %v986, 16
        %v1041 = vrot.slane %v1039, 4
        %v1042 = vshll.u32 %v986, 16
        %v1044 = vrot.slane %v1042, 5
        %v1045 = vor.u32 %v1041, %v1044
        %v1046 = vrot.slane %v1045, 4
        %v1048 = vshll.u32 %v987, 16
        %v1050 = vrot.slane %v1048, 5
        %v1051 = vsel %vm344, %v1046, %v1050
        %v1053 = vshrl.u32 %v988, 16
        %v1055 = vrot.slane %v1053, 4
        %v1056 = vshll.u32 %v988, 16
        %v1058 = vrot.slane %v1056, 5
        %v1059 = vor.u32 %v1055, %v1058
        %v1060 = vrot.slane %v1059, 4
        %v1062 = vshll.u32 %v989, 16
        %v1064 = vrot.slane %v1062, 5
        %v1065 = vsel %vm344, %v1060, %v1064
        %v1067 = vshrl.u32 %v990, 16
        %v1069 = vrot.slane %v1067, 4
        %v1070 = vshll.u32 %v990, 16
        %v1072 = vrot.slane %v1070, 5
        %v1073 = vor.u32 %v1069, %v1072
        %v1074 = vrot.slane %v1073, 4
        %v1076 = vshll.u32 %v991, 16
        %v1078 = vrot.slane %v1076, 5
        %v1079 = vsel %vm344, %v1074, %v1078
        %v1081 = vshrl.u32 %v992, 16
        %v1083 = vrot.slane %v1081, 4
        %v1084 = vshll.u32 %v992, 16
        %v1086 = vrot.slane %v1084, 5
        %v1087 = vor.u32 %v1083, %v1086
        %v1088 = vrot.slane %v1087, 4
        %v1090 = vshll.u32 %v993, 16
        %v1092 = vrot.slane %v1090, 5
        %v1093 = vsel %vm344, %v1088, %v1092
        %v1095 = vshrl.u32 %v994, 16
        %v1097 = vrot.slane %v1095, 4
        %v1098 = vshll.u32 %v994, 16
        %v1100 = vrot.slane %v1098, 5
        %v1101 = vor.u32 %v1097, %v1100
        %v1102 = vrot.slane %v1101, 4
        %v1104 = vshll.u32 %v995, 16
        %v1106 = vrot.slane %v1104, 5
        %v1107 = vsel %vm344, %v1102, %v1106
        %s1108 = scalar_lea.vmem %s293, 256
        %v1109 = vld [vmem:[%s1108] sm:$0xf]
        %v1110 = vld [vmem:[%s1108 + $0x4] sm:$0xf]
        %v1111 = vld [vmem:[%s1108 + $0x8] sm:$0xf]
        %v1112 = vld [vmem:[%s1108 + $0xc] sm:$0xf]
        %v1113 = vld [vmem:[%s1108 + $0x10] sm:$0xf]
        %v1114 = vld [vmem:[%s1108 + $0x14] sm:$0xf]
        %v1115 = vld [vmem:[%s1108 + $0x18] sm:$0xf]
        %v1116 = vld [vmem:[%s1108 + $0x1c] sm:$0xf]
        %v1117 = vld [vmem:[%s1108 + $0x20] sm:$0xf]
        %v1118 = vld [vmem:[%s1108 + $0x24] sm:$0xf]
        %v1119 = vld [vmem:[%s1108 + $0x28] sm:$0xf]
        %v1120 = vld [vmem:[%s1108 + $0x2c] sm:$0xf]
        %v1121 = vld [vmem:[%s1108 + $0x30] sm:$0xf]
        %v1122 = vld [vmem:[%s1108 + $0x34] sm:$0xf]
        %v1123 = vld [vmem:[%s1108 + $0x38] sm:$0xf]
        %v1124 = vld [vmem:[%s1108 + $0x3c] sm:$0xf]
        %v1125 = vunpack.c.l.b16 %v1009
        %v1126 = vunpack.c.l.b16 %v1023
        %v1127 = vunpack.c.l.b16 %v1037
        %v1128 = vunpack.c.l.b16 %v1051
        %v1129 = vunpack.c.l.b16 %v1065
        %v1130 = vunpack.c.l.b16 %v1079
        %v1131 = vunpack.c.l.b16 %v1093
        %v1132 = vunpack.c.l.b16 %v1107
        %v1133 = vpack.c.b16 %v1126, %v1125
        %v1134 = vpack.c.b16 %v1128, %v1127
        %v1135 = vpack.c.b16 %v1130, %v1129
        %v1136 = vpack.c.b16 %v1132, %v1131
        %v1157 = vunpack.c.l.b16 %v1109
        %v1158 = vunpack.c.l.b16 %v1110
        %v1159 = vunpack.c.l.b16 %v1111
        %v1160 = vunpack.c.l.b16 %v1112
        %v1161 = vunpack.c.l.b16 %v1113
        %v1162 = vunpack.c.l.b16 %v1114
        %v1163 = vunpack.c.l.b16 %v1115
        %v1164 = vunpack.c.l.b16 %v1116
        %v1165 = vunpack.c.l.b16 %v1117
        %v1166 = vunpack.c.l.b16 %v1118
        %v1167 = vunpack.c.l.b16 %v1119
        %v1168 = vunpack.c.l.b16 %v1120
        %v1169 = vunpack.c.l.b16 %v1121
        %v1170 = vunpack.c.l.b16 %v1122
        %v1171 = vunpack.c.l.b16 %v1123
        %v1172 = vunpack.c.l.b16 %v1124
        %v1173 = vpack.c.b16 %v1158, %v1157
        %v1174 = vpack.c.b16 %v1160, %v1159
        %v1175 = vpack.c.b16 %v1162, %v1161
        %v1176 = vpack.c.b16 %v1164, %v1163
        %v1177 = vpack.c.b16 %v1166, %v1165
        %v1178 = vpack.c.b16 %v1168, %v1167
        %v1179 = vpack.c.b16 %v1170, %v1169
        %v1180 = vpack.c.b16 %v1172, %v1171
        %1189 = vmatpush.bf16.msra.mxu0 %v1180
        %1190 = vmatpush.bf16.msra.mxu0 %v1179
        %1191 = vmatpush.bf16.msra.mxu0 %v1178
        %1192 = vmatpush.bf16.msra.mxu0 %v1177
        %1193 = vmatpush.bf16.msra.mxu0 %v1176
        %1194 = vmatpush.bf16.msra.mxu0 %v1175
        %1195 = vmatpush.bf16.msra.mxu0 %v1174
        %1196 = vmatpush.bf16.msra.mxu0 %v1173
        %1197 = vmatmul.bf16.gmra.mxu0 %v1133
        %v1198 = vpop.f32.mrf.mxu0
        %v1199 = vadd.f32 0.0, %v1198
        %v1200 = vpop.f32.mrf.mxu0
        %v1201 = vadd.f32 0.0, %v1200
        %1202 = vmatmul.bf16.gmra.mxu0 %v1134
        %v1203 = vpop.f32.mrf.mxu0
        %v1204 = vadd.f32 0.0, %v1203
        %v1205 = vpop.f32.mrf.mxu0
        %v1206 = vadd.f32 0.0, %v1205
        %1207 = vmatmul.bf16.gmra.mxu0 %v1135
        %v1208 = vpop.f32.mrf.mxu0
        %v1209 = vadd.f32 0.0, %v1208
        %v1210 = vpop.f32.mrf.mxu0
        %v1211 = vadd.f32 0.0, %v1210
        %1212 = vmatmul.bf16.gmra.mxu0 %v1136
        %v1213 = vpop.f32.mrf.mxu0
        %v1214 = vadd.f32 0.0, %v1213
        %v1215 = vpop.f32.mrf.mxu0
        %v1216 = vadd.f32 0.0, %v1215
        %1217 = vdwg.mxu0
        %v1218 = vadd.f32 %v972, %v1199
        %v1219 = vadd.f32 %v973, %v1201
        %v1220 = vadd.f32 %v974, %v1204
        %v1221 = vadd.f32 %v975, %v1206
        %v1222 = vadd.f32 %v976, %v1209
        %v1223 = vadd.f32 %v977, %v1211
        %v1224 = vadd.f32 %v978, %v1214
        %v1225 = vadd.f32 %v979, %v1216
        %v1226 = vld [vmem:[%s845] sm:$0xe]
        %v1227 = vld [vmem:[%s845 + $0x8] sm:$0xe]
        %v1228 = vld [vmem:[%s845 + $0x10] sm:$0xe]
        %v1229 = vld [vmem:[%s845 + $0x18] sm:$0xe]
        %v1230 = vld [vmem:[%s845 + $0x20] sm:$0xe]
        %v1231 = vld [vmem:[%s845 + $0x28] sm:$0xe]
        %v1232 = vld [vmem:[%s845 + $0x30] sm:$0xe]
        %v1233 = vld [vmem:[%s845 + $0x38] sm:$0xe]
        %v1250 = vrot.slane %v1226, 5
        %v1251 = vrot.slane %v1250, 4
        %v1252 = vrot.slane %v981, 5
        %v1253 = vsel %vm694, %v1251, %v1252
        %v1254 = vrot.slane %v1227, 5
        %v1255 = vrot.slane %v1254, 4
        %v1256 = vrot.slane %v983, 5
        %v1257 = vsel %vm694, %v1255, %v1256
        %v1258 = vrot.slane %v1228, 5
        %v1259 = vrot.slane %v1258, 4
        %v1260 = vrot.slane %v985, 5
        %v1261 = vsel %vm694, %v1259, %v1260
        %v1262 = vrot.slane %v1229, 5
        %v1263 = vrot.slane %v1262, 4
        %v1264 = vrot.slane %v987, 5
        %v1265 = vsel %vm694, %v1263, %v1264
        %v1266 = vrot.slane %v1230, 5
        %v1267 = vrot.slane %v1266, 4
        %v1268 = vrot.slane %v989, 5
        %v1269 = vsel %vm694, %v1267, %v1268
        %v1270 = vrot.slane %v1231, 5
        %v1271 = vrot.slane %v1270, 4
        %v1272 = vrot.slane %v991, 5
        %v1273 = vsel %vm694, %v1271, %v1272
        %v1274 = vrot.slane %v1232, 5
        %v1275 = vrot.slane %v1274, 4
        %v1276 = vrot.slane %v993, 5
        %v1277 = vsel %vm694, %v1275, %v1276
        %v1278 = vrot.slane %v1233, 5
        %v1279 = vrot.slane %v1278, 4
        %v1280 = vrot.slane %v995, 5
        %v1281 = vsel %vm694, %v1279, %v1280
        %s1282 = scalar_lea.vmem %s293, 320
        %v1283 = vld [vmem:[%s1282] sm:$0xf]
        %v1284 = vld [vmem:[%s1282 + $0x4] sm:$0xf]
        %v1285 = vld [vmem:[%s1282 + $0x8] sm:$0xf]
        %v1286 = vld [vmem:[%s1282 + $0xc] sm:$0xf]
        %v1287 = vld [vmem:[%s1282 + $0x10] sm:$0xf]
        %v1288 = vld [vmem:[%s1282 + $0x14] sm:$0xf]
        %v1289 = vld [vmem:[%s1282 + $0x18] sm:$0xf]
        %v1290 = vld [vmem:[%s1282 + $0x1c] sm:$0xf]
        %v1291 = vld [vmem:[%s1282 + $0x20] sm:$0xf]
        %v1292 = vld [vmem:[%s1282 + $0x24] sm:$0xf]
        %v1293 = vld [vmem:[%s1282 + $0x28] sm:$0xf]
        %v1294 = vld [vmem:[%s1282 + $0x2c] sm:$0xf]
        %v1295 = vld [vmem:[%s1282 + $0x30] sm:$0xf]
        %v1296 = vld [vmem:[%s1282 + $0x34] sm:$0xf]
        %v1297 = vld [vmem:[%s1282 + $0x38] sm:$0xf]
        %v1298 = vld [vmem:[%s1282 + $0x3c] sm:$0xf]
        %v1299 = vunpack.c.l.b16 %v1253
        %v1300 = vunpack.c.l.b16 %v1257
        %v1301 = vunpack.c.l.b16 %v1261
        %v1302 = vunpack.c.l.b16 %v1265
        %v1303 = vunpack.c.l.b16 %v1269
        %v1304 = vunpack.c.l.b16 %v1273
        %v1305 = vunpack.c.l.b16 %v1277
        %v1306 = vunpack.c.l.b16 %v1281
        %v1307 = vpack.c.b16 %v1300, %v1299
        %v1308 = vpack.c.b16 %v1302, %v1301
        %v1309 = vpack.c.b16 %v1304, %v1303
        %v1310 = vpack.c.b16 %v1306, %v1305
        %v1331 = vunpack.c.l.b16 %v1283
        %v1332 = vunpack.c.l.b16 %v1284
        %v1333 = vunpack.c.l.b16 %v1285
        %v1334 = vunpack.c.l.b16 %v1286
        %v1335 = vunpack.c.l.b16 %v1287
        %v1336 = vunpack.c.l.b16 %v1288
        %v1337 = vunpack.c.l.b16 %v1289
        %v1338 = vunpack.c.l.b16 %v1290
        %v1339 = vunpack.c.l.b16 %v1291
        %v1340 = vunpack.c.l.b16 %v1292
        %v1341 = vunpack.c.l.b16 %v1293
        %v1342 = vunpack.c.l.b16 %v1294
        %v1343 = vunpack.c.l.b16 %v1295
        %v1344 = vunpack.c.l.b16 %v1296
        %v1345 = vunpack.c.l.b16 %v1297
        %v1346 = vunpack.c.l.b16 %v1298
        %v1347 = vpack.c.b16 %v1332, %v1331
        %v1348 = vpack.c.b16 %v1334, %v1333
        %v1349 = vpack.c.b16 %v1336, %v1335
        %v1350 = vpack.c.b16 %v1338, %v1337
        %v1351 = vpack.c.b16 %v1340, %v1339
        %v1352 = vpack.c.b16 %v1342, %v1341
        %v1353 = vpack.c.b16 %v1344, %v1343
        %v1354 = vpack.c.b16 %v1346, %v1345
        %1363 = vmatpush.bf16.msra.mxu0 %v1354
        %1364 = vmatpush.bf16.msra.mxu0 %v1353
        %1365 = vmatpush.bf16.msra.mxu0 %v1352
        %1366 = vmatpush.bf16.msra.mxu0 %v1351
        %1367 = vmatpush.bf16.msra.mxu0 %v1350
        %1368 = vmatpush.bf16.msra.mxu0 %v1349
        %1369 = vmatpush.bf16.msra.mxu0 %v1348
        %1370 = vmatpush.bf16.msra.mxu0 %v1347
        %1371 = vmatmul.bf16.gmra.mxu0 %v1307
        %v1372 = vpop.f32.mrf.mxu0
        %v1373 = vadd.f32 0.0, %v1372
        %v1374 = vpop.f32.mrf.mxu0
        %v1375 = vadd.f32 0.0, %v1374
        %1376 = vmatmul.bf16.gmra.mxu0 %v1308
        %v1377 = vpop.f32.mrf.mxu0
        %v1378 = vadd.f32 0.0, %v1377
        %v1379 = vpop.f32.mrf.mxu0
        %v1380 = vadd.f32 0.0, %v1379
        %1381 = vmatmul.bf16.gmra.mxu0 %v1309
        %v1382 = vpop.f32.mrf.mxu0
        %v1383 = vadd.f32 0.0, %v1382
        %v1384 = vpop.f32.mrf.mxu0
        %v1385 = vadd.f32 0.0, %v1384
        %1386 = vmatmul.bf16.gmra.mxu0 %v1310
        %v1387 = vpop.f32.mrf.mxu0
        %v1388 = vadd.f32 0.0, %v1387
        %v1389 = vpop.f32.mrf.mxu0
        %v1390 = vadd.f32 0.0, %v1389
        %1391 = vdwg.mxu0
        %v1392 = vadd.f32 %v1218, %v1373
        %v1393 = vadd.f32 %v1219, %v1375
        %v1394 = vadd.f32 %v1220, %v1378
        %v1395 = vadd.f32 %v1221, %v1380
        %v1396 = vadd.f32 %v1222, %v1383
        %v1397 = vadd.f32 %v1223, %v1385
        %v1398 = vadd.f32 %v1224, %v1388
        %v1399 = vadd.f32 %v1225, %v1390
        %s1400 = scalar_lea.vmem %s298, 16
        %v1401 = vld [vmem:[%s1400] sm:$0xf]
        %v1402 = vld [vmem:[%s1400 + $0x8] sm:$0xf]
        %v1403 = vld [vmem:[%s1400 + $0x10] sm:$0xf]
        %v1404 = vld [vmem:[%s1400 + $0x18] sm:$0xf]
        %v1405 = vld [vmem:[%s1400 + $0x20] sm:$0xf]
        %v1406 = vld [vmem:[%s1400 + $0x28] sm:$0xf]
        %v1407 = vld [vmem:[%s1400 + $0x30] sm:$0xf]
        %v1408 = vld [vmem:[%s1400 + $0x38] sm:$0xf]
        %s1409 = scalar_lea.vmem %s293, 384
        %v1410 = vld [vmem:[%s1409] sm:$0xf]
        %v1411 = vld [vmem:[%s1409 + $0x4] sm:$0xf]
        %v1412 = vld [vmem:[%s1409 + $0x8] sm:$0xf]
        %v1413 = vld [vmem:[%s1409 + $0xc] sm:$0xf]
        %v1414 = vld [vmem:[%s1409 + $0x10] sm:$0xf]
        %v1415 = vld [vmem:[%s1409 + $0x14] sm:$0xf]
        %v1416 = vld [vmem:[%s1409 + $0x18] sm:$0xf]
        %v1417 = vld [vmem:[%s1409 + $0x1c] sm:$0xf]
        %v1418 = vld [vmem:[%s1409 + $0x20] sm:$0xf]
        %v1419 = vld [vmem:[%s1409 + $0x24] sm:$0xf]
        %v1420 = vld [vmem:[%s1409 + $0x28] sm:$0xf]
        %v1421 = vld [vmem:[%s1409 + $0x2c] sm:$0xf]
        %v1422 = vld [vmem:[%s1409 + $0x30] sm:$0xf]
        %v1423 = vld [vmem:[%s1409 + $0x34] sm:$0xf]
        %v1424 = vld [vmem:[%s1409 + $0x38] sm:$0xf]
        %v1425 = vld [vmem:[%s1409 + $0x3c] sm:$0xf]
        %v1434 = vunpack.c.l.b16 %v1401
        %v1435 = vunpack.c.l.b16 %v1402
        %v1436 = vunpack.c.l.b16 %v1403
        %v1437 = vunpack.c.l.b16 %v1404
        %v1438 = vunpack.c.l.b16 %v1405
        %v1439 = vunpack.c.l.b16 %v1406
        %v1440 = vunpack.c.l.b16 %v1407
        %v1441 = vunpack.c.l.b16 %v1408
        %v1442 = vpack.c.b16 %v1435, %v1434
        %v1443 = vpack.c.b16 %v1437, %v1436
        %v1444 = vpack.c.b16 %v1439, %v1438
        %v1445 = vpack.c.b16 %v1441, %v1440
        %v1466 = vunpack.c.l.b16 %v1410
        %v1467 = vunpack.c.l.b16 %v1411
        %v1468 = vunpack.c.l.b16 %v1412
        %v1469 = vunpack.c.l.b16 %v1413
        %v1470 = vunpack.c.l.b16 %v1414
        %v1471 = vunpack.c.l.b16 %v1415
        %v1472 = vunpack.c.l.b16 %v1416
        %v1473 = vunpack.c.l.b16 %v1417
        %v1474 = vunpack.c.l.b16 %v1418
        %v1475 = vunpack.c.l.b16 %v1419
        %v1476 = vunpack.c.l.b16 %v1420
        %v1477 = vunpack.c.l.b16 %v1421
        %v1478 = vunpack.c.l.b16 %v1422
        %v1479 = vunpack.c.l.b16 %v1423
        %v1480 = vunpack.c.l.b16 %v1424
        %v1481 = vunpack.c.l.b16 %v1425
        %v1482 = vpack.c.b16 %v1467, %v1466
        %v1483 = vpack.c.b16 %v1469, %v1468
        %v1484 = vpack.c.b16 %v1471, %v1470
        %v1485 = vpack.c.b16 %v1473, %v1472
        %v1486 = vpack.c.b16 %v1475, %v1474
        %v1487 = vpack.c.b16 %v1477, %v1476
        %v1488 = vpack.c.b16 %v1479, %v1478
        %v1489 = vpack.c.b16 %v1481, %v1480
        %1498 = vmatpush.bf16.msra.mxu0 %v1489
        %1499 = vmatpush.bf16.msra.mxu0 %v1488
        %1500 = vmatpush.bf16.msra.mxu0 %v1487
        %1501 = vmatpush.bf16.msra.mxu0 %v1486
        %1502 = vmatpush.bf16.msra.mxu0 %v1485
        %1503 = vmatpush.bf16.msra.mxu0 %v1484
        %1504 = vmatpush.bf16.msra.mxu0 %v1483
        %1505 = vmatpush.bf16.msra.mxu0 %v1482
        %1506 = vmatmul.bf16.gmra.mxu0 %v1442
        %v1507 = vpop.f32.mrf.mxu0
        %v1508 = vadd.f32 0.0, %v1507
        %v1509 = vpop.f32.mrf.mxu0
        %v1510 = vadd.f32 0.0, %v1509
        %1511 = vmatmul.bf16.gmra.mxu0 %v1443
        %v1512 = vpop.f32.mrf.mxu0
        %v1513 = vadd.f32 0.0, %v1512
        %v1514 = vpop.f32.mrf.mxu0
        %v1515 = vadd.f32 0.0, %v1514
        %1516 = vmatmul.bf16.gmra.mxu0 %v1444
        %v1517 = vpop.f32.mrf.mxu0
        %v1518 = vadd.f32 0.0, %v1517
        %v1519 = vpop.f32.mrf.mxu0
        %v1520 = vadd.f32 0.0, %v1519
        %1521 = vmatmul.bf16.gmra.mxu0 %v1445
        %v1522 = vpop.f32.mrf.mxu0
        %v1523 = vadd.f32 0.0, %v1522
        %v1524 = vpop.f32.mrf.mxu0
        %v1525 = vadd.f32 0.0, %v1524
        %1526 = vdwg.mxu0
        %v1527 = vadd.f32 %v1392, %v1508
        %v1528 = vadd.f32 %v1393, %v1510
        %v1529 = vadd.f32 %v1394, %v1513
        %v1530 = vadd.f32 %v1395, %v1515
        %v1531 = vadd.f32 %v1396, %v1518
        %v1532 = vadd.f32 %v1397, %v1520
        %v1533 = vadd.f32 %v1398, %v1523
        %v1534 = vadd.f32 %v1399, %v1525
        %v1535 = vld [vmem:[%s1400] sm:$0xf]
        %v1536 = vld [vmem:[%s1400 + $0x4] sm:$0x1]
        %v1537 = vld [vmem:[%s1400 + $0x8] sm:$0xf]
        %v1538 = vld [vmem:[%s1400 + $0xc] sm:$0x1]
        %v1539 = vld [vmem:[%s1400 + $0x10] sm:$0xf]
        %v1540 = vld [vmem:[%s1400 + $0x14] sm:$0x1]
        %v1541 = vld [vmem:[%s1400 + $0x18] sm:$0xf]
        %v1542 = vld [vmem:[%s1400 + $0x1c] sm:$0x1]
        %v1543 = vld [vmem:[%s1400 + $0x20] sm:$0xf]
        %v1544 = vld [vmem:[%s1400 + $0x24] sm:$0x1]
        %v1545 = vld [vmem:[%s1400 + $0x28] sm:$0xf]
        %v1546 = vld [vmem:[%s1400 + $0x2c] sm:$0x1]
        %v1547 = vld [vmem:[%s1400 + $0x30] sm:$0xf]
        %v1548 = vld [vmem:[%s1400 + $0x34] sm:$0x1]
        %v1549 = vld [vmem:[%s1400 + $0x38] sm:$0xf]
        %v1550 = vld [vmem:[%s1400 + $0x3c] sm:$0x1]
        %v1552 = vshrl.u32 %v1535, 16
        %v1554 = vrot.slane %v1552, 4
        %v1555 = vshll.u32 %v1535, 16
        %v1557 = vrot.slane %v1555, 5
        %v1558 = vor.u32 %v1554, %v1557
        %v1559 = vrot.slane %v1558, 4
        %v1561 = vshll.u32 %v1536, 16
        %v1563 = vrot.slane %v1561, 5
        %v1564 = vsel %vm344, %v1559, %v1563
        %v1566 = vshrl.u32 %v1537, 16
        %v1568 = vrot.slane %v1566, 4
        %v1569 = vshll.u32 %v1537, 16
        %v1571 = vrot.slane %v1569, 5
        %v1572 = vor.u32 %v1568, %v1571
        %v1573 = vrot.slane %v1572, 4
        %v1575 = vshll.u32 %v1538, 16
        %v1577 = vrot.slane %v1575, 5
        %v1578 = vsel %vm344, %v1573, %v1577
        %v1580 = vshrl.u32 %v1539, 16
        %v1582 = vrot.slane %v1580, 4
        %v1583 = vshll.u32 %v1539, 16
        %v1585 = vrot.slane %v1583, 5
        %v1586 = vor.u32 %v1582, %v1585
        %v1587 = vrot.slane %v1586, 4
        %v1589 = vshll.u32 %v1540, 16
        %v1591 = vrot.slane %v1589, 5
        %v1592 = vsel %vm344, %v1587, %v1591
        %v1594 = vshrl.u32 %v1541, 16
        %v1596 = vrot.slane %v1594, 4
        %v1597 = vshll.u32 %v1541, 16
        %v1599 = vrot.slane %v1597, 5
        %v1600 = vor.u32 %v1596, %v1599
        %v1601 = vrot.slane %v1600, 4
        %v1603 = vshll.u32 %v1542, 16
        %v1605 = vrot.slane %v1603, 5
        %v1606 = vsel %vm344, %v1601, %v1605
        %v1608 = vshrl.u32 %v1543, 16
        %v1610 = vrot.slane %v1608, 4
        %v1611 = vshll.u32 %v1543, 16
        %v1613 = vrot.slane %v1611, 5
        %v1614 = vor.u32 %v1610, %v1613
        %v1615 = vrot.slane %v1614, 4
        %v1617 = vshll.u32 %v1544, 16
        %v1619 = vrot.slane %v1617, 5
        %v1620 = vsel %vm344, %v1615, %v1619
        %v1622 = vshrl.u32 %v1545, 16
        %v1624 = vrot.slane %v1622, 4
        %v1625 = vshll.u32 %v1545, 16
        %v1627 = vrot.slane %v1625, 5
        %v1628 = vor.u32 %v1624, %v1627
        %v1629 = vrot.slane %v1628, 4
        %v1631 = vshll.u32 %v1546, 16
        %v1633 = vrot.slane %v1631, 5
        %v1634 = vsel %vm344, %v1629, %v1633
        %v1636 = vshrl.u32 %v1547, 16
        %v1638 = vrot.slane %v1636, 4
        %v1639 = vshll.u32 %v1547, 16
        %v1641 = vrot.slane %v1639, 5
        %v1642 = vor.u32 %v1638, %v1641
        %v1643 = vrot.slane %v1642, 4
        %v1645 = vshll.u32 %v1548, 16
        %v1647 = vrot.slane %v1645, 5
        %v1648 = vsel %vm344, %v1643, %v1647
        %v1650 = vshrl.u32 %v1549, 16
        %v1652 = vrot.slane %v1650, 4
        %v1653 = vshll.u32 %v1549, 16
        %v1655 = vrot.slane %v1653, 5
        %v1656 = vor.u32 %v1652, %v1655
        %v1657 = vrot.slane %v1656, 4
        %v1659 = vshll.u32 %v1550, 16
        %v1661 = vrot.slane %v1659, 5
        %v1662 = vsel %vm344, %v1657, %v1661
        %s1663 = scalar_lea.vmem %s293, 448
        %v1664 = vld [vmem:[%s1663] sm:$0xf]
        %v1665 = vld [vmem:[%s1663 + $0x4] sm:$0xf]
        %v1666 = vld [vmem:[%s1663 + $0x8] sm:$0xf]
        %v1667 = vld [vmem:[%s1663 + $0xc] sm:$0xf]
        %v1668 = vld [vmem:[%s1663 + $0x10] sm:$0xf]
        %v1669 = vld [vmem:[%s1663 + $0x14] sm:$0xf]
        %v1670 = vld [vmem:[%s1663 + $0x18] sm:$0xf]
        %v1671 = vld [vmem:[%s1663 + $0x1c] sm:$0xf]
        %v1672 = vld [vmem:[%s1663 + $0x20] sm:$0xf]
        %v1673 = vld [vmem:[%s1663 + $0x24] sm:$0xf]
        %v1674 = vld [vmem:[%s1663 + $0x28] sm:$0xf]
        %v1675 = vld [vmem:[%s1663 + $0x2c] sm:$0xf]
        %v1676 = vld [vmem:[%s1663 + $0x30] sm:$0xf]
        %v1677 = vld [vmem:[%s1663 + $0x34] sm:$0xf]
        %v1678 = vld [vmem:[%s1663 + $0x38] sm:$0xf]
        %v1679 = vld [vmem:[%s1663 + $0x3c] sm:$0xf]
        %v1680 = vunpack.c.l.b16 %v1564
        %v1681 = vunpack.c.l.b16 %v1578
        %v1682 = vunpack.c.l.b16 %v1592
        %v1683 = vunpack.c.l.b16 %v1606
        %v1684 = vunpack.c.l.b16 %v1620
        %v1685 = vunpack.c.l.b16 %v1634
        %v1686 = vunpack.c.l.b16 %v1648
        %v1687 = vunpack.c.l.b16 %v1662
        %v1688 = vpack.c.b16 %v1681, %v1680
        %v1689 = vpack.c.b16 %v1683, %v1682
        %v1690 = vpack.c.b16 %v1685, %v1684
        %v1691 = vpack.c.b16 %v1687, %v1686
        %v1712 = vunpack.c.l.b16 %v1664
        %v1713 = vunpack.c.l.b16 %v1665
        %v1714 = vunpack.c.l.b16 %v1666
        %v1715 = vunpack.c.l.b16 %v1667
        %v1716 = vunpack.c.l.b16 %v1668
        %v1717 = vunpack.c.l.b16 %v1669
        %v1718 = vunpack.c.l.b16 %v1670
        %v1719 = vunpack.c.l.b16 %v1671
        %v1720 = vunpack.c.l.b16 %v1672
        %v1721 = vunpack.c.l.b16 %v1673
        %v1722 = vunpack.c.l.b16 %v1674
        %v1723 = vunpack.c.l.b16 %v1675
        %v1724 = vunpack.c.l.b16 %v1676
        %v1725 = vunpack.c.l.b16 %v1677
        %v1726 = vunpack.c.l.b16 %v1678
        %v1727 = vunpack.c.l.b16 %v1679
        %v1728 = vpack.c.b16 %v1713, %v1712
        %v1729 = vpack.c.b16 %v1715, %v1714
        %v1730 = vpack.c.b16 %v1717, %v1716
        %v1731 = vpack.c.b16 %v1719, %v1718
        %v1732 = vpack.c.b16 %v1721, %v1720
        %v1733 = vpack.c.b16 %v1723, %v1722
        %v1734 = vpack.c.b16 %v1725, %v1724
        %v1735 = vpack.c.b16 %v1727, %v1726
        %1744 = vmatpush.bf16.msra.mxu0 %v1735
        %1745 = vmatpush.bf16.msra.mxu0 %v1734
        %1746 = vmatpush.bf16.msra.mxu0 %v1733
        %1747 = vmatpush.bf16.msra.mxu0 %v1732
        %1748 = vmatpush.bf16.msra.mxu0 %v1731
        %1749 = vmatpush.bf16.msra.mxu0 %v1730
        %1750 = vmatpush.bf16.msra.mxu0 %v1729
        %1751 = vmatpush.bf16.msra.mxu0 %v1728
        %1752 = vmatmul.bf16.gmra.mxu0 %v1688
        %v1753 = vpop.f32.mrf.mxu0
        %v1754 = vadd.f32 0.0, %v1753
        %v1755 = vpop.f32.mrf.mxu0
        %v1756 = vadd.f32 0.0, %v1755
        %1757 = vmatmul.bf16.gmra.mxu0 %v1689
        %v1758 = vpop.f32.mrf.mxu0
        %v1759 = vadd.f32 0.0, %v1758
        %v1760 = vpop.f32.mrf.mxu0
        %v1761 = vadd.f32 0.0, %v1760
        %1762 = vmatmul.bf16.gmra.mxu0 %v1690
        %v1763 = vpop.f32.mrf.mxu0
        %v1764 = vadd.f32 0.0, %v1763
        %v1765 = vpop.f32.mrf.mxu0
        %v1766 = vadd.f32 0.0, %v1765
        %1767 = vmatmul.bf16.gmra.mxu0 %v1691
        %v1768 = vpop.f32.mrf.mxu0
        %v1769 = vadd.f32 0.0, %v1768
        %v1770 = vpop.f32.mrf.mxu0
        %v1771 = vadd.f32 0.0, %v1770
        %1772 = vdwg.mxu0
        %v1773 = vadd.f32 %v1527, %v1754
        %v1774 = vadd.f32 %v1528, %v1756
        %v1775 = vadd.f32 %v1529, %v1759
        %v1776 = vadd.f32 %v1530, %v1761
        %v1777 = vadd.f32 %v1531, %v1764
        %v1778 = vadd.f32 %v1532, %v1766
        %v1779 = vadd.f32 %v1533, %v1769
        %v1780 = vadd.f32 %v1534, %v1771
        %v1781 = vld [vmem:[%s1400] sm:$0xe]
        %v1782 = vld [vmem:[%s1400 + $0x8] sm:$0xe]
        %v1783 = vld [vmem:[%s1400 + $0x10] sm:$0xe]
        %v1784 = vld [vmem:[%s1400 + $0x18] sm:$0xe]
        %v1785 = vld [vmem:[%s1400 + $0x20] sm:$0xe]
        %v1786 = vld [vmem:[%s1400 + $0x28] sm:$0xe]
        %v1787 = vld [vmem:[%s1400 + $0x30] sm:$0xe]
        %v1788 = vld [vmem:[%s1400 + $0x38] sm:$0xe]
        %v1805 = vrot.slane %v1781, 5
        %v1806 = vrot.slane %v1805, 4
        %v1807 = vrot.slane %v1536, 5
        %v1808 = vsel %vm694, %v1806, %v1807
        %v1809 = vrot.slane %v1782, 5
        %v1810 = vrot.slane %v1809, 4
        %v1811 = vrot.slane %v1538, 5
        %v1812 = vsel %vm694, %v1810, %v1811
        %v1813 = vrot.slane %v1783, 5
        %v1814 = vrot.slane %v1813, 4
        %v1815 = vrot.slane %v1540, 5
        %v1816 = vsel %vm694, %v1814, %v1815
        %v1817 = vrot.slane %v1784, 5
        %v1818 = vrot.slane %v1817, 4
        %v1819 = vrot.slane %v1542, 5
        %v1820 = vsel %vm694, %v1818, %v1819
        %v1821 = vrot.slane %v1785, 5
        %v1822 = vrot.slane %v1821, 4
        %v1823 = vrot.slane %v1544, 5
        %v1824 = vsel %vm694, %v1822, %v1823
        %v1825 = vrot.slane %v1786, 5
        %v1826 = vrot.slane %v1825, 4
        %v1827 = vrot.slane %v1546, 5
        %v1828 = vsel %vm694, %v1826, %v1827
        %v1829 = vrot.slane %v1787, 5
        %v1830 = vrot.slane %v1829, 4
        %v1831 = vrot.slane %v1548, 5
        %v1832 = vsel %vm694, %v1830, %v1831
        %v1833 = vrot.slane %v1788, 5
        %v1834 = vrot.slane %v1833, 4
        %v1835 = vrot.slane %v1550, 5
        %v1836 = vsel %vm694, %v1834, %v1835
        %s1837 = scalar_lea.vmem %s293, 512
        %v1838 = vld [vmem:[%s1837] sm:$0xf]
        %v1839 = vld [vmem:[%s1837 + $0x4] sm:$0xf]
        %v1840 = vld [vmem:[%s1837 + $0x8] sm:$0xf]
        %v1841 = vld [vmem:[%s1837 + $0xc] sm:$0xf]
        %v1842 = vld [vmem:[%s1837 + $0x10] sm:$0xf]
        %v1843 = vld [vmem:[%s1837 + $0x14] sm:$0xf]
        %v1844 = vld [vmem:[%s1837 + $0x18] sm:$0xf]
        %v1845 = vld [vmem:[%s1837 + $0x1c] sm:$0xf]
        %v1846 = vld [vmem:[%s1837 + $0x20] sm:$0xf]
        %v1847 = vld [vmem:[%s1837 + $0x24] sm:$0xf]
        %v1848 = vld [vmem:[%s1837 + $0x28] sm:$0xf]
        %v1849 = vld [vmem:[%s1837 + $0x2c] sm:$0xf]
        %v1850 = vld [vmem:[%s1837 + $0x30] sm:$0xf]
        %v1851 = vld [vmem:[%s1837 + $0x34] sm:$0xf]
        %v1852 = vld [vmem:[%s1837 + $0x38] sm:$0xf]
        %v1853 = vld [vmem:[%s1837 + $0x3c] sm:$0xf]
        %v1854 = vunpack.c.l.b16 %v1808
        %v1855 = vunpack.c.l.b16 %v1812
        %v1856 = vunpack.c.l.b16 %v1816
        %v1857 = vunpack.c.l.b16 %v1820
        %v1858 = vunpack.c.l.b16 %v1824
        %v1859 = vunpack.c.l.b16 %v1828
        %v1860 = vunpack.c.l.b16 %v1832
        %v1861 = vunpack.c.l.b16 %v1836
        %v1862 = vpack.c.b16 %v1855, %v1854
        %v1863 = vpack.c.b16 %v1857, %v1856
        %v1864 = vpack.c.b16 %v1859, %v1858
        %v1865 = vpack.c.b16 %v1861, %v1860
        %v1886 = vunpack.c.l.b16 %v1838
        %v1887 = vunpack.c.l.b16 %v1839
        %v1888 = vunpack.c.l.b16 %v1840
        %v1889 = vunpack.c.l.b16 %v1841
        %v1890 = vunpack.c.l.b16 %v1842
        %v1891 = vunpack.c.l.b16 %v1843
        %v1892 = vunpack.c.l.b16 %v1844
        %v1893 = vunpack.c.l.b16 %v1845
        %v1894 = vunpack.c.l.b16 %v1846
        %v1895 = vunpack.c.l.b16 %v1847
        %v1896 = vunpack.c.l.b16 %v1848
        %v1897 = vunpack.c.l.b16 %v1849
        %v1898 = vunpack.c.l.b16 %v1850
        %v1899 = vunpack.c.l.b16 %v1851
        %v1900 = vunpack.c.l.b16 %v1852
        %v1901 = vunpack.c.l.b16 %v1853
        %v1902 = vpack.c.b16 %v1887, %v1886
        %v1903 = vpack.c.b16 %v1889, %v1888
        %v1904 = vpack.c.b16 %v1891, %v1890
        %v1905 = vpack.c.b16 %v1893, %v1892
        %v1906 = vpack.c.b16 %v1895, %v1894
        %v1907 = vpack.c.b16 %v1897, %v1896
        %v1908 = vpack.c.b16 %v1899, %v1898
        %v1909 = vpack.c.b16 %v1901, %v1900
        %1918 = vmatpush.bf16.msra.mxu0 %v1909
        %1919 = vmatpush.bf16.msra.mxu0 %v1908
        %1920 = vmatpush.bf16.msra.mxu0 %v1907
        %1921 = vmatpush.bf16.msra.mxu0 %v1906
        %1922 = vmatpush.bf16.msra.mxu0 %v1905
        %1923 = vmatpush.bf16.msra.mxu0 %v1904
        %1924 = vmatpush.bf16.msra.mxu0 %v1903
        %1925 = vmatpush.bf16.msra.mxu0 %v1902
        %1926 = vmatmul.bf16.gmra.mxu0 %v1862
        %v1927 = vpop.f32.mrf.mxu0
        %v1928 = vadd.f32 0.0, %v1927
        %v1929 = vpop.f32.mrf.mxu0
        %v1930 = vadd.f32 0.0, %v1929
        %1931 = vmatmul.bf16.gmra.mxu0 %v1863
        %v1932 = vpop.f32.mrf.mxu0
        %v1933 = vadd.f32 0.0, %v1932
        %v1934 = vpop.f32.mrf.mxu0
        %v1935 = vadd.f32 0.0, %v1934
        %1936 = vmatmul.bf16.gmra.mxu0 %v1864
        %v1937 = vpop.f32.mrf.mxu0
        %v1938 = vadd.f32 0.0, %v1937
        %v1939 = vpop.f32.mrf.mxu0
        %v1940 = vadd.f32 0.0, %v1939
        %1941 = vmatmul.bf16.gmra.mxu0 %v1865
        %v1942 = vpop.f32.mrf.mxu0
        %v1943 = vadd.f32 0.0, %v1942
        %v1944 = vpop.f32.mrf.mxu0
        %v1945 = vadd.f32 0.0, %v1944
        %1946 = vdwg.mxu0
        %v1947 = vadd.f32 %v1773, %v1928
        %v1948 = vadd.f32 %v1774, %v1930
        %v1949 = vadd.f32 %v1775, %v1933
        %v1950 = vadd.f32 %v1776, %v1935
        %v1951 = vadd.f32 %v1777, %v1938
        %v1952 = vadd.f32 %v1778, %v1940
        %v1953 = vadd.f32 %v1779, %v1943
        %v1954 = vadd.f32 %v1780, %v1945
        %v1955 = vperm.slane %v309, 0
        %v1956 = vadd.f32 %v1947, %v1955
        %v1957 = vadd.f32 %v1948, %v1955
        %v1958 = vadd.f32 %v1949, %v1955
        %v1959 = vadd.f32 %v1950, %v1955
        %v1960 = vadd.f32 %v1951, %v1955
        %v1961 = vadd.f32 %v1952, %v1955
        %v1962 = vadd.f32 %v1953, %v1955
        %v1963 = vadd.f32 %v1954, %v1955
        %v1964 = vadd.f32 %v1956, %v1957
        %v1965 = vadd.f32 %v1964, %v1958
        %v1966 = vadd.f32 %v1965, %v1959
        %v1967 = vadd.f32 %v1966, %v1960
        %v1968 = vadd.f32 %v1967, %v1961
        %v1969 = vadd.f32 %v1968, %v1962
        %v1970 = vadd.f32 %v1969, %v1963
        %v1971 = vrot.slane %v1970, 4
        %v1972 = vadd.f32 %v1970, %v1971
        %v1973 = vrot.slane %v1972, 2
        %v1974 = vadd.f32 %v1972, %v1973
        %v1975 = vrot.slane %v1974, 1
        %v1976 = vadd.f32 %v1974, %v1975
        %v1977 = vmul.f32 %v1956, %v1956
        %v1978 = vmul.f32 %v1957, %v1957
        %v1979 = vmul.f32 %v1958, %v1958
        %v1980 = vmul.f32 %v1959, %v1959
        %v1981 = vmul.f32 %v1960, %v1960
        %v1982 = vmul.f32 %v1961, %v1961
        %v1983 = vmul.f32 %v1962, %v1962
        %v1984 = vmul.f32 %v1963, %v1963
        %v1985 = vadd.f32 %v1977, %v1978
        %v1986 = vadd.f32 %v1985, %v1979
        %v1987 = vadd.f32 %v1986, %v1980
        %v1988 = vadd.f32 %v1987, %v1981
        %v1989 = vadd.f32 %v1988, %v1982
        %v1990 = vadd.f32 %v1989, %v1983
        %v1991 = vadd.f32 %v1990, %v1984
        %v1992 = vrot.slane %v1991, 4
        %v1993 = vadd.f32 %v1991, %v1992
        %v1994 = vrot.slane %v1993, 2
        %v1995 = vadd.f32 %v1993, %v1994
        %v1996 = vrot.slane %v1995, 1
        %v1997 = vadd.f32 %v1995, %v1996
        %v1998 = vmul.f32 %v1976, 0.015625
        %v1999 = vmul.f32 %v1976, %v1998
        %v2000 = vsub.f32 %v1997, %v1999
        %v2001 = vmax.f32 %v2000, 0.0
        %v2002 = vmul.f32 %v2001, 0.015873017
        %v2003 = vrsqrt.pop %v2002
        %v2004 = vmul.f32 %v2003, %v2002
        %v2005 = vmul.f32 %v2004, %v2003
        %v2006 = vmul.f32 0.5, %v2005
        %v2007 = vsub.f32 1.5, %v2006
        %v2008 = vmul.f32 %v2003, %v2007
        %v2009 = vmul.f32 %v2002, %v2008
        %vm2010 = vcmp.eq.f32.partialorder %v2002, inf
        %v2011 = vsel %vm2010, %v2002, %v2009
        %vm2012 = vcmp.eq.f32.partialorder %v2002, 0.0
        %v2013 = vand.u32 %v2002, 2147483648
        %v2014 = vsel %vm2012, %v2013, %v2011
        %v2015 = vadd.f32 %v2014, 1e-05
        %v2016 = vrcp.pop %v2015
        %v2017 = vmul.f32 %v2015, %v2016
        %v2018 = vsub.f32 1.0, %v2017
        %v2019 = vmul.f32 %v2016, %v2018
        %v2020 = vadd.f32 %v2016, %v2019
        %vm2021 = vweird.f32 %v2015
        %vm2022 = vweird.f32 %v2016
        %vm2023 = vmor %vm2021, %vm2022
        %v2024 = vsel %vm2023, %v2016, %v2020
        %v2025 = vand.u32 2147483647, %v2015
        %vm2026 = vcmp.eq.f32.partialorder %v2025, 8.507059e+37
        %v2027 = vand.u32 %v2015, 2147483648
        %v2028 = vor.u32 1.1754944e-38, %v2027
        %v2029 = vsel %vm2026, %v2028, %v2024
        %v2030 = vmul.f32 %v2029, %v309
        %v2031 = vperm.slane %v2030, 1
        %v2032 = vmul.f32 %v1956, %v2031
        %v2033 = vmul.f32 %v1957, %v2031
        %v2034 = vmul.f32 %v1958, %v2031
        %v2035 = vmul.f32 %v1959, %v2031
        %v2036 = vmul.f32 %v1960, %v2031
        %v2037 = vmul.f32 %v1961, %v2031
        %v2038 = vmul.f32 %v1962, %v2031
        %v2039 = vmul.f32 %v1963, %v2031
        %v2040 = vmul.f32 %v1998, %v2030
        %v2042 = vrot.slane %v2040, 7
        %v2044 = vsub.f32 %v309, %v2042
        %v2045 = vperm.slane %v2044, 2
        %v2046 = vadd.f32 %v2032, %v2045
        %v2047 = vadd.f32 %v2033, %v2045
        %v2048 = vadd.f32 %v2034, %v2045
        %v2049 = vadd.f32 %v2035, %v2045
        %v2050 = vadd.f32 %v2036, %v2045
        %v2051 = vadd.f32 %v2037, %v2045
        %v2052 = vadd.f32 %v2038, %v2045
        %v2053 = vadd.f32 %v2039, %v2045
        %v2054 = vld [vmem:[%s307] sm:$0xf]
        %v2055 = vld [vmem:[%s307 + $0x4] sm:$0xf]
        %v2056 = vld [vmem:[%s307 + $0x8] sm:$0xf]
        %v2057 = vld [vmem:[%s307 + $0xc] sm:$0xf]
        %v2058 = vld [vmem:[%s307 + $0x10] sm:$0xf]
        %v2059 = vld [vmem:[%s307 + $0x14] sm:$0xf]
        %v2060 = vld [vmem:[%s307 + $0x18] sm:$0xf]
        %v2061 = vld [vmem:[%s307 + $0x1c] sm:$0xf]
        %v2062 = vld [vmem:[%s302] sm:$0xf]
        %v2063 = vld [vmem:[%s302 + $0x4] sm:$0xf]
        %v2064 = vld [vmem:[%s302 + $0x8] sm:$0xf]
        %v2065 = vld [vmem:[%s302 + $0xc] sm:$0xf]
        %v2066 = vld [vmem:[%s302 + $0x10] sm:$0xf]
        %v2067 = vld [vmem:[%s302 + $0x14] sm:$0xf]
        %v2068 = vld [vmem:[%s302 + $0x18] sm:$0xf]
        %v2069 = vld [vmem:[%s302 + $0x1c] sm:$0xf]
        %v2070 = vperm.slane %v309, 3
        %v2079 = vunpack.c.l.b16 %v2054
        %v2080 = vunpack.c.l.b16 %v2055
        %v2081 = vunpack.c.l.b16 %v2056
        %v2082 = vunpack.c.l.b16 %v2057
        %v2083 = vunpack.c.l.b16 %v2058
        %v2084 = vunpack.c.l.b16 %v2059
        %v2085 = vunpack.c.l.b16 %v2060
        %v2086 = vunpack.c.l.b16 %v2061
        %v2087 = vpack.c.b16 %v2080, %v2079
        %v2088 = vpack.c.b16 %v2082, %v2081
        %v2089 = vpack.c.b16 %v2084, %v2083
        %v2090 = vpack.c.b16 %v2086, %v2085
        %v2099 = vunpack.c.l.b16 %v2062
        %v2100 = vunpack.c.l.b16 %v2063
        %v2101 = vunpack.c.l.b16 %v2064
        %v2102 = vunpack.c.l.b16 %v2065
        %v2103 = vunpack.c.l.b16 %v2066
        %v2104 = vunpack.c.l.b16 %v2067
        %v2105 = vunpack.c.l.b16 %v2068
        %v2106 = vunpack.c.l.b16 %v2069
        %v2107 = vpack.c.b16 %v2100, %v2099
        %v2108 = vpack.c.b16 %v2102, %v2101
        %v2109 = vpack.c.b16 %v2104, %v2103
        %v2110 = vpack.c.b16 %v2106, %v2105
        %vm2115 = vcmask 523264
        %v2117 = vsel %vm2115, %v2087, 0
        %v2120 = vsel %vm2115, %v2088, 0
        %v2123 = vsel %vm2115, %v2089, 0
        %v2126 = vsel %vm2115, %v2090, 0
        %2128 = vmatpush.bf16.msra.mxu0 0
        %2129 = vmatpush.bf16.msra.mxu0 0
        %2130 = vmatpush.bf16.msra.mxu0 0
        %2131 = vmatpush.bf16.msra.mxu0 0
        %2132 = vmatpush.bf16.msra.mxu0 %v2110
        %2133 = vmatpush.bf16.msra.mxu0 %v2109
        %2134 = vmatpush.bf16.msra.mxu0 %v2108
        %2135 = vmatpush.bf16.msra.mxu0 %v2107
        %2136 = vmatmul.bf16.gmra.mxu0 %v2117
        %v2137 = vpop.f32.mrf.mxu0
        %v2138 = vadd.f32 %v2070, %v2137
        %v2139 = vpop.f32.mrf.mxu0
        %v2140 = vadd.f32 %v2070, %v2139
        %2141 = vmatmul.bf16.gmra.mxu0 %v2120
        %v2142 = vpop.f32.mrf.mxu0
        %v2143 = vadd.f32 %v2070, %v2142
        %v2144 = vpop.f32.mrf.mxu0
        %v2145 = vadd.f32 %v2070, %v2144
        %2146 = vmatmul.bf16.gmra.mxu0 %v2123
        %v2147 = vpop.f32.mrf.mxu0
        %v2148 = vadd.f32 %v2070, %v2147
        %v2149 = vpop.f32.mrf.mxu0
        %v2150 = vadd.f32 %v2070, %v2149
        %2151 = vmatmul.bf16.gmra.mxu0 %v2126
        %v2152 = vpop.f32.mrf.mxu0
        %v2153 = vadd.f32 %v2070, %v2152
        %v2154 = vpop.f32.mrf.mxu0
        %v2155 = vadd.f32 %v2070, %v2154
        %2156 = vdwg.mxu0
        %v2157 = vadd.f32 %v2138, %v2140
        %v2158 = vadd.f32 %v2157, %v2143
        %v2159 = vadd.f32 %v2158, %v2145
        %v2160 = vadd.f32 %v2159, %v2148
        %v2161 = vadd.f32 %v2160, %v2150
        %v2162 = vadd.f32 %v2161, %v2153
        %v2163 = vadd.f32 %v2162, %v2155
        %v2164 = vrot.slane %v2163, 4
        %v2165 = vadd.f32 %v2163, %v2164
        %v2166 = vrot.slane %v2165, 2
        %v2167 = vadd.f32 %v2165, %v2166
        %v2168 = vrot.slane %v2167, 1
        %v2169 = vadd.f32 %v2167, %v2168
        %v2170 = vmul.f32 %v2138, %v2138
        %v2171 = vmul.f32 %v2140, %v2140
        %v2172 = vmul.f32 %v2143, %v2143
        %v2173 = vmul.f32 %v2145, %v2145
        %v2174 = vmul.f32 %v2148, %v2148
        %v2175 = vmul.f32 %v2150, %v2150
        %v2176 = vmul.f32 %v2153, %v2153
        %v2177 = vmul.f32 %v2155, %v2155
        %v2178 = vadd.f32 %v2170, %v2171
        %v2179 = vadd.f32 %v2178, %v2172
        %v2180 = vadd.f32 %v2179, %v2173
        %v2181 = vadd.f32 %v2180, %v2174
        %v2182 = vadd.f32 %v2181, %v2175
        %v2183 = vadd.f32 %v2182, %v2176
        %v2184 = vadd.f32 %v2183, %v2177
        %v2185 = vrot.slane %v2184, 4
        %v2186 = vadd.f32 %v2184, %v2185
        %v2187 = vrot.slane %v2186, 2
        %v2188 = vadd.f32 %v2186, %v2187
        %v2189 = vrot.slane %v2188, 1
        %v2190 = vadd.f32 %v2188, %v2189
        %v2191 = vmul.f32 %v2169, 0.015625
        %v2192 = vmul.f32 %v2169, %v2191
        %v2193 = vsub.f32 %v2190, %v2192
        %v2194 = vmax.f32 %v2193, 0.0
        %v2195 = vmul.f32 %v2194, 0.015873017
        %v2196 = vrsqrt.pop %v2195
        %v2197 = vmul.f32 %v2196, %v2195
        %v2198 = vmul.f32 %v2197, %v2196
        %v2199 = vmul.f32 0.5, %v2198
        %v2200 = vsub.f32 1.5, %v2199
        %v2201 = vmul.f32 %v2196, %v2200
        %v2202 = vmul.f32 %v2195, %v2201
        %vm2203 = vcmp.eq.f32.partialorder %v2195, inf
        %v2204 = vsel %vm2203, %v2195, %v2202
        %vm2205 = vcmp.eq.f32.partialorder %v2195, 0.0
        %v2206 = vand.u32 %v2195, 2147483648
        %v2207 = vsel %vm2205, %v2206, %v2204
        %v2208 = vadd.f32 %v2207, 1e-05
        %v2209 = vrcp.pop %v2208
        %v2210 = vmul.f32 %v2208, %v2209
        %v2211 = vsub.f32 1.0, %v2210
        %v2212 = vmul.f32 %v2209, %v2211
        %v2213 = vadd.f32 %v2209, %v2212
        %vm2214 = vweird.f32 %v2208
        %vm2215 = vweird.f32 %v2209
        %vm2216 = vmor %vm2214, %vm2215
        %v2217 = vsel %vm2216, %v2209, %v2213
        %v2218 = vand.u32 2147483647, %v2208
        %vm2219 = vcmp.eq.f32.partialorder %v2218, 8.507059e+37
        %v2220 = vand.u32 %v2208, 2147483648
        %v2221 = vor.u32 1.1754944e-38, %v2220
        %v2222 = vsel %vm2219, %v2221, %v2217
        %v2223 = vmul.f32 %v2222, %v309
        %v2224 = vperm.slane %v2223, 4
        %v2225 = vmul.f32 %v2138, %v2224
        %v2226 = vmul.f32 %v2140, %v2224
        %v2227 = vmul.f32 %v2143, %v2224
        %v2228 = vmul.f32 %v2145, %v2224
        %v2229 = vmul.f32 %v2148, %v2224
        %v2230 = vmul.f32 %v2150, %v2224
        %v2231 = vmul.f32 %v2153, %v2224
        %v2232 = vmul.f32 %v2155, %v2224
        %v2233 = vmul.f32 %v2191, %v2223
        %v2235 = vrot.slane %v2233, 7
        %v2237 = vsub.f32 %v309, %v2235
        %v2238 = vperm.slane %v2237, 5
        %v2239 = vadd.f32 %v2225, %v2238
        %v2240 = vadd.f32 %v2226, %v2238
        %v2241 = vadd.f32 %v2227, %v2238
        %v2242 = vadd.f32 %v2228, %v2238
        %v2243 = vadd.f32 %v2229, %v2238
        %v2244 = vadd.f32 %v2230, %v2238
        %v2245 = vadd.f32 %v2231, %v2238
        %v2246 = vadd.f32 %v2232, %v2238
        %v2247 = vadd.f32 %v2046, %v2239
        %v2248 = vadd.f32 %v2047, %v2240
        %v2249 = vadd.f32 %v2048, %v2241
        %v2250 = vadd.f32 %v2049, %v2242
        %v2251 = vadd.f32 %v2050, %v2243
        %v2252 = vadd.f32 %v2051, %v2244
        %v2253 = vadd.f32 %v2052, %v2245
        %v2254 = vadd.f32 %v2053, %v2246
        %v2255 = vmax.f32 %v2247, 0.0
        %v2256 = vmax.f32 %v2248, 0.0
        %v2257 = vmax.f32 %v2249, 0.0
        %v2258 = vmax.f32 %v2250, 0.0
        %v2259 = vmax.f32 %v2251, 0.0
        %v2260 = vmax.f32 %v2252, 0.0
        %v2261 = vmax.f32 %v2253, 0.0
        %v2262 = vmax.f32 %v2254, 0.0
        %2263 = vst [vmem:[%s285] sm:$0xff] %v2255
        %2264 = vst [vmem:[%s285 + $0x8] sm:$0xff] %v2256
        %2265 = vst [vmem:[%s285 + $0x10] sm:$0xff] %v2257
        %2266 = vst [vmem:[%s285 + $0x18] sm:$0xff] %v2258
        %2267 = vst [vmem:[%s285 + $0x20] sm:$0xff] %v2259
        %2268 = vst [vmem:[%s285 + $0x28] sm:$0xff] %v2260
        %2269 = vst [vmem:[%s285 + $0x30] sm:$0xff] %v2261
        %2270 = vst [vmem:[%s285 + $0x38] sm:$0xff] %v2262
        %s2271 = sand.u32 %s171, 1
        %s2272 = scalar_lea.sflag [#allocation3], %s2271
        %s2273 = sand.u32 %s171, 1
        %s2274 = smul.addr %s2273, 64
        %s2275 = scalar_lea.vmem [#allocation2], %s2274
        // Predicated region
        $region41: #{residual_block.3} parent=39 // pred_check
          %p2276 = pneg %p181
        $region42: #{residual_block.3} parent=39 // pred_check_branch
          %2278 = sbr.rel (%p2276) target = $region44
        $region43: #{residual_block.3} parent=39 // pred_region
          %2280 = vsyncadd %s2272, 0
          %s2281 = smul.addr %s23, 8
          %s2282 = sadd.s32 %s24, %s2281
          %s2283 = smul.addr %s2282, 8
          %s2284 = scalar_lea.hbm %s5, %s2283
          %s2285 = sshll.u32 %s2275, 4
          %s2286 = int_to_ptr.vmem [resolvable:$true] %s2285
          %s2287 = sshll.u32 %s2284, 4
          %s2288 = int_to_ptr.hbm [resolvable:$true] %s2287
          %2293 = dma.vmem_to_hbm [thread:$0]  %s2286, 1024, %s2288, %s2272, 128, 128, 8
        $region44: #{residual_block.3} parent=39 // pred_fallthru
          _
      $region40: #{residual_block.3} parent=5 // pred_fallthru
        _
      %p2294 = scmp.le.s32.totalorder 2, %s14
      // Predicated region
      $region45: #{residual_block.3} parent=5 // pred_check
        %p2295 = pneg %p2294
      $region46: #{residual_block.3} parent=5 // pred_check_branch
        %2297 = sbr.rel (%p2295) target = $region48
      $region47: #{residual_block.3} parent=5 // pred_region
        %s2298 = ssub.s32 %s14, 2
        // Predicated region
        $region49: #{residual_block.3} parent=47 // pred_check
          %p2299 = pneg %p187
        $region50: #{residual_block.3} parent=47 // pred_check_branch
          %2301 = sbr.rel (%p2299) target = $region52
        $region51: #{residual_block.3} parent=47 // pred_region
          %s2302 = sand.u32 %s172, 1
          %s2303 = scalar_lea.sflag [#allocation3], %s2302
          %s2304 = sand.u32 %s172, 1
          %s2305 = smul.addr %s2304, 64
          %s2306 = scalar_lea.vmem [#allocation2], %s2305
          %2308 = dma.done %s2303, 1024
        $region52: #{residual_block.3} parent=47 // pred_fallthru
          _
      $region48: #{residual_block.3} parent=5 // pred_fallthru
        _
    $region6: #{residual_block.3} parent=1 // loop_footer
      %s18 = sadd.s32 1, %s14
    $region7: #{residual_block.3} parent=1 // loop_footer_branch
      %13 = sbr.rel target = $region3
    $region8: #{residual_block.3} parent=1 // loop_exit
      _
    %2309 = vsyncpa [#allocation3], 1
    %s2310 = scalar_lea.sflag [#allocation3], 1
    %2311 = vsyncpa %s2310, 1

</llo_original>
